<compile_context>
chip_gen: v7x
topology: tpu7x:2x2x1
jax: 0.10.0
libtpu: 0.0.40
codegen_flags: <defaults>
</compile_context>

<pallas_src>
import functools

import jax
import jax.numpy as jnp
from jax import lax
from jax.experimental import pallas as pl
from jax.experimental.pallas import tpu as pltpu


def _cnn_block_kernel(x_ref, w_ref, scale_ref, shift_ref, o_ref, acc_ref):
    """One (row-tile, Cout-tile) block of conv3x3(stride 1) + BN(eval) + LeakyReLU.

    x_ref     : (TH+KH-1, Wp, Cin)  bf16  zero-padded halo input slab (NHWC)
    w_ref     : (KH, KW, Cin, TCo)  bf16  weights (HWIO), one Cout tile
    scale_ref : (1, TCo)            f32   gamma / sqrt(var + eps)
    shift_ref : (1, TCo)            f32   beta - mean * scale
    o_ref     : (TH, OWp, TCo)      f32   output tile
    acc_ref   : (TH*OWp, TCo)       f32   VMEM accumulator scratch
    """
    KH, KW, Cin, TCo = w_ref.shape
    TH, OWp, _ = o_ref.shape

    # Shifted-window convolution: one (TH*OWp, Cin) x (Cin, TCo) MXU matmul
    # per tap, accumulated in f32 in the VMEM scratch.
    for kh in range(KH):
        for kw in range(KW):
            patch = x_ref[kh:kh + TH, kw:kw + OWp, :].reshape(TH * OWp, Cin)
            contrib = jnp.dot(patch, w_ref[kh, kw, :, :],
                              preferred_element_type=jnp.float32)
            if kh == 0 and kw == 0:
                acc_ref[...] = contrib          # init on first tap
            else:
                acc_ref[...] += contrib

    # Finalize once per tile: folded BatchNorm (eval) + LeakyReLU(0.1).
    y = acc_ref[...] * scale_ref[...] + shift_ref[...]
    y = jnp.where(y > 0, y, 0.1 * y)
    o_ref[...] = y.reshape(TH, OWp, TCo).astype(o_ref.dtype)


def _round_up(v, m):
    return (v + m - 1) // m * m


@functools.partial(jax.jit, static_argnames=("stride", "padding", "row_tile"))
def cnn_block_forward(x_nchw, weight_oihw, gamma, beta, running_mean,
                      running_var, *, stride=1, padding=1, eps=1e-5,
                      row_tile=8):
    """Matches CNNBlock.forward on an NCHW input (eval-mode BatchNorm)."""
    if stride != 1:
        # TODO(synk): strides other than 1 are not implemented.
        raise NotImplementedError("only stride=1 is supported")

    N, Cin, H, W = x_nchw.shape
    Cout, Cin_w, KH, KW = weight_oihw.shape
    assert Cin_w == Cin, (Cin_w, Cin)

    OH = H + 2 * padding - KH + 1
    OW = W + 2 * padding - KW + 1

    # ---- tiling / padding geometry --------------------------------------
    LANE = 128
    Cinp = _round_up(Cin, LANE)            # lane-dense contraction dim
    Coutp = _round_up(Cout, LANE)          # lane-dense output dim
    TCo = min(Coutp, 256)                  # Cout tile (256 matches v6e/v7x MXU)
    CT = Coutp // TCo

    TH = min(row_tile, _round_up(OH, 8))   # output rows per tile (sweepable)
    OH_pad = _round_up(OH, TH)
    HT = OH_pad // TH
    THK = TH + KH - 1                      # halo rows per input slab

    OW_pad = _round_up(OW, 8)              # sublane-aligned output width
    Wp_pad = _round_up(OW_pad + KW - 1, 8)
    Hp_pad = OH_pad + KH - 1

    # ---- plain-JAX glue: layout, padding, halo expansion, BN folding ----
    cdt = jnp.bfloat16                     # MXU-native operands, f32 accumulate
    x = jnp.transpose(x_nchw, (0, 2, 3, 1)).astype(cdt)        # NCHW -> NHWC
    x = jnp.pad(x, ((0, 0),
                    (padding, Hp_pad - H - padding),
                    (padding, Wp_pad - W - padding),
                    (0, Cinp - Cin)))
    # Row-tile halo expansion: (N, HT, TH+KH-1, Wp_pad, Cinp).  Duplicates
    # only KH-1 rows per tile so each grid step gets a contiguous slab that a
    # plain Blocked BlockSpec can DMA.
    x_tiles = jnp.stack([x[:, h * TH: h * TH + THK] for h in range(HT)],
                        axis=1)

    w = jnp.transpose(weight_oihw, (2, 3, 1, 0)).astype(cdt)   # OIHW -> HWIO
    w = jnp.pad(w, ((0, 0), (0, 0), (0, Cinp - Cin), (0, Coutp - Cout)))

    scale = (gamma / jnp.sqrt(running_var + eps)).astype(jnp.float32)
    shift = (beta - running_mean * scale).astype(jnp.float32)
    scale = jnp.pad(scale, (0, Coutp - Cout)).reshape(1, Coutp)
    shift = jnp.pad(shift, (0, Coutp - Cout)).reshape(1, Coutp)

    out_pad = pl.pallas_call(
        _cnn_block_kernel,
        out_shape=jax.ShapeDtypeStruct((N, OH_pad, OW_pad, Coutp), jnp.float32),
        # Cout-tile axis outermost: the weight block index is constant across
        # the inner (N, row-tile) axes, so weights stay VMEM-resident.
        grid=(CT, N, HT),
        in_specs=[
            pl.BlockSpec((None, None, THK, Wp_pad, Cinp),
                         lambda co, n, h: (n, h, 0, 0, 0)),
            pl.BlockSpec((KH, KW, Cinp, TCo),
                         lambda co, n, h: (0, 0, 0, co)),
            pl.BlockSpec((1, TCo), lambda co, n, h: (0, co)),
            pl.BlockSpec((1, TCo), lambda co, n, h: (0, co)),
        ],
        out_specs=pl.BlockSpec((None, TH, OW_pad, TCo),
                               lambda co, n, h: (n, h, 0, co)),
        scratch_shapes=[pltpu.VMEM((TH * OW_pad, TCo), jnp.float32)],
        compiler_params=pltpu.CompilerParams(
            dimension_semantics=("parallel", "parallel", "parallel")),
    )(x_tiles, w, scale, shift)

    out = out_pad[:, :OH, :OW, :Cout]
    return jnp.transpose(out, (0, 3, 1, 2))                    # NHWC -> NCHW


def _reference_forward(x_nchw, weight_oihw, gamma, beta, running_mean,
                       running_var, *, padding=1, eps=1e-5):
    """Pure-JAX reference (mirrors PyTorch eval-mode semantics, f32)."""
    conv = lax.conv_general_dilated(
        x_nchw, weight_oihw, window_strides=(1, 1),
        padding=[(padding, padding), (padding, padding)],
        dimension_numbers=("NCHW", "OIHW", "NCHW"))
    scale = (gamma / jnp.sqrt(running_var + eps)).reshape(1, -1, 1, 1)
    shift = (beta - running_mean * gamma / jnp.sqrt(running_var + eps)
             ).reshape(1, -1, 1, 1)
    y = conv * scale + shift
    return jnp.where(y > 0, y, 0.1 * y)


if __name__ == "__main__":
    # Small deterministic setup: N=2, Cin=4, H=W=16, Cout=8, k=3, pad=1.
    key = jax.random.PRNGKey(0)
    k_x, k_w, k_g, k_b, k_m, k_v = jax.random.split(key, 6)

    N, Cin, H, W = 2, 4, 16, 16
    Cout, K = 8, 3

    x = jax.random.normal(k_x, (N, Cin, H, W), dtype=jnp.float32)
    # Conv2d weight (bias=False): OIHW, kaiming-uniform-ish deterministic init.
    fan_in = Cin * K * K
    bound = (1.0 / fan_in) ** 0.5
    weight = jax.random.uniform(k_w, (Cout, Cin, K, K), jnp.float32,
                                minval=-bound, maxval=bound)
    # BatchNorm2d parameters / running stats (non-trivial, deterministic).
    gamma = 1.0 + 0.1 * jax.random.normal(k_g, (Cout,), jnp.float32)
    beta = 0.1 * jax.random.normal(k_b, (Cout,), jnp.float32)
    running_mean = 0.1 * jax.random.normal(k_m, (Cout,), jnp.float32)
    running_var = 1.0 + 0.1 * jax.random.uniform(k_v, (Cout,), jnp.float32)

    out = cnn_block_forward(x, weight, gamma, beta, running_mean, running_var,
                            padding=1)
    out = jax.block_until_ready(out)

    ref = _reference_forward(x, weight, gamma, beta, running_mean, running_var,
                             padding=1)
    assert out.shape == (N, Cout, H, W), out.shape
    # bf16 conv operands (f32 accumulate) -> compare with bf16-level tolerance.
    assert jnp.allclose(out, ref, atol=3e-2, rtol=3e-2), \
        float(jnp.max(jnp.abs(out - ref)))

    print("KERNEL_OK")
</pallas_src>

<mosaic_0001>
module attributes {stable_mosaic.version = 11 : i64} {
  func.func @_cnn_block_kernel(%arg0: i32, %arg1: i32, %arg2: i32, %arg3: memref<1x1x10x24x128xbf16, #tpu.memory_space<vmem>>, %arg4: memref<3x3x128x128xbf16, #tpu.memory_space<vmem>>, %arg5: memref<1x128xf32, #tpu.memory_space<vmem>>, %arg6: memref<1x128xf32, #tpu.memory_space<vmem>>, %arg7: memref<1x8x16x128xf32, #tpu.memory_space<vmem>>, %arg8: memref<128x128xf32, #tpu.memory_space<vmem>>) attributes {dimension_semantics = [#tpu.dimension_semantics<parallel>, #tpu.dimension_semantics<parallel>, #tpu.dimension_semantics<parallel>], iteration_bounds = array<i64: 1, 2, 2>, scalar_prefetch = 0 : i64, scratch_operands = 1 : i64, tpu.core_type = #tpu.core_type<tc>, window_params = [{transform_indices = @transform_0, window_bounds = array<i64: 1, 1, 10, 24, 128>}, {transform_indices = @transform_1, window_bounds = array<i64: 3, 3, 128, 128>}, {transform_indices = @transform_2, window_bounds = array<i64: 1, 128>}, {transform_indices = @transform_3, window_bounds = array<i64: 1, 128>}, {transform_indices = @transform_4, window_bounds = array<i64: 1, 8, 16, 128>}]} {
    %c0 = arith.constant 0 : index
    %c0_0 = arith.constant 0 : index
    %c0_1 = arith.constant 0 : index
    %c0_2 = arith.constant 0 : index
    %c0_3 = arith.constant 0 : index
    %0 = vector.load %arg3[%c0, %c0_0, %c0_1, %c0_2, %c0_3] : memref<1x1x10x24x128xbf16, #tpu.memory_space<vmem>>, vector<1x1x8x16x128xbf16>
    %1 = vector.shape_cast %0 : vector<1x1x8x16x128xbf16> to vector<8x16x128xbf16>
    %2 = vector.shape_cast %1 : vector<8x16x128xbf16> to vector<128x128xbf16>
    %c0_4 = arith.constant 0 : index
    %c0_5 = arith.constant 0 : index
    %c0_6 = arith.constant 0 : index
    %c0_7 = arith.constant 0 : index
    %3 = vector.load %arg4[%c0_4, %c0_5, %c0_6, %c0_7] : memref<3x3x128x128xbf16, #tpu.memory_space<vmem>>, vector<1x1x128x128xbf16>
    %4 = vector.shape_cast %3 : vector<1x1x128x128xbf16> to vector<128x128xbf16>
    %cst = arith.constant dense<0.000000e+00> : vector<128x128xf32>
    %5 = tpu.matmul %2, %4, %cst {dimension_numbers = #tpu.dot_dimension_numbers<[1], [0], [0], [1], [0, 0, 1, 1], [], []>} : vector<128x128xbf16>, vector<128x128xbf16>, vector<128x128xf32> -> vector<128x128xf32>
    %c0_8 = arith.constant 0 : index
    %c0_9 = arith.constant 0 : index
    %6 = vector.load %arg8[%c0_8, %c0_9] : memref<128x128xf32, #tpu.memory_space<vmem>>, vector<128x128xf32>
    tpu.vector_store %arg8[%c0_8, %c0_9], %5 {strides = array<i32>} : memref<128x128xf32, #tpu.memory_space<vmem>>, vector<128x128xf32>,
    %c0_10 = arith.constant 0 : index
    %c0_11 = arith.constant 0 : index
    %c0_12 = arith.constant 0 : index
    %c1 = arith.constant 1 : index
    %c0_13 = arith.constant 0 : index
    %7 = vector.load %arg3[%c0_10, %c0_11, %c0_12, %c1, %c0_13] : memref<1x1x10x24x128xbf16, #tpu.memory_space<vmem>>, vector<1x1x8x16x128xbf16>
    %8 = vector.shape_cast %7 : vector<1x1x8x16x128xbf16> to vector<8x16x128xbf16>
    %9 = vector.shape_cast %8 : vector<8x16x128xbf16> to vector<128x128xbf16>
    %c0_14 = arith.constant 0 : index
    %c1_15 = arith.constant 1 : index
    %c0_16 = arith.constant 0 : index
    %c0_17 = arith.constant 0 : index
    %10 = vector.load %arg4[%c0_14, %c1_15, %c0_16, %c0_17] : memref<3x3x128x128xbf16, #tpu.memory_space<vmem>>, vector<1x1x128x128xbf16>
    %11 = vector.shape_cast %10 : vector<1x1x128x128xbf16> to vector<128x128xbf16>
    %cst_18 = arith.constant dense<0.000000e+00> : vector<128x128xf32>
    %12 = tpu.matmul %9, %11, %cst_18 {dimension_numbers = #tpu.dot_dimension_numbers<[1], [0], [0], [1], [0, 0, 1, 1], [], []>} : vector<128x128xbf16>, vector<128x128xbf16>, vector<128x128xf32> -> vector<128x128xf32>
    %c0_19 = arith.constant 0 : index
    %c0_20 = arith.constant 0 : index
    %13 = vector.load %arg8[%c0_19, %c0_20] : memref<128x128xf32, #tpu.memory_space<vmem>>, vector<128x128xf32>
    %14 = arith.addf %13, %12 : vector<128x128xf32>
    %c0_21 = arith.constant 0 : index
    %c0_22 = arith.constant 0 : index
    %15 = vector.load %arg8[%c0_21, %c0_22] : memref<128x128xf32, #tpu.memory_space<vmem>>, vector<128x128xf32>
    tpu.vector_store %arg8[%c0_21, %c0_22], %14 {strides = array<i32>} : memref<128x128xf32, #tpu.memory_space<vmem>>, vector<128x128xf32>,
    %c0_23 = arith.constant 0 : index
    %c0_24 = arith.constant 0 : index
    %c0_25 = arith.constant 0 : index
    %c2 = arith.constant 2 : index
    %c0_26 = arith.constant 0 : index
    %16 = vector.load %arg3[%c0_23, %c0_24, %c0_25, %c2, %c0_26] : memref<1x1x10x24x128xbf16, #tpu.memory_space<vmem>>, vector<1x1x8x16x128xbf16>
    %17 = vector.shape_cast %16 : vector<1x1x8x16x128xbf16> to vector<8x16x128xbf16>
    %18 = vector.shape_cast %17 : vector<8x16x128xbf16> to vector<128x128xbf16>
    %c0_27 = arith.constant 0 : index
    %c2_28 = arith.constant 2 : index
    %c0_29 = arith.constant 0 : index
    %c0_30 = arith.constant 0 : index
    %19 = vector.load %arg4[%c0_27, %c2_28, %c0_29, %c0_30] : memref<3x3x128x128xbf16, #tpu.memory_space<vmem>>, vector<1x1x128x128xbf16>
    %20 = vector.shape_cast %19 : vector<1x1x128x128xbf16> to vector<128x128xbf16>
    %cst_31 = arith.constant dense<0.000000e+00> : vector<128x128xf32>
    %21 = tpu.matmul %18, %20, %cst_31 {dimension_numbers = #tpu.dot_dimension_numbers<[1], [0], [0], [1], [0, 0, 1, 1], [], []>} : vector<128x128xbf16>, vector<128x128xbf16>, vector<128x128xf32> -> vector<128x128xf32>
    %c0_32 = arith.constant 0 : index
    %c0_33 = arith.constant 0 : index
    %22 = vector.load %arg8[%c0_32, %c0_33] : memref<128x128xf32, #tpu.memory_space<vmem>>, vector<128x128xf32>
    %23 = arith.addf %22, %21 : vector<128x128xf32>
    %c0_34 = arith.constant 0 : index
    %c0_35 = arith.constant 0 : index
    %24 = vector.load %arg8[%c0_34, %c0_35] : memref<128x128xf32, #tpu.memory_space<vmem>>, vector<128x128xf32>
    tpu.vector_store %arg8[%c0_34, %c0_35], %23 {strides = array<i32>} : memref<128x128xf32, #tpu.memory_space<vmem>>, vector<128x128xf32>,
    %c0_36 = arith.constant 0 : index
    %c0_37 = arith.constant 0 : index
    %c1_38 = arith.constant 1 : index
    %c0_39 = arith.constant 0 : index
    %c0_40 = arith.constant 0 : index
    %25 = vector.load %arg3[%c0_36, %c0_37, %c1_38, %c0_39, %c0_40] : memref<1x1x10x24x128xbf16, #tpu.memory_space<vmem>>, vector<1x1x8x16x128xbf16>
    %26 = vector.shape_cast %25 : vector<1x1x8x16x128xbf16> to vector<8x16x128xbf16>
    %27 = vector.shape_cast %26 : vector<8x16x128xbf16> to vector<128x128xbf16>
    %c1_41 = arith.constant 1 : index
    %c0_42 = arith.constant 0 : index
    %c0_43 = arith.constant 0 : index
    %c0_44 = arith.constant 0 : index
    %28 = vector.load %arg4[%c1_41, %c0_42, %c0_43, %c0_44] : memref<3x3x128x128xbf16, #tpu.memory_space<vmem>>, vector<1x1x128x128xbf16>
    %29 = vector.shape_cast %28 : vector<1x1x128x128xbf16> to vector<128x128xbf16>
    %cst_45 = arith.constant dense<0.000000e+00> : vector<128x128xf32>
    %30 = tpu.matmul %27, %29, %cst_45 {dimension_numbers = #tpu.dot_dimension_numbers<[1], [0], [0], [1], [0, 0, 1, 1], [], []>} : vector<128x128xbf16>, vector<128x128xbf16>, vector<128x128xf32> -> vector<128x128xf32>
    %c0_46 = arith.constant 0 : index
    %c0_47 = arith.constant 0 : index
    %31 = vector.load %arg8[%c0_46, %c0_47] : memref<128x128xf32, #tpu.memory_space<vmem>>, vector<128x128xf32>
    %32 = arith.addf %31, %30 : vector<128x128xf32>
    %c0_48 = arith.constant 0 : index
    %c0_49 = arith.constant 0 : index
    %33 = vector.load %arg8[%c0_48, %c0_49] : memref<128x128xf32, #tpu.memory_space<vmem>>, vector<128x128xf32>
    tpu.vector_store %arg8[%c0_48, %c0_49], %32 {strides = array<i32>} : memref<128x128xf32, #tpu.memory_space<vmem>>, vector<128x128xf32>,
    %c0_50 = arith.constant 0 : index
    %c0_51 = arith.constant 0 : index
    %c1_52 = arith.constant 1 : index
    %c1_53 = arith.constant 1 : index
    %c0_54 = arith.constant 0 : index
    %34 = vector.load %arg3[%c0_50, %c0_51, %c1_52, %c1_53, %c0_54] : memref<1x1x10x24x128xbf16, #tpu.memory_space<vmem>>, vector<1x1x8x16x128xbf16>
    %35 = vector.shape_cast %34 : vector<1x1x8x16x128xbf16> to vector<8x16x128xbf16>
    %36 = vector.shape_cast %35 : vector<8x16x128xbf16> to vector<128x128xbf16>
    %c1_55 = arith.constant 1 : index
    %c1_56 = arith.constant 1 : index
    %c0_57 = arith.constant 0 : index
    %c0_58 = arith.constant 0 : index
    %37 = vector.load %arg4[%c1_55, %c1_56, %c0_57, %c0_58] : memref<3x3x128x128xbf16, #tpu.memory_space<vmem>>, vector<1x1x128x128xbf16>
    %38 = vector.shape_cast %37 : vector<1x1x128x128xbf16> to vector<128x128xbf16>
    %cst_59 = arith.constant dense<0.000000e+00> : vector<128x128xf32>
    %39 = tpu.matmul %36, %38, %cst_59 {dimension_numbers = #tpu.dot_dimension_numbers<[1], [0], [0], [1], [0, 0, 1, 1], [], []>} : vector<128x128xbf16>, vector<128x128xbf16>, vector<128x128xf32> -> vector<128x128xf32>
    %c0_60 = arith.constant 0 : index
    %c0_61 = arith.constant 0 : index
    %40 = vector.load %arg8[%c0_60, %c0_61] : memref<128x128xf32, #tpu.memory_space<vmem>>, vector<128x128xf32>
    %41 = arith.addf %40, %39 : vector<128x128xf32>
    %c0_62 = arith.constant 0 : index
    %c0_63 = arith.constant 0 : index
    %42 = vector.load %arg8[%c0_62, %c0_63] : memref<128x128xf32, #tpu.memory_space<vmem>>, vector<128x128xf32>
    tpu.vector_store %arg8[%c0_62, %c0_63], %41 {strides = array<i32>} : memref<128x128xf32, #tpu.memory_space<vmem>>, vector<128x128xf32>,
    %c0_64 = arith.constant 0 : index
    %c0_65 = arith.constant 0 : index
    %c1_66 = arith.constant 1 : index
    %c2_67 = arith.constant 2 : index
    %c0_68 = arith.constant 0 : index
    %43 = vector.load %arg3[%c0_64, %c0_65, %c1_66, %c2_67, %c0_68] : memref<1x1x10x24x128xbf16, #tpu.memory_space<vmem>>, vector<1x1x8x16x128xbf16>
    %44 = vector.shape_cast %43 : vector<1x1x8x16x128xbf16> to vector<8x16x128xbf16>
    %45 = vector.shape_cast %44 : vector<8x16x128xbf16> to vector<128x128xbf16>
    %c1_69 = arith.constant 1 : index
    %c2_70 = arith.constant 2 : index
    %c0_71 = arith.constant 0 : index
    %c0_72 = arith.constant 0 : index
    %46 = vector.load %arg4[%c1_69, %c2_70, %c0_71, %c0_72] : memref<3x3x128x128xbf16, #tpu.memory_space<vmem>>, vector<1x1x128x128xbf16>
    %47 = vector.shape_cast %46 : vector<1x1x128x128xbf16> to vector<128x128xbf16>
    %cst_73 = arith.constant dense<0.000000e+00> : vector<128x128xf32>
    %48 = tpu.matmul %45, %47, %cst_73 {dimension_numbers = #tpu.dot_dimension_numbers<[1], [0], [0], [1], [0, 0, 1, 1], [], []>} : vector<128x128xbf16>, vector<128x128xbf16>, vector<128x128xf32> -> vector<128x128xf32>
    %c0_74 = arith.constant 0 : index
    %c0_75 = arith.constant 0 : index
    %49 = vector.load %arg8[%c0_74, %c0_75] : memref<128x128xf32, #tpu.memory_space<vmem>>, vector<128x128xf32>
    %50 = arith.addf %49, %48 : vector<128x128xf32>
    %c0_76 = arith.constant 0 : index
    %c0_77 = arith.constant 0 : index
    %51 = vector.load %arg8[%c0_76, %c0_77] : memref<128x128xf32, #tpu.memory_space<vmem>>, vector<128x128xf32>
    tpu.vector_store %arg8[%c0_76, %c0_77], %50 {strides = array<i32>} : memref<128x128xf32, #tpu.memory_space<vmem>>, vector<128x128xf32>,
    %c0_78 = arith.constant 0 : index
    %c0_79 = arith.constant 0 : index
    %c2_80 = arith.constant 2 : index
    %c0_81 = arith.constant 0 : index
    %c0_82 = arith.constant 0 : index
    %52 = vector.load %arg3[%c0_78, %c0_79, %c2_80, %c0_81, %c0_82] : memref<1x1x10x24x128xbf16, #tpu.memory_space<vmem>>, vector<1x1x8x16x128xbf16>
    %53 = vector.shape_cast %52 : vector<1x1x8x16x128xbf16> to vector<8x16x128xbf16>
    %54 = vector.shape_cast %53 : vector<8x16x128xbf16> to vector<128x128xbf16>
    %c2_83 = arith.constant 2 : index
    %c0_84 = arith.constant 0 : index
    %c0_85 = arith.constant 0 : index
    %c0_86 = arith.constant 0 : index
    %55 = vector.load %arg4[%c2_83, %c0_84, %c0_85, %c0_86] : memref<3x3x128x128xbf16, #tpu.memory_space<vmem>>, vector<1x1x128x128xbf16>
    %56 = vector.shape_cast %55 : vector<1x1x128x128xbf16> to vector<128x128xbf16>
    %cst_87 = arith.constant dense<0.000000e+00> : vector<128x128xf32>
    %57 = tpu.matmul %54, %56, %cst_87 {dimension_numbers = #tpu.dot_dimension_numbers<[1], [0], [0], [1], [0, 0, 1, 1], [], []>} : vector<128x128xbf16>, vector<128x128xbf16>, vector<128x128xf32> -> vector<128x128xf32>
    %c0_88 = arith.constant 0 : index
    %c0_89 = arith.constant 0 : index
    %58 = vector.load %arg8[%c0_88, %c0_89] : memref<128x128xf32, #tpu.memory_space<vmem>>, vector<128x128xf32>
    %59 = arith.addf %58, %57 : vector<128x128xf32>
    %c0_90 = arith.constant 0 : index
    %c0_91 = arith.constant 0 : index
    %60 = vector.load %arg8[%c0_90, %c0_91] : memref<128x128xf32, #tpu.memory_space<vmem>>, vector<128x128xf32>
    tpu.vector_store %arg8[%c0_90, %c0_91], %59 {strides = array<i32>} : memref<128x128xf32, #tpu.memory_space<vmem>>, vector<128x128xf32>,
    %c0_92 = arith.constant 0 : index
    %c0_93 = arith.constant 0 : index
    %c2_94 = arith.constant 2 : index
    %c1_95 = arith.constant 1 : index
    %c0_96 = arith.constant 0 : index
    %61 = vector.load %arg3[%c0_92, %c0_93, %c2_94, %c1_95, %c0_96] : memref<1x1x10x24x128xbf16, #tpu.memory_space<vmem>>, vector<1x1x8x16x128xbf16>
    %62 = vector.shape_cast %61 : vector<1x1x8x16x128xbf16> to vector<8x16x128xbf16>
    %63 = vector.shape_cast %62 : vector<8x16x128xbf16> to vector<128x128xbf16>
    %c2_97 = arith.constant 2 : index
    %c1_98 = arith.constant 1 : index
    %c0_99 = arith.constant 0 : index
    %c0_100 = arith.constant 0 : index
    %64 = vector.load %arg4[%c2_97, %c1_98, %c0_99, %c0_100] : memref<3x3x128x128xbf16, #tpu.memory_space<vmem>>, vector<1x1x128x128xbf16>
    %65 = vector.shape_cast %64 : vector<1x1x128x128xbf16> to vector<128x128xbf16>
    %cst_101 = arith.constant dense<0.000000e+00> : vector<128x128xf32>
    %66 = tpu.matmul %63, %65, %cst_101 {dimension_numbers = #tpu.dot_dimension_numbers<[1], [0], [0], [1], [0, 0, 1, 1], [], []>} : vector<128x128xbf16>, vector<128x128xbf16>, vector<128x128xf32> -> vector<128x128xf32>
    %c0_102 = arith.constant 0 : index
    %c0_103 = arith.constant 0 : index
    %67 = vector.load %arg8[%c0_102, %c0_103] : memref<128x128xf32, #tpu.memory_space<vmem>>, vector<128x128xf32>
    %68 = arith.addf %67, %66 : vector<128x128xf32>
    %c0_104 = arith.constant 0 : index
    %c0_105 = arith.constant 0 : index
    %69 = vector.load %arg8[%c0_104, %c0_105] : memref<128x128xf32, #tpu.memory_space<vmem>>, vector<128x128xf32>
    tpu.vector_store %arg8[%c0_104, %c0_105], %68 {strides = array<i32>} : memref<128x128xf32, #tpu.memory_space<vmem>>, vector<128x128xf32>,
    %c0_106 = arith.constant 0 : index
    %c0_107 = arith.constant 0 : index
    %c2_108 = arith.constant 2 : index
    %c2_109 = arith.constant 2 : index
    %c0_110 = arith.constant 0 : index
    %70 = vector.load %arg3[%c0_106, %c0_107, %c2_108, %c2_109, %c0_110] : memref<1x1x10x24x128xbf16, #tpu.memory_space<vmem>>, vector<1x1x8x16x128xbf16>
    %71 = vector.shape_cast %70 : vector<1x1x8x16x128xbf16> to vector<8x16x128xbf16>
    %72 = vector.shape_cast %71 : vector<8x16x128xbf16> to vector<128x128xbf16>
    %c2_111 = arith.constant 2 : index
    %c2_112 = arith.constant 2 : index
    %c0_113 = arith.constant 0 : index
    %c0_114 = arith.constant 0 : index
    %73 = vector.load %arg4[%c2_111, %c2_112, %c0_113, %c0_114] : memref<3x3x128x128xbf16, #tpu.memory_space<vmem>>, vector<1x1x128x128xbf16>
    %74 = vector.shape_cast %73 : vector<1x1x128x128xbf16> to vector<128x128xbf16>
    %cst_115 = arith.constant dense<0.000000e+00> : vector<128x128xf32>
    %75 = tpu.matmul %72, %74, %cst_115 {dimension_numbers = #tpu.dot_dimension_numbers<[1], [0], [0], [1], [0, 0, 1, 1], [], []>} : vector<128x128xbf16>, vector<128x128xbf16>, vector<128x128xf32> -> vector<128x128xf32>
    %c0_116 = arith.constant 0 : index
    %c0_117 = arith.constant 0 : index
    %76 = vector.load %arg8[%c0_116, %c0_117] : memref<128x128xf32, #tpu.memory_space<vmem>>, vector<128x128xf32>
    %77 = arith.addf %76, %75 : vector<128x128xf32>
    %c0_118 = arith.constant 0 : index
    %c0_119 = arith.constant 0 : index
    %78 = vector.load %arg8[%c0_118, %c0_119] : memref<128x128xf32, #tpu.memory_space<vmem>>, vector<128x128xf32>
    tpu.vector_store %arg8[%c0_118, %c0_119], %77 {strides = array<i32>} : memref<128x128xf32, #tpu.memory_space<vmem>>, vector<128x128xf32>,
    %c0_120 = arith.constant 0 : index
    %c0_121 = arith.constant 0 : index
    %79 = vector.load %arg8[%c0_120, %c0_121] : memref<128x128xf32, #tpu.memory_space<vmem>>, vector<128x128xf32>
    %c0_122 = arith.constant 0 : index
    %c0_123 = arith.constant 0 : index
    %80 = vector.load %arg5[%c0_122, %c0_123] : memref<1x128xf32, #tpu.memory_space<vmem>>, vector<1x128xf32>
    %81 = vector.broadcast %80 : vector<1x128xf32> to vector<128x128xf32>
    %82 = arith.mulf %79, %81 : vector<128x128xf32>
    %c0_124 = arith.constant 0 : index
    %c0_125 = arith.constant 0 : index
    %83 = vector.load %arg6[%c0_124, %c0_125] : memref<1x128xf32, #tpu.memory_space<vmem>>, vector<1x128xf32>
    %84 = vector.broadcast %83 : vector<1x128xf32> to vector<128x128xf32>
    %85 = arith.addf %82, %84 : vector<128x128xf32>
    %cst_126 = arith.constant 0.000000e+00 : f32
    %86 = vector.broadcast %cst_126 : f32 to vector<128x128xf32>
    %87 = arith.cmpf ogt, %85, %86 : vector<128x128xf32>
    %cst_127 = arith.constant 1.000000e-01 : f32
    %88 = vector.broadcast %cst_127 : f32 to vector<128x128xf32>
    %89 = arith.mulf %88, %85 : vector<128x128xf32>
    %90 = arith.select %87, %85, %89 : vector<128x128xi1>, vector<128x128xf32>
    %91 = vector.shape_cast %90 : vector<128x128xf32> to vector<8x16x128xf32>
    %c0_128 = arith.constant 0 : index
    %c0_129 = arith.constant 0 : index
    %c0_130 = arith.constant 0 : index
    %c0_131 = arith.constant 0 : index
    %92 = vector.load %arg7[%c0_128, %c0_129, %c0_130, %c0_131] : memref<1x8x16x128xf32, #tpu.memory_space<vmem>>, vector<1x8x16x128xf32>
    %93 = vector.shape_cast %92 : vector<1x8x16x128xf32> to vector<8x16x128xf32>
    %94 = vector.shape_cast %91 : vector<8x16x128xf32> to vector<1x8x16x128xf32>
    tpu.vector_store %arg7[%c0_128, %c0_129, %c0_130, %c0_131], %94 {strides = array<i32>} : memref<1x8x16x128xf32, #tpu.memory_space<vmem>>, vector<1x8x16x128xf32>,
    return
  }
  func.func @transform_0(%arg0: i32, %arg1: i32, %arg2: i32) -> (i32, i32, i32, i32, i32) {
    %c0_i32 = arith.constant 0 : i32
    %c0_i32_0 = arith.constant 0 : i32
    %c0_i32_1 = arith.constant 0 : i32
    %c0_i32_2 = arith.constant 0 : i32
    return %arg1, %arg2, %c0_i32, %c0_i32_0, %c0_i32_1 : i32, i32, i32, i32, i32
  }
  func.func @transform_1(%arg0: i32, %arg1: i32, %arg2: i32) -> (i32, i32, i32, i32) {
    %c0_i32 = arith.constant 0 : i32
    %c0_i32_0 = arith.constant 0 : i32
    %c0_i32_1 = arith.constant 0 : i32
    %c0_i32_2 = arith.constant 0 : i32
    return %c0_i32, %c0_i32_0, %c0_i32_1, %arg0 : i32, i32, i32, i32
  }
  func.func @transform_2(%arg0: i32, %arg1: i32, %arg2: i32) -> (i32, i32) {
    %c0_i32 = arith.constant 0 : i32
    %c0_i32_0 = arith.constant 0 : i32
    return %c0_i32, %arg0 : i32, i32
  }
  func.func @transform_3(%arg0: i32, %arg1: i32, %arg2: i32) -> (i32, i32) {
    %c0_i32 = arith.constant 0 : i32
    %c0_i32_0 = arith.constant 0 : i32
    return %c0_i32, %arg0 : i32, i32
  }
  func.func @transform_4(%arg0: i32, %arg1: i32, %arg2: i32) -> (i32, i32, i32, i32) {
    %c0_i32 = arith.constant 0 : i32
    %c0_i32_0 = arith.constant 0 : i32
    return %arg1, %arg2, %c0_i32, %arg0 : i32, i32, i32, i32
  }
}

</mosaic_0001>

<llo_original>
// kernel: cnn_block_forward.1
$region0: #{cnn_block_forward.1}
  #allocation0 [shape = 'u32[]', space=smem, size = 0x4, offset = 0x4, fixed_abs, tag = 'smem constant byte address 0x4 - core index']
  #allocation1 [shape = 'u32[144,128]{1,0:T(1,128)}', space=vmem, size = 0x12000, scoped, tag = 'internal scratch']
  #allocation2 [shape = 'f32[128,128]{1,0:T(8,128)}', space=vmem, size = 0x10000, scoped, tag = 'scratch operand']
  %s0 = inlined_call_operand.vmem [shape: bf16[2,2,10,24,128], index: 0, kind: input, shape index: {}]
  %s1 = inlined_call_operand.vmem [shape: bf16[3,3,128,128], index: 1, kind: input, shape index: {}]
  %s2 = inlined_call_operand.vmem [shape: f32[1,128], index: 2, kind: input, shape index: {}]
  %s3 = inlined_call_operand.vmem [shape: f32[1,128], index: 3, kind: input, shape index: {}]
  %s4 = inlined_call_operand.vmem [shape: f32[2,16,16,128], index: 4, kind: output, shape index: {}]
  %s5 = sld [smem:[#allocation0]]
  $region49: #{cnn_block_forward.1} parent=0
    _
  %s7 = ssub.s32 1, %s5
  %s8 = scalar_select 0, %s7, %s5
  loop: start=0, step=1, limit=6
  $region2: #{cnn_block_forward.1} parent=0 // loop_pre_header
    _
  $region3: #{cnn_block_forward.1} parent=0 // loop_header
    %s10 = sphi 0, %s14
    %p11 = scmp.ge.s32.totalorder %s10, 6
    %s17 = sphi 0, %s36
    %s18 = sphi 0, %s32
    %s19 = sphi 0, %s28
    %s20 = sphi 0, %s17
    %s21 = sphi 0, %s18
    %s22 = sphi 0, %s19
    %s23 = sphi 0, %s20
    %s24 = sphi 0, %s21
    %s25 = sphi 0, %s22
    %s41 = sphi 0, %s43
    %s44 = sphi 0, %s41
    %s45 = sphi 0, %s44
    %s61 = sphi 0, %s45
    %s67 = sphi 0, %s69
    %s70 = sphi 0, %s67
    %s71 = sphi 0, %s70
    %s87 = sphi 0, %s71
    %s93 = sphi 0, %s95
    %s96 = sphi 0, %s93
    %s97 = sphi 0, %s96
    %s113 = sphi 0, %s97
    %s119 = sphi 0, %s121
    %s122 = sphi 0, %s119
    %s123 = sphi 0, %s122
    %s139 = sphi 0, %s123
    %s149 = sphi 0, %s151
    %s152 = sphi 0, %s149
    %s153 = sphi 0, %s152
    %s169 = sphi 0, %s153
  $region4: #{cnn_block_forward.1} parent=0 // loop_header_branch
    %13 = sbr.rel (%p11) target = $region8
  $region5: #{cnn_block_forward.1} parent=0 // loop_body
    %s15 = ssub.s32 %s10, 1
    %s16 = ssub.s32 %s10, 2
    %s26 = sadd.s32 1, %s19
    %p27 = scmp.ge.s32.totalorder %s26, 2
    %s28 = scalar_select %p27, 0, %s26
    %s29 = sadd.s32 1, %s18
    %s30 = scalar_select %p27, %s29, %s18
    %p31 = scmp.ge.s32.totalorder %s30, 2
    %s32 = scalar_select %p31, 0, %s30
    %s33 = sadd.s32 1, %s17
    %s34 = scalar_select %p31, %s33, %s17
    %p35 = scmp.ge.s32.totalorder %s34, 1
    %s36 = scalar_select %p35, 0, %s34
    %s37 = ssub.s32 %s18, %s32
    %s38 = ssub.s32 %s19, %s28
    %s39 = sor.u32 %s37, %s38
    %p40 = scmp.eq.s32.totalorder %s39, 0
    %s42 = sadd.s32 %s41, 1
    %s43 = scalar_select %p40, %s41, %s42
    %p46 = pneg %p40
    %p47 = scmp.eq.s32.totalorder %s10, 3
    %p48 = por %p46, %p47
    %p49 = scmp.ne.s32.totalorder %s41, %s44
    %p50 = scmp.eq.s32.totalorder %s10, 0
    %p51 = por %p49, %p50
    %p52 = scmp.ne.s32.totalorder %s41, %s44
    %p53 = scmp.eq.s32.totalorder %s15, 3
    %p54 = por %p52, %p53
    %p55 = scmp.ne.s32.totalorder %s44, %s45
    %p56 = scmp.eq.s32.totalorder %s15, 0
    %p57 = por %p55, %p56
    %p58 = scmp.ne.s32.totalorder %s44, %s45
    %p59 = scmp.eq.s32.totalorder %s16, 3
    %p60 = por %p58, %p59
    %p62 = scmp.ne.s32.totalorder %s45, %s61
    %p63 = scmp.eq.s32.totalorder %s16, 0
    %p64 = por %p62, %p63
    %s65 = ssub.s32 %s17, %s36
    %p66 = scmp.eq.s32.totalorder %s65, 0
    %s68 = sadd.s32 %s67, 1
    %s69 = scalar_select %p66, %s67, %s68
    %p72 = pneg %p66
    %p73 = scmp.eq.s32.totalorder %s10, 3
    %p74 = por %p72, %p73
    %p75 = scmp.ne.s32.totalorder %s67, %s70
    %p76 = scmp.eq.s32.totalorder %s10, 0
    %p77 = por %p75, %p76
    %p78 = scmp.ne.s32.totalorder %s67, %s70
    %p79 = scmp.eq.s32.totalorder %s15, 3
    %p80 = por %p78, %p79
    %p81 = scmp.ne.s32.totalorder %s70, %s71
    %p82 = scmp.eq.s32.totalorder %s15, 0
    %p83 = por %p81, %p82
    %p84 = scmp.ne.s32.totalorder %s70, %s71
    %p85 = scmp.eq.s32.totalorder %s16, 3
    %p86 = por %p84, %p85
    %p88 = scmp.ne.s32.totalorder %s71, %s87
    %p89 = scmp.eq.s32.totalorder %s16, 0
    %p90 = por %p88, %p89
    %s91 = ssub.s32 %s17, %s36
    %p92 = scmp.eq.s32.totalorder %s91, 0
    %s94 = sadd.s32 %s93, 1
    %s95 = scalar_select %p92, %s93, %s94
    %p98 = pneg %p92
    %p99 = scmp.eq.s32.totalorder %s10, 3
    %p100 = por %p98, %p99
    %p101 = scmp.ne.s32.totalorder %s93, %s96
    %p102 = scmp.eq.s32.totalorder %s10, 0
    %p103 = por %p101, %p102
    %p104 = scmp.ne.s32.totalorder %s93, %s96
    %p105 = scmp.eq.s32.totalorder %s15, 3
    %p106 = por %p104, %p105
    %p107 = scmp.ne.s32.totalorder %s96, %s97
    %p108 = scmp.eq.s32.totalorder %s15, 0
    %p109 = por %p107, %p108
    %p110 = scmp.ne.s32.totalorder %s96, %s97
    %p111 = scmp.eq.s32.totalorder %s16, 3
    %p112 = por %p110, %p111
    %p114 = scmp.ne.s32.totalorder %s97, %s113
    %p115 = scmp.eq.s32.totalorder %s16, 0
    %p116 = por %p114, %p115
    %s117 = ssub.s32 %s17, %s36
    %p118 = scmp.eq.s32.totalorder %s117, 0
    %s120 = sadd.s32 %s119, 1
    %s121 = scalar_select %p118, %s119, %s120
    %p124 = pneg %p118
    %p125 = scmp.eq.s32.totalorder %s10, 3
    %p126 = por %p124, %p125
    %p127 = scmp.ne.s32.totalorder %s119, %s122
    %p128 = scmp.eq.s32.totalorder %s10, 0
    %p129 = por %p127, %p128
    %p130 = scmp.ne.s32.totalorder %s119, %s122
    %p131 = scmp.eq.s32.totalorder %s15, 3
    %p132 = por %p130, %p131
    %p133 = scmp.ne.s32.totalorder %s122, %s123
    %p134 = scmp.eq.s32.totalorder %s15, 0
    %p135 = por %p133, %p134
    %p136 = scmp.ne.s32.totalorder %s122, %s123
    %p137 = scmp.eq.s32.totalorder %s16, 3
    %p138 = por %p136, %p137
    %p140 = scmp.ne.s32.totalorder %s123, %s139
    %p141 = scmp.eq.s32.totalorder %s16, 0
    %p142 = por %p140, %p141
    %s143 = ssub.s32 %s18, %s32
    %s144 = ssub.s32 %s19, %s28
    %s145 = sor.u32 %s143, %s144
    %s146 = ssub.s32 %s17, %s36
    %s147 = sor.u32 %s145, %s146
    %p148 = scmp.eq.s32.totalorder %s147, 0
    %s150 = sadd.s32 %s149, 1
    %s151 = scalar_select %p148, %s149, %s150
    %p154 = pneg %p148
    %p155 = scmp.eq.s32.totalorder %s10, 3
    %p156 = por %p154, %p155
    %p157 = scmp.ne.s32.totalorder %s149, %s152
    %p158 = scmp.eq.s32.totalorder %s10, 0
    %p159 = por %p157, %p158
    %p160 = scmp.ne.s32.totalorder %s149, %s152
    %p161 = scmp.eq.s32.totalorder %s15, 3
    %p162 = por %p160, %p161
    %p163 = scmp.ne.s32.totalorder %s152, %s153
    %p164 = scmp.eq.s32.totalorder %s15, 0
    %p165 = por %p163, %p164
    %p166 = scmp.ne.s32.totalorder %s152, %s153
    %p167 = scmp.eq.s32.totalorder %s16, 3
    %p168 = por %p166, %p167
    %p170 = scmp.ne.s32.totalorder %s153, %s169
    %p171 = scmp.eq.s32.totalorder %s16, 0
    %p172 = por %p170, %p171
    %p173 = scmp.le.s32.totalorder 1, %s10
    %p174 = scmp.lt.s32.totalorder %s10, 5
    %p175 = pnand %p173, %p174
    %p176 = pneg %p175
    // Predicated region
    $region9: #{cnn_block_forward.1} parent=5 // pred_check
      _
    $region10: #{cnn_block_forward.1} parent=5 // pred_check_branch
      %178 = sbr.rel (%p175) target = $region12
    $region11: #{cnn_block_forward.1} parent=5 // pred_region
      %s179 = ssub.s32 %s10, 1
      // Predicated region
      $region13: #{cnn_block_forward.1} parent=11 // pred_check
        %p180 = pneg %p83
      $region14: #{cnn_block_forward.1} parent=11 // pred_check_branch
        %182 = sbr.rel (%p180) target = $region16
      $region15: #{cnn_block_forward.1} parent=11 // pred_region
        %p183 = scmp.lt.s32.totalorder %s20, 0
        %s184 = scalar_select %p183, %s20, 0
        %s185 = smul.addr %s184, 4
        %s186 = scalar_lea.vmem %s1, %s185
      $region16: #{cnn_block_forward.1} parent=11 // pred_fallthru
        _
      // Predicated region
      $region17: #{cnn_block_forward.1} parent=11 // pred_check
        %p187 = pneg %p109
      $region18: #{cnn_block_forward.1} parent=11 // pred_check_branch
        %189 = sbr.rel (%p187) target = $region20
      $region19: #{cnn_block_forward.1} parent=11 // pred_region
        %p190 = scmp.lt.s32.totalorder %s20, 0
        %s191 = scalar_select %p190, %s20, 0
        %s192 = scalar_lea.vmem %s2, %s191
      $region20: #{cnn_block_forward.1} parent=11 // pred_fallthru
        _
      // Predicated region
      $region21: #{cnn_block_forward.1} parent=11 // pred_check
        %p193 = pneg %p135
      $region22: #{cnn_block_forward.1} parent=11 // pred_check_branch
        %195 = sbr.rel (%p193) target = $region24
      $region23: #{cnn_block_forward.1} parent=11 // pred_region
        %p196 = scmp.lt.s32.totalorder %s20, 0
        %s197 = scalar_select %p196, %s20, 0
        %s198 = scalar_lea.vmem %s3, %s197
      $region24: #{cnn_block_forward.1} parent=11 // pred_fallthru
        _
    $region12: #{cnn_block_forward.1} parent=5 // pred_fallthru
      _
    %p199 = scmp.lt.s32.totalorder %s10, 4
    // Predicated region
    $region25: #{cnn_block_forward.1} parent=5 // pred_check
      %p200 = pneg %p199
    $region26: #{cnn_block_forward.1} parent=5 // pred_check_branch
      %202 = sbr.rel (%p200) target = $region28
    $region27: #{cnn_block_forward.1} parent=5 // pred_region
      // Predicated region
      $region29: #{cnn_block_forward.1} parent=27 // pred_check
        %p203 = pneg %p51
      $region30: #{cnn_block_forward.1} parent=27 // pred_check_branch
        %205 = sbr.rel (%p203) target = $region32
      $region31: #{cnn_block_forward.1} parent=27 // pred_region
        %p206 = scmp.lt.s32.totalorder %s18, 1
        %s207 = scalar_select %p206, %s18, 1
        %p208 = scmp.lt.s32.totalorder %s19, 1
        %s209 = scalar_select %p208, %s19, 1
        %s210 = smul.addr %s209, 30
        %s211 = smul.addr %s207, 60
        %s212 = sadd.s32 %s210, %s211
        %s213 = smul.addr %s212, 4
        %s214 = scalar_lea.vmem %s0, %s213
      $region32: #{cnn_block_forward.1} parent=27 // pred_fallthru
        _
    $region28: #{cnn_block_forward.1} parent=5 // pred_fallthru
      _
    %p215 = scmp.le.s32.totalorder 1, %s10
    %p216 = scmp.lt.s32.totalorder %s10, 5
    %p217 = pnand %p215, %p216
    %p218 = pneg %p217
    // Predicated region
    $region33: #{cnn_block_forward.1} parent=5 // pred_check
      _
    $region34: #{cnn_block_forward.1} parent=5 // pred_check_branch
      %220 = sbr.rel (%p217) target = $region36
    $region35: #{cnn_block_forward.1} parent=5 // pred_region
      %s221 = ssub.s32 %s10, 1
      %p222 = scmp.lt.s32.totalorder %s21, 1
      %s223 = scalar_select %p222, %s21, 1
      %p224 = scmp.lt.s32.totalorder %s22, 1
      %s225 = scalar_select %p224, %s22, 1
      %s226 = smul.addr %s225, 30
      %s227 = smul.addr %s223, 60
      %s228 = sadd.s32 %s226, %s227
      %s229 = smul.addr %s228, 4
      %s230 = scalar_lea.vmem %s0, %s229
      %p231 = pneg %p57
      %p232 = pneg %p54
      %p233 = scmp.lt.s32.totalorder %s20, 0
      %s234 = scalar_select %p233, %s20, 0
      %s235 = smul.addr %s234, 4
      %s236 = scalar_lea.vmem %s1, %s235
      %p237 = pneg %p83
      %p238 = pneg %p80
      %p239 = scmp.lt.s32.totalorder %s20, 0
      %s240 = scalar_select %p239, %s20, 0
      %s241 = scalar_lea.vmem %s2, %s240
      %p242 = pneg %p109
      %p243 = pneg %p106
      %p244 = scmp.lt.s32.totalorder %s20, 0
      %s245 = scalar_select %p244, %s20, 0
      %s246 = scalar_lea.vmem %s3, %s245
      %p247 = pneg %p135
      %p248 = pneg %p132
      %p249 = pneg %p165
      %p250 = pneg %p162
      %s251 = smul.u32 8, %s22
      %p252 = scmp.lt.s32.totalorder %s21, 1
      %s253 = scalar_select %p252, %s21, 1
      %p254 = scmp.lt.s32.totalorder %s251, 15
      %s255 = scalar_select %p254, %s251, 15
      %p256 = scmp.lt.s32.totalorder %s20, 0
      %s257 = scalar_select %p256, %s20, 0
      %s258 = smul.addr %s255, 2
      %s259 = sadd.s32 %s257, %s258
      %s260 = smul.addr %s253, 32
      %s261 = sadd.s32 %s259, %s260
      %s262 = smul.addr %s261, 8
      %s263 = scalar_lea.vmem %s4, %s262
      %p264 = scmp.lt.s32.totalorder %s21, 1
      %s265 = scalar_select %p264, %s21, 1
      %p266 = scmp.lt.s32.totalorder %s22, 1
      %s267 = scalar_select %p266, %s22, 1
      %s268 = smul.addr %s267, 30
      %s269 = smul.addr %s265, 60
      %s270 = sadd.s32 %s268, %s269
      %s271 = smul.addr %s270, 4
      %s272 = scalar_lea.vmem %s0, %s271
      %p273 = scmp.lt.s32.totalorder %s20, 0
      %s274 = scalar_select %p273, %s20, 0
      %s275 = smul.addr %s274, 4
      %s276 = scalar_lea.vmem %s1, %s275
      %p277 = scmp.lt.s32.totalorder %s20, 0
      %s278 = scalar_select %p277, %s20, 0
      %s279 = scalar_lea.vmem %s2, %s278
      %p280 = scmp.lt.s32.totalorder %s20, 0
      %s281 = scalar_select %p280, %s20, 0
      %s282 = scalar_lea.vmem %s3, %s281
      %s283 = smul.u32 8, %s22
      %p284 = scmp.lt.s32.totalorder %s21, 1
      %s285 = scalar_select %p284, %s21, 1
      %p286 = scmp.lt.s32.totalorder %s283, 15
      %s287 = scalar_select %p286, %s283, 15
      %p288 = scmp.lt.s32.totalorder %s20, 0
      %s289 = scalar_select %p288, %s20, 0
      %s290 = smul.addr %s287, 2
      %s291 = sadd.s32 %s289, %s290
      %s292 = smul.addr %s285, 32
      %s293 = sadd.s32 %s291, %s292
      %s294 = smul.addr %s293, 8
      %s295 = scalar_lea.vmem %s4, %s294
      %s296 = smul.u32 8, %s22
      %v298 = vld [vmem:[%s272] sm:$0xf]
      %v299 = vld [vmem:[%s272 + $0x4] sm:$0xf]
      %v300 = vld [vmem:[%s272 + $0xc] sm:$0xf]
      %v301 = vld [vmem:[%s272 + $0x10] sm:$0xf]
      %v302 = vld [vmem:[%s272 + $0x18] sm:$0xf]
      %v303 = vld [vmem:[%s272 + $0x1c] sm:$0xf]
      %v304 = vld [vmem:[%s272 + $0x24] sm:$0xf]
      %v305 = vld [vmem:[%s272 + $0x28] sm:$0xf]
      %v306 = vld [vmem:[%s272 + $0x30] sm:$0xf]
      %v307 = vld [vmem:[%s272 + $0x34] sm:$0xf]
      %v308 = vld [vmem:[%s272 + $0x3c] sm:$0xf]
      %v309 = vld [vmem:[%s272 + $0x40] sm:$0xf]
      %v310 = vld [vmem:[%s272 + $0x48] sm:$0xf]
      %v311 = vld [vmem:[%s272 + $0x4c] sm:$0xf]
      %v312 = vld [vmem:[%s272 + $0x54] sm:$0xf]
      %v313 = vld [vmem:[%s272 + $0x58] sm:$0xf]
      %v314 = vld [vmem:[%s276] sm:$0xf]
      %v315 = vld [vmem:[%s276 + $0x4] sm:$0xf]
      %v316 = vld [vmem:[%s276 + $0x8] sm:$0xf]
      %v317 = vld [vmem:[%s276 + $0xc] sm:$0xf]
      %v318 = vld [vmem:[%s276 + $0x10] sm:$0xf]
      %v319 = vld [vmem:[%s276 + $0x14] sm:$0xf]
      %v320 = vld [vmem:[%s276 + $0x18] sm:$0xf]
      %v321 = vld [vmem:[%s276 + $0x1c] sm:$0xf]
      %v322 = vld [vmem:[%s276 + $0x20] sm:$0xf]
      %v323 = vld [vmem:[%s276 + $0x24] sm:$0xf]
      %v324 = vld [vmem:[%s276 + $0x28] sm:$0xf]
      %v325 = vld [vmem:[%s276 + $0x2c] sm:$0xf]
      %v326 = vld [vmem:[%s276 + $0x30] sm:$0xf]
      %v327 = vld [vmem:[%s276 + $0x34] sm:$0xf]
      %v328 = vld [vmem:[%s276 + $0x38] sm:$0xf]
      %v329 = vld [vmem:[%s276 + $0x3c] sm:$0xf]
      %v346 = vunpack.c.l.b16 %v298
      %v347 = vunpack.c.l.b16 %v299
      %v348 = vunpack.c.l.b16 %v300
      %v349 = vunpack.c.l.b16 %v301
      %v350 = vunpack.c.l.b16 %v302
      %v351 = vunpack.c.l.b16 %v303
      %v352 = vunpack.c.l.b16 %v304
      %v353 = vunpack.c.l.b16 %v305
      %v354 = vunpack.c.l.b16 %v306
      %v355 = vunpack.c.l.b16 %v307
      %v356 = vunpack.c.l.b16 %v308
      %v357 = vunpack.c.l.b16 %v309
      %v358 = vunpack.c.l.b16 %v310
      %v359 = vunpack.c.l.b16 %v311
      %v360 = vunpack.c.l.b16 %v312
      %v361 = vunpack.c.l.b16 %v313
      %v362 = vpack.c.b16 %v347, %v346
      %v363 = vpack.c.b16 %v349, %v348
      %v364 = vpack.c.b16 %v351, %v350
      %v365 = vpack.c.b16 %v353, %v352
      %v366 = vpack.c.b16 %v355, %v354
      %v367 = vpack.c.b16 %v357, %v356
      %v368 = vpack.c.b16 %v359, %v358
      %v369 = vpack.c.b16 %v361, %v360
      %v394 = vunpack.c.l.b16 %v314
      %v395 = vunpack.c.l.b16 %v315
      %v396 = vunpack.c.l.b16 %v316
      %v397 = vunpack.c.l.b16 %v317
      %v398 = vunpack.c.l.b16 %v318
      %v399 = vunpack.c.l.b16 %v319
      %v400 = vunpack.c.l.b16 %v320
      %v401 = vunpack.c.l.b16 %v321
      %v402 = vunpack.c.l.b16 %v322
      %v403 = vunpack.c.l.b16 %v323
      %v404 = vunpack.c.l.b16 %v324
      %v405 = vunpack.c.l.b16 %v325
      %v406 = vunpack.c.l.b16 %v326
      %v407 = vunpack.c.l.b16 %v327
      %v408 = vunpack.c.l.b16 %v328
      %v409 = vunpack.c.l.b16 %v329
      %v410 = vpack.c.b16 %v395, %v394
      %v411 = vpack.c.b16 %v397, %v396
      %v412 = vpack.c.b16 %v399, %v398
      %v413 = vpack.c.b16 %v401, %v400
      %v414 = vpack.c.b16 %v403, %v402
      %v415 = vpack.c.b16 %v405, %v404
      %v416 = vpack.c.b16 %v407, %v406
      %v417 = vpack.c.b16 %v409, %v408
      %426 = vmatprep.subr.bf16.mxu0 0
      %427 = vmatpush1.bf16.msra.mxu0 %v410
      %428 = vmatprep.subr.bf16.mxu0 0
      %429 = vmatpush1.bf16.msra.mxu0 %v411
      %430 = vmatprep.subr.bf16.mxu0 0
      %431 = vmatpush1.bf16.msra.mxu0 %v412
      %432 = vmatprep.subr.bf16.mxu0 0
      %433 = vmatpush1.bf16.msra.mxu0 %v413
      %434 = vmatprep.subr.bf16.mxu0 0
      %435 = vmatpush1.bf16.msra.mxu0 %v414
      %436 = vmatprep.subr.bf16.mxu0 0
      %437 = vmatpush1.bf16.msra.mxu0 %v415
      %438 = vmatprep.subr.bf16.mxu0 0
      %439 = vmatpush1.bf16.msra.mxu0 %v416
      %440 = vmatprep.subr.bf16.mxu0 0
      %441 = vmatpush1.bf16.msra.mxu0 %v417
      %442 = vmatprep.subr.bf16.mxu0 0
      %443 = vmatpush1.bf16.msra.mxu0 0
      %444 = vmatprep.subr.bf16.mxu0 0
      %445 = vmatpush1.bf16.msra.mxu0 0
      %446 = vmatprep.subr.bf16.mxu0 0
      %447 = vmatpush1.bf16.msra.mxu0 0
      %448 = vmatprep.subr.bf16.mxu0 0
      %449 = vmatpush1.bf16.msra.mxu0 0
      %450 = vmatprep.subr.bf16.mxu0 0
      %451 = vmatpush1.bf16.msra.mxu0 0
      %452 = vmatprep.subr.bf16.mxu0 0
      %453 = vmatpush1.bf16.msra.mxu0 0
      %454 = vmatprep.subr.bf16.mxu0 0
      %455 = vmatpush1.bf16.msra.mxu0 0
      %456 = vmatprep.subr.bf16.mxu0 0
      %457 = vmatpush1.bf16.msra.mxu0 0
      %458 = vmatprep.mubr.bf16.mxu0 0
      %459 = vmatmul.mubr.bf16.gmra.mrb[0].mxu0 %v362
      %v460 = vpop.f32.mrb[0].mxu0
      %v461 = vadd.f32 0.0, %v460
      %v462 = vpop.f32.mrb[0].mxu0
      %v463 = vpop.f32.mrb[0].mxu0
      %v464 = vadd.f32 0.0, %v463
      %v465 = vpop.f32.mrb[0].mxu0
      %466 = vmatprep.mubr.bf16.mxu0 0
      %467 = vmatmul.mubr.bf16.gmra.mrb[0].mxu0 %v363
      %v468 = vpop.f32.mrb[0].mxu0
      %v469 = vadd.f32 0.0, %v468
      %v470 = vpop.f32.mrb[0].mxu0
      %v471 = vpop.f32.mrb[0].mxu0
      %v472 = vadd.f32 0.0, %v471
      %v473 = vpop.f32.mrb[0].mxu0
      %474 = vmatprep.mubr.bf16.mxu0 0
      %475 = vmatmul.mubr.bf16.gmra.mrb[0].mxu0 %v364
      %v476 = vpop.f32.mrb[0].mxu0
      %v477 = vadd.f32 0.0, %v476
      %v478 = vpop.f32.mrb[0].mxu0
      %v479 = vpop.f32.mrb[0].mxu0
      %v480 = vadd.f32 0.0, %v479
      %v481 = vpop.f32.mrb[0].mxu0
      %482 = vmatprep.mubr.bf16.mxu0 0
      %483 = vmatmul.mubr.bf16.gmra.mrb[0].mxu0 %v365
      %v484 = vpop.f32.mrb[0].mxu0
      %v485 = vadd.f32 0.0, %v484
      %v486 = vpop.f32.mrb[0].mxu0
      %v487 = vpop.f32.mrb[0].mxu0
      %v488 = vadd.f32 0.0, %v487
      %v489 = vpop.f32.mrb[0].mxu0
      %490 = vmatprep.mubr.bf16.mxu0 0
      %491 = vmatmul.mubr.bf16.gmra.mrb[0].mxu0 %v366
      %v492 = vpop.f32.mrb[0].mxu0
      %v493 = vadd.f32 0.0, %v492
      %v494 = vpop.f32.mrb[0].mxu0
      %v495 = vpop.f32.mrb[0].mxu0
      %v496 = vadd.f32 0.0, %v495
      %v497 = vpop.f32.mrb[0].mxu0
      %498 = vmatprep.mubr.bf16.mxu0 0
      %499 = vmatmul.mubr.bf16.gmra.mrb[0].mxu0 %v367
      %v500 = vpop.f32.mrb[0].mxu0
      %v501 = vadd.f32 0.0, %v500
      %v502 = vpop.f32.mrb[0].mxu0
      %v503 = vpop.f32.mrb[0].mxu0
      %v504 = vadd.f32 0.0, %v503
      %v505 = vpop.f32.mrb[0].mxu0
      %506 = vmatprep.mubr.bf16.mxu0 0
      %507 = vmatmul.mubr.bf16.gmra.mrb[0].mxu0 %v368
      %v508 = vpop.f32.mrb[0].mxu0
      %v509 = vadd.f32 0.0, %v508
      %v510 = vpop.f32.mrb[0].mxu0
      %v511 = vpop.f32.mrb[0].mxu0
      %v512 = vadd.f32 0.0, %v511
      %v513 = vpop.f32.mrb[0].mxu0
      %514 = vmatprep.mubr.bf16.mxu0 0
      %515 = vmatmul.mubr.bf16.gmra.mrb[0].mxu0 %v369
      %v516 = vpop.f32.mrb[0].mxu0
      %v517 = vadd.f32 0.0, %v516
      %v518 = vpop.f32.mrb[0].mxu0
      %v519 = vpop.f32.mrb[0].mxu0
      %v520 = vadd.f32 0.0, %v519
      %v521 = vpop.f32.mrb[0].mxu0
      %522 = vdwg.mxu0
      %523 = vst [vmem:[#allocation2] sm:$0xff] %v461
      %524 = vst [vmem:[#allocation2 + $0x8] sm:$0xff] %v464
      %525 = vst [vmem:[#allocation2 + $0x10] sm:$0xff] %v469
      %526 = vst [vmem:[#allocation2 + $0x18] sm:$0xff] %v472
      %527 = vst [vmem:[#allocation2 + $0x20] sm:$0xff] %v477
      %528 = vst [vmem:[#allocation2 + $0x28] sm:$0xff] %v480
      %529 = vst [vmem:[#allocation2 + $0x30] sm:$0xff] %v485
      %530 = vst [vmem:[#allocation2 + $0x38] sm:$0xff] %v488
      %531 = vst [vmem:[#allocation2 + $0x40] sm:$0xff] %v493
      %532 = vst [vmem:[#allocation2 + $0x48] sm:$0xff] %v496
      %533 = vst [vmem:[#allocation2 + $0x50] sm:$0xff] %v501
      %534 = vst [vmem:[#allocation2 + $0x58] sm:$0xff] %v504
      %535 = vst [vmem:[#allocation2 + $0x60] sm:$0xff] %v509
      %536 = vst [vmem:[#allocation2 + $0x68] sm:$0xff] %v512
      %537 = vst [vmem:[#allocation2 + $0x70] sm:$0xff] %v517
      %538 = vst [vmem:[#allocation2 + $0x78] sm:$0xff] %v520
      %v539 = vld [vmem:[%s272] sm:$0xf]
      %v540 = vld [vmem:[%s272 + $0x4] sm:$0xf]
      %v541 = vld [vmem:[%s272 + $0x8] sm:$0x1]
      %v542 = vld [vmem:[%s272 + $0xc] sm:$0xf]
      %v543 = vld [vmem:[%s272 + $0x10] sm:$0xf]
      %v544 = vld [vmem:[%s272 + $0x14] sm:$0x1]
      %v545 = vld [vmem:[%s272 + $0x18] sm:$0xf]
      %v546 = vld [vmem:[%s272 + $0x1c] sm:$0xf]
      %v547 = vld [vmem:[%s272 + $0x20] sm:$0x1]
      %v548 = vld [vmem:[%s272 + $0x24] sm:$0xf]
      %v549 = vld [vmem:[%s272 + $0x28] sm:$0xf]
      %v550 = vld [vmem:[%s272 + $0x2c] sm:$0x1]
      %v551 = vld [vmem:[%s272 + $0x30] sm:$0xf]
      %v552 = vld [vmem:[%s272 + $0x34] sm:$0xf]
      %v553 = vld [vmem:[%s272 + $0x38] sm:$0x1]
      %v554 = vld [vmem:[%s272 + $0x3c] sm:$0xf]
      %v555 = vld [vmem:[%s272 + $0x40] sm:$0xf]
      %v556 = vld [vmem:[%s272 + $0x44] sm:$0x1]
      %v557 = vld [vmem:[%s272 + $0x48] sm:$0xf]
      %v558 = vld [vmem:[%s272 + $0x4c] sm:$0xf]
      %v559 = vld [vmem:[%s272 + $0x50] sm:$0x1]
      %v560 = vld [vmem:[%s272 + $0x54] sm:$0xf]
      %v561 = vld [vmem:[%s272 + $0x58] sm:$0xf]
      %v562 = vld [vmem:[%s272 + $0x5c] sm:$0x1]
      %vm563 = vsmask.f32 3328
      %vm564 = vsmask.f32 7440
      %vm565 = vmor %vm563, %vm564
      %v567 = vshrl.u32 %v539, 16
      %v569 = vrot.slane %v567, 4
      %v570 = vshll.u32 %v539, 16
      %v572 = vrot.slane %v570, 5
      %v573 = vor.u32 %v569, %v572
      %v574 = vrot.slane %v573, 4
      %v576 = vshll.u32 %v540, 16
      %v578 = vrot.slane %v576, 5
      %v579 = vsel %vm565, %v574, %v578
      %v580 = vshrl.u32 %v540, 16
      %v582 = vrot.slane %v580, 4
      %v583 = vor.u32 %v582, %v578
      %v584 = vrot.slane %v583, 4
      %v586 = vshll.u32 %v541, 16
      %v588 = vrot.slane %v586, 5
      %v589 = vsel %vm565, %v584, %v588
      %v591 = vshrl.u32 %v542, 16
      %v593 = vrot.slane %v591, 4
      %v594 = vshll.u32 %v542, 16
      %v596 = vrot.slane %v594, 5
      %v597 = vor.u32 %v593, %v596
      %v598 = vrot.slane %v597, 4
      %v600 = vshll.u32 %v543, 16
      %v602 = vrot.slane %v600, 5
      %v603 = vsel %vm565, %v598, %v602
      %v604 = vshrl.u32 %v543, 16
      %v606 = vrot.slane %v604, 4
      %v607 = vor.u32 %v606, %v602
      %v608 = vrot.slane %v607, 4
      %v610 = vshll.u32 %v544, 16
      %v612 = vrot.slane %v610, 5
      %v613 = vsel %vm565, %v608, %v612
      %v615 = vshrl.u32 %v545, 16
      %v617 = vrot.slane %v615, 4
      %v618 = vshll.u32 %v545, 16
      %v620 = vrot.slane %v618, 5
      %v621 = vor.u32 %v617, %v620
      %v622 = vrot.slane %v621, 4
      %v624 = vshll.u32 %v546, 16
      %v626 = vrot.slane %v624, 5
      %v627 = vsel %vm565, %v622, %v626
      %v628 = vshrl.u32 %v546, 16
      %v630 = vrot.slane %v628, 4
      %v631 = vor.u32 %v630, %v626
      %v632 = vrot.slane %v631, 4
      %v634 = vshll.u32 %v547, 16
      %v636 = vrot.slane %v634, 5
      %v637 = vsel %vm565, %v632, %v636
      %v639 = vshrl.u32 %v548, 16
      %v641 = vrot.slane %v639, 4
      %v642 = vshll.u32 %v548, 16
      %v644 = vrot.slane %v642, 5
      %v645 = vor.u32 %v641, %v644
      %v646 = vrot.slane %v645, 4
      %v648 = vshll.u32 %v549, 16
      %v650 = vrot.slane %v648, 5
      %v651 = vsel %vm565, %v646, %v650
      %v652 = vshrl.u32 %v549, 16
      %v654 = vrot.slane %v652, 4
      %v655 = vor.u32 %v654, %v650
      %v656 = vrot.slane %v655, 4
      %v658 = vshll.u32 %v550, 16
      %v660 = vrot.slane %v658, 5
      %v661 = vsel %vm565, %v656, %v660
      %v663 = vshrl.u32 %v551, 16
      %v665 = vrot.slane %v663, 4
      %v666 = vshll.u32 %v551, 16
      %v668 = vrot.slane %v666, 5
      %v669 = vor.u32 %v665, %v668
      %v670 = vrot.slane %v669, 4
      %v672 = vshll.u32 %v552, 16
      %v674 = vrot.slane %v672, 5
      %v675 = vsel %vm565, %v670, %v674
      %v676 = vshrl.u32 %v552, 16
      %v678 = vrot.slane %v676, 4
      %v679 = vor.u32 %v678, %v674
      %v680 = vrot.slane %v679, 4
      %v682 = vshll.u32 %v553, 16
      %v684 = vrot.slane %v682, 5
      %v685 = vsel %vm565, %v680, %v684
      %v687 = vshrl.u32 %v554, 16
      %v689 = vrot.slane %v687, 4
      %v690 = vshll.u32 %v554, 16
      %v692 = vrot.slane %v690, 5
      %v693 = vor.u32 %v689, %v692
      %v694 = vrot.slane %v693, 4
      %v696 = vshll.u32 %v555, 16
      %v698 = vrot.slane %v696, 5
      %v699 = vsel %vm565, %v694, %v698
      %v700 = vshrl.u32 %v555, 16
      %v702 = vrot.slane %v700, 4
      %v703 = vor.u32 %v702, %v698
      %v704 = vrot.slane %v703, 4
      %v706 = vshll.u32 %v556, 16
      %v708 = vrot.slane %v706, 5
      %v709 = vsel %vm565, %v704, %v708
      %v711 = vshrl.u32 %v557, 16
      %v713 = vrot.slane %v711, 4
      %v714 = vshll.u32 %v557, 16
      %v716 = vrot.slane %v714, 5
      %v717 = vor.u32 %v713, %v716
      %v718 = vrot.slane %v717, 4
      %v720 = vshll.u32 %v558, 16
      %v722 = vrot.slane %v720, 5
      %v723 = vsel %vm565, %v718, %v722
      %v724 = vshrl.u32 %v558, 16
      %v726 = vrot.slane %v724, 4
      %v727 = vor.u32 %v726, %v722
      %v728 = vrot.slane %v727, 4
      %v730 = vshll.u32 %v559, 16
      %v732 = vrot.slane %v730, 5
      %v733 = vsel %vm565, %v728, %v732
      %v735 = vshrl.u32 %v560, 16
      %v737 = vrot.slane %v735, 4
      %v738 = vshll.u32 %v560, 16
      %v740 = vrot.slane %v738, 5
      %v741 = vor.u32 %v737, %v740
      %v742 = vrot.slane %v741, 4
      %v744 = vshll.u32 %v561, 16
      %v746 = vrot.slane %v744, 5
      %v747 = vsel %vm565, %v742, %v746
      %v748 = vshrl.u32 %v561, 16
      %v750 = vrot.slane %v748, 4
      %v751 = vor.u32 %v750, %v746
      %v752 = vrot.slane %v751, 4
      %v754 = vshll.u32 %v562, 16
      %v756 = vrot.slane %v754, 5
      %v757 = vsel %vm565, %v752, %v756
      %s758 = scalar_lea.vmem %s276, 64
      %v759 = vld [vmem:[%s758] sm:$0xf]
      %v760 = vld [vmem:[%s758 + $0x4] sm:$0xf]
      %v761 = vld [vmem:[%s758 + $0x8] sm:$0xf]
      %v762 = vld [vmem:[%s758 + $0xc] sm:$0xf]
      %v763 = vld [vmem:[%s758 + $0x10] sm:$0xf]
      %v764 = vld [vmem:[%s758 + $0x14] sm:$0xf]
      %v765 = vld [vmem:[%s758 + $0x18] sm:$0xf]
      %v766 = vld [vmem:[%s758 + $0x1c] sm:$0xf]
      %v767 = vld [vmem:[%s758 + $0x20] sm:$0xf]
      %v768 = vld [vmem:[%s758 + $0x24] sm:$0xf]
      %v769 = vld [vmem:[%s758 + $0x28] sm:$0xf]
      %v770 = vld [vmem:[%s758 + $0x2c] sm:$0xf]
      %v771 = vld [vmem:[%s758 + $0x30] sm:$0xf]
      %v772 = vld [vmem:[%s758 + $0x34] sm:$0xf]
      %v773 = vld [vmem:[%s758 + $0x38] sm:$0xf]
      %v774 = vld [vmem:[%s758 + $0x3c] sm:$0xf]
      %v775 = vunpack.c.l.b16 %v579
      %v776 = vunpack.c.l.b16 %v589
      %v777 = vunpack.c.l.b16 %v603
      %v778 = vunpack.c.l.b16 %v613
      %v779 = vunpack.c.l.b16 %v627
      %v780 = vunpack.c.l.b16 %v637
      %v781 = vunpack.c.l.b16 %v651
      %v782 = vunpack.c.l.b16 %v661
      %v783 = vunpack.c.l.b16 %v675
      %v784 = vunpack.c.l.b16 %v685
      %v785 = vunpack.c.l.b16 %v699
      %v786 = vunpack.c.l.b16 %v709
      %v787 = vunpack.c.l.b16 %v723
      %v788 = vunpack.c.l.b16 %v733
      %v789 = vunpack.c.l.b16 %v747
      %v790 = vunpack.c.l.b16 %v757
      %v791 = vpack.c.b16 %v776, %v775
      %v792 = vpack.c.b16 %v778, %v777
      %v793 = vpack.c.b16 %v780, %v779
      %v794 = vpack.c.b16 %v782, %v781
      %v795 = vpack.c.b16 %v784, %v783
      %v796 = vpack.c.b16 %v786, %v785
      %v797 = vpack.c.b16 %v788, %v787
      %v798 = vpack.c.b16 %v790, %v789
      %v823 = vunpack.c.l.b16 %v759
      %v824 = vunpack.c.l.b16 %v760
      %v825 = vunpack.c.l.b16 %v761
      %v826 = vunpack.c.l.b16 %v762
      %v827 = vunpack.c.l.b16 %v763
      %v828 = vunpack.c.l.b16 %v764
      %v829 = vunpack.c.l.b16 %v765
      %v830 = vunpack.c.l.b16 %v766
      %v831 = vunpack.c.l.b16 %v767
      %v832 = vunpack.c.l.b16 %v768
      %v833 = vunpack.c.l.b16 %v769
      %v834 = vunpack.c.l.b16 %v770
      %v835 = vunpack.c.l.b16 %v771
      %v836 = vunpack.c.l.b16 %v772
      %v837 = vunpack.c.l.b16 %v773
      %v838 = vunpack.c.l.b16 %v774
      %v839 = vpack.c.b16 %v824, %v823
      %v840 = vpack.c.b16 %v826, %v825
      %v841 = vpack.c.b16 %v828, %v827
      %v842 = vpack.c.b16 %v830, %v829
      %v843 = vpack.c.b16 %v832, %v831
      %v844 = vpack.c.b16 %v834, %v833
      %v845 = vpack.c.b16 %v836, %v835
      %v846 = vpack.c.b16 %v838, %v837
      %855 = vmatprep.subr.bf16.mxu0 0
      %856 = vmatpush1.bf16.msra.mxu0 %v839
      %857 = vmatprep.subr.bf16.mxu0 0
      %858 = vmatpush1.bf16.msra.mxu0 %v840
      %859 = vmatprep.subr.bf16.mxu0 0
      %860 = vmatpush1.bf16.msra.mxu0 %v841
      %861 = vmatprep.subr.bf16.mxu0 0
      %862 = vmatpush1.bf16.msra.mxu0 %v842
      %863 = vmatprep.subr.bf16.mxu0 0
      %864 = vmatpush1.bf16.msra.mxu0 %v843
      %865 = vmatprep.subr.bf16.mxu0 0
      %866 = vmatpush1.bf16.msra.mxu0 %v844
      %867 = vmatprep.subr.bf16.mxu0 0
      %868 = vmatpush1.bf16.msra.mxu0 %v845
      %869 = vmatprep.subr.bf16.mxu0 0
      %870 = vmatpush1.bf16.msra.mxu0 %v846
      %871 = vmatprep.subr.bf16.mxu0 0
      %872 = vmatpush1.bf16.msra.mxu0 0
      %873 = vmatprep.subr.bf16.mxu0 0
      %874 = vmatpush1.bf16.msra.mxu0 0
      %875 = vmatprep.subr.bf16.mxu0 0
      %876 = vmatpush1.bf16.msra.mxu0 0
      %877 = vmatprep.subr.bf16.mxu0 0
      %878 = vmatpush1.bf16.msra.mxu0 0
      %879 = vmatprep.subr.bf16.mxu0 0
      %880 = vmatpush1.bf16.msra.mxu0 0
      %881 = vmatprep.subr.bf16.mxu0 0
      %882 = vmatpush1.bf16.msra.mxu0 0
      %883 = vmatprep.subr.bf16.mxu0 0
      %884 = vmatpush1.bf16.msra.mxu0 0
      %885 = vmatprep.subr.bf16.mxu0 0
      %886 = vmatpush1.bf16.msra.mxu0 0
      %887 = vmatprep.mubr.bf16.mxu0 0
      %888 = vmatmul.mubr.bf16.gmra.mrb[0].mxu0 %v791
      %v889 = vpop.f32.mrb[0].mxu0
      %v890 = vadd.f32 0.0, %v889
      %v891 = vpop.f32.mrb[0].mxu0
      %v892 = vpop.f32.mrb[0].mxu0
      %v893 = vadd.f32 0.0, %v892
      %v894 = vpop.f32.mrb[0].mxu0
      %895 = vmatprep.mubr.bf16.mxu0 0
      %896 = vmatmul.mubr.bf16.gmra.mrb[0].mxu0 %v792
      %v897 = vpop.f32.mrb[0].mxu0
      %v898 = vadd.f32 0.0, %v897
      %v899 = vpop.f32.mrb[0].mxu0
      %v900 = vpop.f32.mrb[0].mxu0
      %v901 = vadd.f32 0.0, %v900
      %v902 = vpop.f32.mrb[0].mxu0
      %903 = vmatprep.mubr.bf16.mxu0 0
      %904 = vmatmul.mubr.bf16.gmra.mrb[0].mxu0 %v793
      %v905 = vpop.f32.mrb[0].mxu0
      %v906 = vadd.f32 0.0, %v905
      %v907 = vpop.f32.mrb[0].mxu0
      %v908 = vpop.f32.mrb[0].mxu0
      %v909 = vadd.f32 0.0, %v908
      %v910 = vpop.f32.mrb[0].mxu0
      %911 = vmatprep.mubr.bf16.mxu0 0
      %912 = vmatmul.mubr.bf16.gmra.mrb[0].mxu0 %v794
      %v913 = vpop.f32.mrb[0].mxu0
      %v914 = vadd.f32 0.0, %v913
      %v915 = vpop.f32.mrb[0].mxu0
      %v916 = vpop.f32.mrb[0].mxu0
      %v917 = vadd.f32 0.0, %v916
      %v918 = vpop.f32.mrb[0].mxu0
      %919 = vmatprep.mubr.bf16.mxu0 0
      %920 = vmatmul.mubr.bf16.gmra.mrb[0].mxu0 %v795
      %v921 = vpop.f32.mrb[0].mxu0
      %v922 = vadd.f32 0.0, %v921
      %v923 = vpop.f32.mrb[0].mxu0
      %v924 = vpop.f32.mrb[0].mxu0
      %v925 = vadd.f32 0.0, %v924
      %v926 = vpop.f32.mrb[0].mxu0
      %927 = vmatprep.mubr.bf16.mxu0 0
      %928 = vmatmul.mubr.bf16.gmra.mrb[0].mxu0 %v796
      %v929 = vpop.f32.mrb[0].mxu0
      %v930 = vadd.f32 0.0, %v929
      %v931 = vpop.f32.mrb[0].mxu0
      %v932 = vpop.f32.mrb[0].mxu0
      %v933 = vadd.f32 0.0, %v932
      %v934 = vpop.f32.mrb[0].mxu0
      %935 = vmatprep.mubr.bf16.mxu0 0
      %936 = vmatmul.mubr.bf16.gmra.mrb[0].mxu0 %v797
      %v937 = vpop.f32.mrb[0].mxu0
      %v938 = vadd.f32 0.0, %v937
      %v939 = vpop.f32.mrb[0].mxu0
      %v940 = vpop.f32.mrb[0].mxu0
      %v941 = vadd.f32 0.0, %v940
      %v942 = vpop.f32.mrb[0].mxu0
      %943 = vmatprep.mubr.bf16.mxu0 0
      %944 = vmatmul.mubr.bf16.gmra.mrb[0].mxu0 %v798
      %v945 = vpop.f32.mrb[0].mxu0
      %v946 = vadd.f32 0.0, %v945
      %v947 = vpop.f32.mrb[0].mxu0
      %v948 = vpop.f32.mrb[0].mxu0
      %v949 = vadd.f32 0.0, %v948
      %v950 = vpop.f32.mrb[0].mxu0
      %951 = vdwg.mxu0
      %v952 = vld [vmem:[#allocation2] sm:$0xff]
      %v953 = vld [vmem:[#allocation2 + $0x8] sm:$0xff]
      %v954 = vld [vmem:[#allocation2 + $0x10] sm:$0xff]
      %v955 = vld [vmem:[#allocation2 + $0x18] sm:$0xff]
      %v956 = vld [vmem:[#allocation2 + $0x20] sm:$0xff]
      %v957 = vld [vmem:[#allocation2 + $0x28] sm:$0xff]
      %v958 = vld [vmem:[#allocation2 + $0x30] sm:$0xff]
      %v959 = vld [vmem:[#allocation2 + $0x38] sm:$0xff]
      %v960 = vld [vmem:[#allocation2 + $0x40] sm:$0xff]
      %v961 = vld [vmem:[#allocation2 + $0x48] sm:$0xff]
      %v962 = vld [vmem:[#allocation2 + $0x50] sm:$0xff]
      %v963 = vld [vmem:[#allocation2 + $0x58] sm:$0xff]
      %v964 = vld [vmem:[#allocation2 + $0x60] sm:$0xff]
      %v965 = vld [vmem:[#allocation2 + $0x68] sm:$0xff]
      %v966 = vld [vmem:[#allocation2 + $0x70] sm:$0xff]
      %v967 = vld [vmem:[#allocation2 + $0x78] sm:$0xff]
      %v968 = vadd.f32 %v952, %v890
      %v969 = vadd.f32 %v953, %v893
      %v970 = vadd.f32 %v954, %v898
      %v971 = vadd.f32 %v955, %v901
      %v972 = vadd.f32 %v956, %v906
      %v973 = vadd.f32 %v957, %v909
      %v974 = vadd.f32 %v958, %v914
      %v975 = vadd.f32 %v959, %v917
      %v976 = vadd.f32 %v960, %v922
      %v977 = vadd.f32 %v961, %v925
      %v978 = vadd.f32 %v962, %v930
      %v979 = vadd.f32 %v963, %v933
      %v980 = vadd.f32 %v964, %v938
      %v981 = vadd.f32 %v965, %v941
      %v982 = vadd.f32 %v966, %v946
      %v983 = vadd.f32 %v967, %v949
      %984 = vst [vmem:[#allocation2] sm:$0xff] %v968
      %985 = vst [vmem:[#allocation2 + $0x8] sm:$0xff] %v969
      %986 = vst [vmem:[#allocation2 + $0x10] sm:$0xff] %v970
      %987 = vst [vmem:[#allocation2 + $0x18] sm:$0xff] %v971
      %988 = vst [vmem:[#allocation2 + $0x20] sm:$0xff] %v972
      %989 = vst [vmem:[#allocation2 + $0x28] sm:$0xff] %v973
      %990 = vst [vmem:[#allocation2 + $0x30] sm:$0xff] %v974
      %991 = vst [vmem:[#allocation2 + $0x38] sm:$0xff] %v975
      %992 = vst [vmem:[#allocation2 + $0x40] sm:$0xff] %v976
      %993 = vst [vmem:[#allocation2 + $0x48] sm:$0xff] %v977
      %994 = vst [vmem:[#allocation2 + $0x50] sm:$0xff] %v978
      %995 = vst [vmem:[#allocation2 + $0x58] sm:$0xff] %v979
      %996 = vst [vmem:[#allocation2 + $0x60] sm:$0xff] %v980
      %997 = vst [vmem:[#allocation2 + $0x68] sm:$0xff] %v981
      %998 = vst [vmem:[#allocation2 + $0x70] sm:$0xff] %v982
      %999 = vst [vmem:[#allocation2 + $0x78] sm:$0xff] %v983
      %v1000 = vld [vmem:[%s272] sm:$0xe]
      %v1001 = vld [vmem:[%s272 + $0x4] sm:$0xf]
      %v1002 = vld [vmem:[%s272 + $0x8] sm:$0x1]
      %v1003 = vld [vmem:[%s272 + $0xc] sm:$0xe]
      %v1004 = vld [vmem:[%s272 + $0x10] sm:$0xf]
      %v1005 = vld [vmem:[%s272 + $0x14] sm:$0x1]
      %v1006 = vld [vmem:[%s272 + $0x18] sm:$0xe]
      %v1007 = vld [vmem:[%s272 + $0x1c] sm:$0xf]
      %v1008 = vld [vmem:[%s272 + $0x20] sm:$0x1]
      %v1009 = vld [vmem:[%s272 + $0x24] sm:$0xe]
      %v1010 = vld [vmem:[%s272 + $0x28] sm:$0xf]
      %v1011 = vld [vmem:[%s272 + $0x2c] sm:$0x1]
      %v1012 = vld [vmem:[%s272 + $0x30] sm:$0xe]
      %v1013 = vld [vmem:[%s272 + $0x34] sm:$0xf]
      %v1014 = vld [vmem:[%s272 + $0x38] sm:$0x1]
      %v1015 = vld [vmem:[%s272 + $0x3c] sm:$0xe]
      %v1016 = vld [vmem:[%s272 + $0x40] sm:$0xf]
      %v1017 = vld [vmem:[%s272 + $0x44] sm:$0x1]
      %v1018 = vld [vmem:[%s272 + $0x48] sm:$0xe]
      %v1019 = vld [vmem:[%s272 + $0x4c] sm:$0xf]
      %v1020 = vld [vmem:[%s272 + $0x50] sm:$0x1]
      %v1021 = vld [vmem:[%s272 + $0x54] sm:$0xe]
      %v1022 = vld [vmem:[%s272 + $0x58] sm:$0xf]
      %v1023 = vld [vmem:[%s272 + $0x5c] sm:$0x1]
      %vm1048 = vcmask 1042432
      %vm1049 = vcmask 1046532
      %vm1050 = vmor %vm1048, %vm1049
      %v1051 = vrot.slane %v1000, 5
      %v1052 = vrot.slane %v1051, 4
      %v1053 = vrot.slane %v1001, 5
      %v1054 = vsel %vm1050, %v1052, %v1053
      %v1055 = vrot.slane %v1053, 4
      %v1056 = vrot.slane %v1002, 5
      %v1057 = vsel %vm1050, %v1055, %v1056
      %v1058 = vrot.slane %v1003, 5
      %v1059 = vrot.slane %v1058, 4
      %v1060 = vrot.slane %v1004, 5
      %v1061 = vsel %vm1050, %v1059, %v1060
      %v1062 = vrot.slane %v1060, 4
      %v1063 = vrot.slane %v1005, 5
      %v1064 = vsel %vm1050, %v1062, %v1063
      %v1065 = vrot.slane %v1006, 5
      %v1066 = vrot.slane %v1065, 4
      %v1067 = vrot.slane %v1007, 5
      %v1068 = vsel %vm1050, %v1066, %v1067
      %v1069 = vrot.slane %v1067, 4
      %v1070 = vrot.slane %v1008, 5
      %v1071 = vsel %vm1050, %v1069, %v1070
      %v1072 = vrot.slane %v1009, 5
      %v1073 = vrot.slane %v1072, 4
      %v1074 = vrot.slane %v1010, 5
      %v1075 = vsel %vm1050, %v1073, %v1074
      %v1076 = vrot.slane %v1074, 4
      %v1077 = vrot.slane %v1011, 5
      %v1078 = vsel %vm1050, %v1076, %v1077
      %v1079 = vrot.slane %v1012, 5
      %v1080 = vrot.slane %v1079, 4
      %v1081 = vrot.slane %v1013, 5
      %v1082 = vsel %vm1050, %v1080, %v1081
      %v1083 = vrot.slane %v1081, 4
      %v1084 = vrot.slane %v1014, 5
      %v1085 = vsel %vm1050, %v1083, %v1084
      %v1086 = vrot.slane %v1015, 5
      %v1087 = vrot.slane %v1086, 4
      %v1088 = vrot.slane %v1016, 5
      %v1089 = vsel %vm1050, %v1087, %v1088
      %v1090 = vrot.slane %v1088, 4
      %v1091 = vrot.slane %v1017, 5
      %v1092 = vsel %vm1050, %v1090, %v1091
      %v1093 = vrot.slane %v1018, 5
      %v1094 = vrot.slane %v1093, 4
      %v1095 = vrot.slane %v1019, 5
      %v1096 = vsel %vm1050, %v1094, %v1095
      %v1097 = vrot.slane %v1095, 4
      %v1098 = vrot.slane %v1020, 5
      %v1099 = vsel %vm1050, %v1097, %v1098
      %v1100 = vrot.slane %v1021, 5
      %v1101 = vrot.slane %v1100, 4
      %v1102 = vrot.slane %v1022, 5
      %v1103 = vsel %vm1050, %v1101, %v1102
      %v1104 = vrot.slane %v1102, 4
      %v1105 = vrot.slane %v1023, 5
      %v1106 = vsel %vm1050, %v1104, %v1105
      %s1107 = scalar_lea.vmem %s276, 128
      %v1108 = vld [vmem:[%s1107] sm:$0xf]
      %v1109 = vld [vmem:[%s1107 + $0x4] sm:$0xf]
      %v1110 = vld [vmem:[%s1107 + $0x8] sm:$0xf]
      %v1111 = vld [vmem:[%s1107 + $0xc] sm:$0xf]
      %v1112 = vld [vmem:[%s1107 + $0x10] sm:$0xf]
      %v1113 = vld [vmem:[%s1107 + $0x14] sm:$0xf]
      %v1114 = vld [vmem:[%s1107 + $0x18] sm:$0xf]
      %v1115 = vld [vmem:[%s1107 + $0x1c] sm:$0xf]
      %v1116 = vld [vmem:[%s1107 + $0x20] sm:$0xf]
      %v1117 = vld [vmem:[%s1107 + $0x24] sm:$0xf]
      %v1118 = vld [vmem:[%s1107 + $0x28] sm:$0xf]
      %v1119 = vld [vmem:[%s1107 + $0x2c] sm:$0xf]
      %v1120 = vld [vmem:[%s1107 + $0x30] sm:$0xf]
      %v1121 = vld [vmem:[%s1107 + $0x34] sm:$0xf]
      %v1122 = vld [vmem:[%s1107 + $0x38] sm:$0xf]
      %v1123 = vld [vmem:[%s1107 + $0x3c] sm:$0xf]
      %v1124 = vunpack.c.l.b16 %v1054
      %v1125 = vunpack.c.l.b16 %v1057
      %v1126 = vunpack.c.l.b16 %v1061
      %v1127 = vunpack.c.l.b16 %v1064
      %v1128 = vunpack.c.l.b16 %v1068
      %v1129 = vunpack.c.l.b16 %v1071
      %v1130 = vunpack.c.l.b16 %v1075
      %v1131 = vunpack.c.l.b16 %v1078
      %v1132 = vunpack.c.l.b16 %v1082
      %v1133 = vunpack.c.l.b16 %v1085
      %v1134 = vunpack.c.l.b16 %v1089
      %v1135 = vunpack.c.l.b16 %v1092
      %v1136 = vunpack.c.l.b16 %v1096
      %v1137 = vunpack.c.l.b16 %v1099
      %v1138 = vunpack.c.l.b16 %v1103
      %v1139 = vunpack.c.l.b16 %v1106
      %v1140 = vpack.c.b16 %v1125, %v1124
      %v1141 = vpack.c.b16 %v1127, %v1126
      %v1142 = vpack.c.b16 %v1129, %v1128
      %v1143 = vpack.c.b16 %v1131, %v1130
      %v1144 = vpack.c.b16 %v1133, %v1132
      %v1145 = vpack.c.b16 %v1135, %v1134
      %v1146 = vpack.c.b16 %v1137, %v1136
      %v1147 = vpack.c.b16 %v1139, %v1138
      %v1172 = vunpack.c.l.b16 %v1108
      %v1173 = vunpack.c.l.b16 %v1109
      %v1174 = vunpack.c.l.b16 %v1110
      %v1175 = vunpack.c.l.b16 %v1111
      %v1176 = vunpack.c.l.b16 %v1112
      %v1177 = vunpack.c.l.b16 %v1113
      %v1178 = vunpack.c.l.b16 %v1114
      %v1179 = vunpack.c.l.b16 %v1115
      %v1180 = vunpack.c.l.b16 %v1116
      %v1181 = vunpack.c.l.b16 %v1117
      %v1182 = vunpack.c.l.b16 %v1118
      %v1183 = vunpack.c.l.b16 %v1119
      %v1184 = vunpack.c.l.b16 %v1120
      %v1185 = vunpack.c.l.b16 %v1121
      %v1186 = vunpack.c.l.b16 %v1122
      %v1187 = vunpack.c.l.b16 %v1123
      %v1188 = vpack.c.b16 %v1173, %v1172
      %v1189 = vpack.c.b16 %v1175, %v1174
      %v1190 = vpack.c.b16 %v1177, %v1176
      %v1191 = vpack.c.b16 %v1179, %v1178
      %v1192 = vpack.c.b16 %v1181, %v1180
      %v1193 = vpack.c.b16 %v1183, %v1182
      %v1194 = vpack.c.b16 %v1185, %v1184
      %v1195 = vpack.c.b16 %v1187, %v1186
      %1204 = vmatprep.subr.bf16.mxu0 0
      %1205 = vmatpush1.bf16.msra.mxu0 %v1188
      %1206 = vmatprep.subr.bf16.mxu0 0
      %1207 = vmatpush1.bf16.msra.mxu0 %v1189
      %1208 = vmatprep.subr.bf16.mxu0 0
      %1209 = vmatpush1.bf16.msra.mxu0 %v1190
      %1210 = vmatprep.subr.bf16.mxu0 0
      %1211 = vmatpush1.bf16.msra.mxu0 %v1191
      %1212 = vmatprep.subr.bf16.mxu0 0
      %1213 = vmatpush1.bf16.msra.mxu0 %v1192
      %1214 = vmatprep.subr.bf16.mxu0 0
      %1215 = vmatpush1.bf16.msra.mxu0 %v1193
      %1216 = vmatprep.subr.bf16.mxu0 0
      %1217 = vmatpush1.bf16.msra.mxu0 %v1194
      %1218 = vmatprep.subr.bf16.mxu0 0
      %1219 = vmatpush1.bf16.msra.mxu0 %v1195
      %1220 = vmatprep.subr.bf16.mxu0 0
      %1221 = vmatpush1.bf16.msra.mxu0 0
      %1222 = vmatprep.subr.bf16.mxu0 0
      %1223 = vmatpush1.bf16.msra.mxu0 0
      %1224 = vmatprep.subr.bf16.mxu0 0
      %1225 = vmatpush1.bf16.msra.mxu0 0
      %1226 = vmatprep.subr.bf16.mxu0 0
      %1227 = vmatpush1.bf16.msra.mxu0 0
      %1228 = vmatprep.subr.bf16.mxu0 0
      %1229 = vmatpush1.bf16.msra.mxu0 0
      %1230 = vmatprep.subr.bf16.mxu0 0
      %1231 = vmatpush1.bf16.msra.mxu0 0
      %1232 = vmatprep.subr.bf16.mxu0 0
      %1233 = vmatpush1.bf16.msra.mxu0 0
      %1234 = vmatprep.subr.bf16.mxu0 0
      %1235 = vmatpush1.bf16.msra.mxu0 0
      %1236 = vmatprep.mubr.bf16.mxu0 0
      %1237 = vmatmul.mubr.bf16.gmra.mrb[0].mxu0 %v1140
      %v1238 = vpop.f32.mrb[0].mxu0
      %v1239 = vadd.f32 0.0, %v1238
      %v1240 = vpop.f32.mrb[0].mxu0
      %v1241 = vpop.f32.mrb[0].mxu0
      %v1242 = vadd.f32 0.0, %v1241
      %v1243 = vpop.f32.mrb[0].mxu0
      %1244 = vmatprep.mubr.bf16.mxu0 0
      %1245 = vmatmul.mubr.bf16.gmra.mrb[0].mxu0 %v1141
      %v1246 = vpop.f32.mrb[0].mxu0
      %v1247 = vadd.f32 0.0, %v1246
      %v1248 = vpop.f32.mrb[0].mxu0
      %v1249 = vpop.f32.mrb[0].mxu0
      %v1250 = vadd.f32 0.0, %v1249
      %v1251 = vpop.f32.mrb[0].mxu0
      %1252 = vmatprep.mubr.bf16.mxu0 0
      %1253 = vmatmul.mubr.bf16.gmra.mrb[0].mxu0 %v1142
      %v1254 = vpop.f32.mrb[0].mxu0
      %v1255 = vadd.f32 0.0, %v1254
      %v1256 = vpop.f32.mrb[0].mxu0
      %v1257 = vpop.f32.mrb[0].mxu0
      %v1258 = vadd.f32 0.0, %v1257
      %v1259 = vpop.f32.mrb[0].mxu0
      %1260 = vmatprep.mubr.bf16.mxu0 0
      %1261 = vmatmul.mubr.bf16.gmra.mrb[0].mxu0 %v1143
      %v1262 = vpop.f32.mrb[0].mxu0
      %v1263 = vadd.f32 0.0, %v1262
      %v1264 = vpop.f32.mrb[0].mxu0
      %v1265 = vpop.f32.mrb[0].mxu0
      %v1266 = vadd.f32 0.0, %v1265
      %v1267 = vpop.f32.mrb[0].mxu0
      %1268 = vmatprep.mubr.bf16.mxu0 0
      %1269 = vmatmul.mubr.bf16.gmra.mrb[0].mxu0 %v1144
      %v1270 = vpop.f32.mrb[0].mxu0
      %v1271 = vadd.f32 0.0, %v1270
      %v1272 = vpop.f32.mrb[0].mxu0
      %v1273 = vpop.f32.mrb[0].mxu0
      %v1274 = vadd.f32 0.0, %v1273
      %v1275 = vpop.f32.mrb[0].mxu0
      %1276 = vmatprep.mubr.bf16.mxu0 0
      %1277 = vmatmul.mubr.bf16.gmra.mrb[0].mxu0 %v1145
      %v1278 = vpop.f32.mrb[0].mxu0
      %v1279 = vadd.f32 0.0, %v1278
      %v1280 = vpop.f32.mrb[0].mxu0
      %v1281 = vpop.f32.mrb[0].mxu0
      %v1282 = vadd.f32 0.0, %v1281
      %v1283 = vpop.f32.mrb[0].mxu0
      %1284 = vmatprep.mubr.bf16.mxu0 0
      %1285 = vmatmul.mubr.bf16.gmra.mrb[0].mxu0 %v1146
      %v1286 = vpop.f32.mrb[0].mxu0
      %v1287 = vadd.f32 0.0, %v1286
      %v1288 = vpop.f32.mrb[0].mxu0
      %v1289 = vpop.f32.mrb[0].mxu0
      %v1290 = vadd.f32 0.0, %v1289
      %v1291 = vpop.f32.mrb[0].mxu0
      %1292 = vmatprep.mubr.bf16.mxu0 0
      %1293 = vmatmul.mubr.bf16.gmra.mrb[0].mxu0 %v1147
      %v1294 = vpop.f32.mrb[0].mxu0
      %v1295 = vadd.f32 0.0, %v1294
      %v1296 = vpop.f32.mrb[0].mxu0
      %v1297 = vpop.f32.mrb[0].mxu0
      %v1298 = vadd.f32 0.0, %v1297
      %v1299 = vpop.f32.mrb[0].mxu0
      %1300 = vdwg.mxu0
      %v1301 = vld [vmem:[#allocation2] sm:$0xff]
      %v1302 = vld [vmem:[#allocation2 + $0x8] sm:$0xff]
      %v1303 = vld [vmem:[#allocation2 + $0x10] sm:$0xff]
      %v1304 = vld [vmem:[#allocation2 + $0x18] sm:$0xff]
      %v1305 = vld [vmem:[#allocation2 + $0x20] sm:$0xff]
      %v1306 = vld [vmem:[#allocation2 + $0x28] sm:$0xff]
      %v1307 = vld [vmem:[#allocation2 + $0x30] sm:$0xff]
      %v1308 = vld [vmem:[#allocation2 + $0x38] sm:$0xff]
      %v1309 = vld [vmem:[#allocation2 + $0x40] sm:$0xff]
      %v1310 = vld [vmem:[#allocation2 + $0x48] sm:$0xff]
      %v1311 = vld [vmem:[#allocation2 + $0x50] sm:$0xff]
      %v1312 = vld [vmem:[#allocation2 + $0x58] sm:$0xff]
      %v1313 = vld [vmem:[#allocation2 + $0x60] sm:$0xff]
      %v1314 = vld [vmem:[#allocation2 + $0x68] sm:$0xff]
      %v1315 = vld [vmem:[#allocation2 + $0x70] sm:$0xff]
      %v1316 = vld [vmem:[#allocation2 + $0x78] sm:$0xff]
      %v1317 = vadd.f32 %v1301, %v1239
      %v1318 = vadd.f32 %v1302, %v1242
      %v1319 = vadd.f32 %v1303, %v1247
      %v1320 = vadd.f32 %v1304, %v1250
      %v1321 = vadd.f32 %v1305, %v1255
      %v1322 = vadd.f32 %v1306, %v1258
      %v1323 = vadd.f32 %v1307, %v1263
      %v1324 = vadd.f32 %v1308, %v1266
      %v1325 = vadd.f32 %v1309, %v1271
      %v1326 = vadd.f32 %v1310, %v1274
      %v1327 = vadd.f32 %v1311, %v1279
      %v1328 = vadd.f32 %v1312, %v1282
      %v1329 = vadd.f32 %v1313, %v1287
      %v1330 = vadd.f32 %v1314, %v1290
      %v1331 = vadd.f32 %v1315, %v1295
      %v1332 = vadd.f32 %v1316, %v1298
      %1333 = vst [vmem:[#allocation2] sm:$0xff] %v1317
      %1334 = vst [vmem:[#allocation2 + $0x8] sm:$0xff] %v1318
      %1335 = vst [vmem:[#allocation2 + $0x10] sm:$0xff] %v1319
      %1336 = vst [vmem:[#allocation2 + $0x18] sm:$0xff] %v1320
      %1337 = vst [vmem:[#allocation2 + $0x20] sm:$0xff] %v1321
      %1338 = vst [vmem:[#allocation2 + $0x28] sm:$0xff] %v1322
      %1339 = vst [vmem:[#allocation2 + $0x30] sm:$0xff] %v1323
      %1340 = vst [vmem:[#allocation2 + $0x38] sm:$0xff] %v1324
      %1341 = vst [vmem:[#allocation2 + $0x40] sm:$0xff] %v1325
      %1342 = vst [vmem:[#allocation2 + $0x48] sm:$0xff] %v1326
      %1343 = vst [vmem:[#allocation2 + $0x50] sm:$0xff] %v1327
      %1344 = vst [vmem:[#allocation2 + $0x58] sm:$0xff] %v1328
      %1345 = vst [vmem:[#allocation2 + $0x60] sm:$0xff] %v1329
      %1346 = vst [vmem:[#allocation2 + $0x68] sm:$0xff] %v1330
      %1347 = vst [vmem:[#allocation2 + $0x70] sm:$0xff] %v1331
      %1348 = vst [vmem:[#allocation2 + $0x78] sm:$0xff] %v1332
      %s1349 = scalar_lea.vmem %s272, 12
      %v1350 = vld [vmem:[%s1349] sm:$0xf]
      %v1351 = vld [vmem:[%s1349 + $0x4] sm:$0xf]
      %v1352 = vld [vmem:[%s1349 + $0xc] sm:$0xf]
      %v1353 = vld [vmem:[%s1349 + $0x10] sm:$0xf]
      %v1354 = vld [vmem:[%s1349 + $0x18] sm:$0xf]
      %v1355 = vld [vmem:[%s1349 + $0x1c] sm:$0xf]
      %v1356 = vld [vmem:[%s1349 + $0x24] sm:$0xf]
      %v1357 = vld [vmem:[%s1349 + $0x28] sm:$0xf]
      %v1358 = vld [vmem:[%s1349 + $0x30] sm:$0xf]
      %v1359 = vld [vmem:[%s1349 + $0x34] sm:$0xf]
      %v1360 = vld [vmem:[%s1349 + $0x3c] sm:$0xf]
      %v1361 = vld [vmem:[%s1349 + $0x40] sm:$0xf]
      %v1362 = vld [vmem:[%s1349 + $0x48] sm:$0xf]
      %v1363 = vld [vmem:[%s1349 + $0x4c] sm:$0xf]
      %v1364 = vld [vmem:[%s1349 + $0x54] sm:$0xf]
      %v1365 = vld [vmem:[%s1349 + $0x58] sm:$0xf]
      %s1366 = scalar_lea.vmem %s276, 192
      %v1367 = vld [vmem:[%s1366] sm:$0xf]
      %v1368 = vld [vmem:[%s1366 + $0x4] sm:$0xf]
      %v1369 = vld [vmem:[%s1366 + $0x8] sm:$0xf]
      %v1370 = vld [vmem:[%s1366 + $0xc] sm:$0xf]
      %v1371 = vld [vmem:[%s1366 + $0x10] sm:$0xf]
      %v1372 = vld [vmem:[%s1366 + $0x14] sm:$0xf]
      %v1373 = vld [vmem:[%s1366 + $0x18] sm:$0xf]
      %v1374 = vld [vmem:[%s1366 + $0x1c] sm:$0xf]
      %v1375 = vld [vmem:[%s1366 + $0x20] sm:$0xf]
      %v1376 = vld [vmem:[%s1366 + $0x24] sm:$0xf]
      %v1377 = vld [vmem:[%s1366 + $0x28] sm:$0xf]
      %v1378 = vld [vmem:[%s1366 + $0x2c] sm:$0xf]
      %v1379 = vld [vmem:[%s1366 + $0x30] sm:$0xf]
      %v1380 = vld [vmem:[%s1366 + $0x34] sm:$0xf]
      %v1381 = vld [vmem:[%s1366 + $0x38] sm:$0xf]
      %v1382 = vld [vmem:[%s1366 + $0x3c] sm:$0xf]
      %v1399 = vunpack.c.l.b16 %v1350
      %v1400 = vunpack.c.l.b16 %v1351
      %v1401 = vunpack.c.l.b16 %v1352
      %v1402 = vunpack.c.l.b16 %v1353
      %v1403 = vunpack.c.l.b16 %v1354
      %v1404 = vunpack.c.l.b16 %v1355
      %v1405 = vunpack.c.l.b16 %v1356
      %v1406 = vunpack.c.l.b16 %v1357
      %v1407 = vunpack.c.l.b16 %v1358
      %v1408 = vunpack.c.l.b16 %v1359
      %v1409 = vunpack.c.l.b16 %v1360
      %v1410 = vunpack.c.l.b16 %v1361
      %v1411 = vunpack.c.l.b16 %v1362
      %v1412 = vunpack.c.l.b16 %v1363
      %v1413 = vunpack.c.l.b16 %v1364
      %v1414 = vunpack.c.l.b16 %v1365
      %v1415 = vpack.c.b16 %v1400, %v1399
      %v1416 = vpack.c.b16 %v1402, %v1401
      %v1417 = vpack.c.b16 %v1404, %v1403
      %v1418 = vpack.c.b16 %v1406, %v1405
      %v1419 = vpack.c.b16 %v1408, %v1407
      %v1420 = vpack.c.b16 %v1410, %v1409
      %v1421 = vpack.c.b16 %v1412, %v1411
      %v1422 = vpack.c.b16 %v1414, %v1413
      %v1447 = vunpack.c.l.b16 %v1367
      %v1448 = vunpack.c.l.b16 %v1368
      %v1449 = vunpack.c.l.b16 %v1369
      %v1450 = vunpack.c.l.b16 %v1370
      %v1451 = vunpack.c.l.b16 %v1371
      %v1452 = vunpack.c.l.b16 %v1372
      %v1453 = vunpack.c.l.b16 %v1373
      %v1454 = vunpack.c.l.b16 %v1374
      %v1455 = vunpack.c.l.b16 %v1375
      %v1456 = vunpack.c.l.b16 %v1376
      %v1457 = vunpack.c.l.b16 %v1377
      %v1458 = vunpack.c.l.b16 %v1378
      %v1459 = vunpack.c.l.b16 %v1379
      %v1460 = vunpack.c.l.b16 %v1380
      %v1461 = vunpack.c.l.b16 %v1381
      %v1462 = vunpack.c.l.b16 %v1382
      %v1463 = vpack.c.b16 %v1448, %v1447
      %v1464 = vpack.c.b16 %v1450, %v1449
      %v1465 = vpack.c.b16 %v1452, %v1451
      %v1466 = vpack.c.b16 %v1454, %v1453
      %v1467 = vpack.c.b16 %v1456, %v1455
      %v1468 = vpack.c.b16 %v1458, %v1457
      %v1469 = vpack.c.b16 %v1460, %v1459
      %v1470 = vpack.c.b16 %v1462, %v1461
      %1479 = vmatprep.subr.bf16.mxu0 0
      %1480 = vmatpush1.bf16.msra.mxu0 %v1463
      %1481 = vmatprep.subr.bf16.mxu0 0
      %1482 = vmatpush1.bf16.msra.mxu0 %v1464
      %1483 = vmatprep.subr.bf16.mxu0 0
      %1484 = vmatpush1.bf16.msra.mxu0 %v1465
      %1485 = vmatprep.subr.bf16.mxu0 0
      %1486 = vmatpush1.bf16.msra.mxu0 %v1466
      %1487 = vmatprep.subr.bf16.mxu0 0
      %1488 = vmatpush1.bf16.msra.mxu0 %v1467
      %1489 = vmatprep.subr.bf16.mxu0 0
      %1490 = vmatpush1.bf16.msra.mxu0 %v1468
      %1491 = vmatprep.subr.bf16.mxu0 0
      %1492 = vmatpush1.bf16.msra.mxu0 %v1469
      %1493 = vmatprep.subr.bf16.mxu0 0
      %1494 = vmatpush1.bf16.msra.mxu0 %v1470
      %1495 = vmatprep.subr.bf16.mxu0 0
      %1496 = vmatpush1.bf16.msra.mxu0 0
      %1497 = vmatprep.subr.bf16.mxu0 0
      %1498 = vmatpush1.bf16.msra.mxu0 0
      %1499 = vmatprep.subr.bf16.mxu0 0
      %1500 = vmatpush1.bf16.msra.mxu0 0
      %1501 = vmatprep.subr.bf16.mxu0 0
      %1502 = vmatpush1.bf16.msra.mxu0 0
      %1503 = vmatprep.subr.bf16.mxu0 0
      %1504 = vmatpush1.bf16.msra.mxu0 0
      %1505 = vmatprep.subr.bf16.mxu0 0
      %1506 = vmatpush1.bf16.msra.mxu0 0
      %1507 = vmatprep.subr.bf16.mxu0 0
      %1508 = vmatpush1.bf16.msra.mxu0 0
      %1509 = vmatprep.subr.bf16.mxu0 0
      %1510 = vmatpush1.bf16.msra.mxu0 0
      %1511 = vmatprep.mubr.bf16.mxu0 0
      %1512 = vmatmul.mubr.bf16.gmra.mrb[0].mxu0 %v1415
      %v1513 = vpop.f32.mrb[0].mxu0
      %v1514 = vadd.f32 0.0, %v1513
      %v1515 = vpop.f32.mrb[0].mxu0
      %v1516 = vpop.f32.mrb[0].mxu0
      %v1517 = vadd.f32 0.0, %v1516
      %v1518 = vpop.f32.mrb[0].mxu0
      %1519 = vmatprep.mubr.bf16.mxu0 0
      %1520 = vmatmul.mubr.bf16.gmra.mrb[0].mxu0 %v1416
      %v1521 = vpop.f32.mrb[0].mxu0
      %v1522 = vadd.f32 0.0, %v1521
      %v1523 = vpop.f32.mrb[0].mxu0
      %v1524 = vpop.f32.mrb[0].mxu0
      %v1525 = vadd.f32 0.0, %v1524
      %v1526 = vpop.f32.mrb[0].mxu0
      %1527 = vmatprep.mubr.bf16.mxu0 0
      %1528 = vmatmul.mubr.bf16.gmra.mrb[0].mxu0 %v1417
      %v1529 = vpop.f32.mrb[0].mxu0
      %v1530 = vadd.f32 0.0, %v1529
      %v1531 = vpop.f32.mrb[0].mxu0
      %v1532 = vpop.f32.mrb[0].mxu0
      %v1533 = vadd.f32 0.0, %v1532
      %v1534 = vpop.f32.mrb[0].mxu0
      %1535 = vmatprep.mubr.bf16.mxu0 0
      %1536 = vmatmul.mubr.bf16.gmra.mrb[0].mxu0 %v1418
      %v1537 = vpop.f32.mrb[0].mxu0
      %v1538 = vadd.f32 0.0, %v1537
      %v1539 = vpop.f32.mrb[0].mxu0
      %v1540 = vpop.f32.mrb[0].mxu0
      %v1541 = vadd.f32 0.0, %v1540
      %v1542 = vpop.f32.mrb[0].mxu0
      %1543 = vmatprep.mubr.bf16.mxu0 0
      %1544 = vmatmul.mubr.bf16.gmra.mrb[0].mxu0 %v1419
      %v1545 = vpop.f32.mrb[0].mxu0
      %v1546 = vadd.f32 0.0, %v1545
      %v1547 = vpop.f32.mrb[0].mxu0
      %v1548 = vpop.f32.mrb[0].mxu0
      %v1549 = vadd.f32 0.0, %v1548
      %v1550 = vpop.f32.mrb[0].mxu0
      %1551 = vmatprep.mubr.bf16.mxu0 0
      %1552 = vmatmul.mubr.bf16.gmra.mrb[0].mxu0 %v1420
      %v1553 = vpop.f32.mrb[0].mxu0
      %v1554 = vadd.f32 0.0, %v1553
      %v1555 = vpop.f32.mrb[0].mxu0
      %v1556 = vpop.f32.mrb[0].mxu0
      %v1557 = vadd.f32 0.0, %v1556
      %v1558 = vpop.f32.mrb[0].mxu0
      %1559 = vmatprep.mubr.bf16.mxu0 0
      %1560 = vmatmul.mubr.bf16.gmra.mrb[0].mxu0 %v1421
      %v1561 = vpop.f32.mrb[0].mxu0
      %v1562 = vadd.f32 0.0, %v1561
      %v1563 = vpop.f32.mrb[0].mxu0
      %v1564 = vpop.f32.mrb[0].mxu0
      %v1565 = vadd.f32 0.0, %v1564
      %v1566 = vpop.f32.mrb[0].mxu0
      %1567 = vmatprep.mubr.bf16.mxu0 0
      %1568 = vmatmul.mubr.bf16.gmra.mrb[0].mxu0 %v1422
      %v1569 = vpop.f32.mrb[0].mxu0
      %v1570 = vadd.f32 0.0, %v1569
      %v1571 = vpop.f32.mrb[0].mxu0
      %v1572 = vpop.f32.mrb[0].mxu0
      %v1573 = vadd.f32 0.0, %v1572
      %v1574 = vpop.f32.mrb[0].mxu0
      %1575 = vdwg.mxu0
      %v1576 = vld [vmem:[#allocation2] sm:$0xff]
      %v1577 = vld [vmem:[#allocation2 + $0x8] sm:$0xff]
      %v1578 = vld [vmem:[#allocation2 + $0x10] sm:$0xff]
      %v1579 = vld [vmem:[#allocation2 + $0x18] sm:$0xff]
      %v1580 = vld [vmem:[#allocation2 + $0x20] sm:$0xff]
      %v1581 = vld [vmem:[#allocation2 + $0x28] sm:$0xff]
      %v1582 = vld [vmem:[#allocation2 + $0x30] sm:$0xff]
      %v1583 = vld [vmem:[#allocation2 + $0x38] sm:$0xff]
      %v1584 = vld [vmem:[#allocation2 + $0x40] sm:$0xff]
      %v1585 = vld [vmem:[#allocation2 + $0x48] sm:$0xff]
      %v1586 = vld [vmem:[#allocation2 + $0x50] sm:$0xff]
      %v1587 = vld [vmem:[#allocation2 + $0x58] sm:$0xff]
      %v1588 = vld [vmem:[#allocation2 + $0x60] sm:$0xff]
      %v1589 = vld [vmem:[#allocation2 + $0x68] sm:$0xff]
      %v1590 = vld [vmem:[#allocation2 + $0x70] sm:$0xff]
      %v1591 = vld [vmem:[#allocation2 + $0x78] sm:$0xff]
      %v1592 = vadd.f32 %v1576, %v1514
      %v1593 = vadd.f32 %v1577, %v1517
      %v1594 = vadd.f32 %v1578, %v1522
      %v1595 = vadd.f32 %v1579, %v1525
      %v1596 = vadd.f32 %v1580, %v1530
      %v1597 = vadd.f32 %v1581, %v1533
      %v1598 = vadd.f32 %v1582, %v1538
      %v1599 = vadd.f32 %v1583, %v1541
      %v1600 = vadd.f32 %v1584, %v1546
      %v1601 = vadd.f32 %v1585, %v1549
      %v1602 = vadd.f32 %v1586, %v1554
      %v1603 = vadd.f32 %v1587, %v1557
      %v1604 = vadd.f32 %v1588, %v1562
      %v1605 = vadd.f32 %v1589, %v1565
      %v1606 = vadd.f32 %v1590, %v1570
      %v1607 = vadd.f32 %v1591, %v1573
      %1608 = vst [vmem:[#allocation2] sm:$0xff] %v1592
      %1609 = vst [vmem:[#allocation2 + $0x8] sm:$0xff] %v1593
      %1610 = vst [vmem:[#allocation2 + $0x10] sm:$0xff] %v1594
      %1611 = vst [vmem:[#allocation2 + $0x18] sm:$0xff] %v1595
      %1612 = vst [vmem:[#allocation2 + $0x20] sm:$0xff] %v1596
      %1613 = vst [vmem:[#allocation2 + $0x28] sm:$0xff] %v1597
      %1614 = vst [vmem:[#allocation2 + $0x30] sm:$0xff] %v1598
      %1615 = vst [vmem:[#allocation2 + $0x38] sm:$0xff] %v1599
      %1616 = vst [vmem:[#allocation2 + $0x40] sm:$0xff] %v1600
      %1617 = vst [vmem:[#allocation2 + $0x48] sm:$0xff] %v1601
      %1618 = vst [vmem:[#allocation2 + $0x50] sm:$0xff] %v1602
      %1619 = vst [vmem:[#allocation2 + $0x58] sm:$0xff] %v1603
      %1620 = vst [vmem:[#allocation2 + $0x60] sm:$0xff] %v1604
      %1621 = vst [vmem:[#allocation2 + $0x68] sm:$0xff] %v1605
      %1622 = vst [vmem:[#allocation2 + $0x70] sm:$0xff] %v1606
      %1623 = vst [vmem:[#allocation2 + $0x78] sm:$0xff] %v1607
      %v1624 = vld [vmem:[%s1349] sm:$0xf]
      %v1625 = vld [vmem:[%s1349 + $0x4] sm:$0xf]
      %v1626 = vld [vmem:[%s1349 + $0x8] sm:$0x1]
      %v1627 = vld [vmem:[%s1349 + $0xc] sm:$0xf]
      %v1628 = vld [vmem:[%s1349 + $0x10] sm:$0xf]
      %v1629 = vld [vmem:[%s1349 + $0x14] sm:$0x1]
      %v1630 = vld [vmem:[%s1349 + $0x18] sm:$0xf]
      %v1631 = vld [vmem:[%s1349 + $0x1c] sm:$0xf]
      %v1632 = vld [vmem:[%s1349 + $0x20] sm:$0x1]
      %v1633 = vld [vmem:[%s1349 + $0x24] sm:$0xf]
      %v1634 = vld [vmem:[%s1349 + $0x28] sm:$0xf]
      %v1635 = vld [vmem:[%s1349 + $0x2c] sm:$0x1]
      %v1636 = vld [vmem:[%s1349 + $0x30] sm:$0xf]
      %v1637 = vld [vmem:[%s1349 + $0x34] sm:$0xf]
      %v1638 = vld [vmem:[%s1349 + $0x38] sm:$0x1]
      %v1639 = vld [vmem:[%s1349 + $0x3c] sm:$0xf]
      %v1640 = vld [vmem:[%s1349 + $0x40] sm:$0xf]
      %v1641 = vld [vmem:[%s1349 + $0x44] sm:$0x1]
      %v1642 = vld [vmem:[%s1349 + $0x48] sm:$0xf]
      %v1643 = vld [vmem:[%s1349 + $0x4c] sm:$0xf]
      %v1644 = vld [vmem:[%s1349 + $0x50] sm:$0x1]
      %v1645 = vld [vmem:[%s1349 + $0x54] sm:$0xf]
      %v1646 = vld [vmem:[%s1349 + $0x58] sm:$0xf]
      %v1647 = vld [vmem:[%s1349 + $0x5c] sm:$0x1]
      %v1649 = vshrl.u32 %v1624, 16
      %v1651 = vrot.slane %v1649, 4
      %v1652 = vshll.u32 %v1624, 16
      %v1654 = vrot.slane %v1652, 5
      %v1655 = vor.u32 %v1651, %v1654
      %v1656 = vrot.slane %v1655, 4
      %v1658 = vshll.u32 %v1625, 16
      %v1660 = vrot.slane %v1658, 5
      %v1661 = vsel %vm565, %v1656, %v1660
      %v1662 = vshrl.u32 %v1625, 16
      %v1664 = vrot.slane %v1662, 4
      %v1665 = vor.u32 %v1664, %v1660
      %v1666 = vrot.slane %v1665, 4
      %v1668 = vshll.u32 %v1626, 16
      %v1670 = vrot.slane %v1668, 5
      %v1671 = vsel %vm565, %v1666, %v1670
      %v1673 = vshrl.u32 %v1627, 16
      %v1675 = vrot.slane %v1673, 4
      %v1676 = vshll.u32 %v1627, 16
      %v1678 = vrot.slane %v1676, 5
      %v1679 = vor.u32 %v1675, %v1678
      %v1680 = vrot.slane %v1679, 4
      %v1682 = vshll.u32 %v1628, 16
      %v1684 = vrot.slane %v1682, 5
      %v1685 = vsel %vm565, %v1680, %v1684
      %v1686 = vshrl.u32 %v1628, 16
      %v1688 = vrot.slane %v1686, 4
      %v1689 = vor.u32 %v1688, %v1684
      %v1690 = vrot.slane %v1689, 4
      %v1692 = vshll.u32 %v1629, 16
      %v1694 = vrot.slane %v1692, 5
      %v1695 = vsel %vm565, %v1690, %v1694
      %v1697 = vshrl.u32 %v1630, 16
      %v1699 = vrot.slane %v1697, 4
      %v1700 = vshll.u32 %v1630, 16
      %v1702 = vrot.slane %v1700, 5
      %v1703 = vor.u32 %v1699, %v1702
      %v1704 = vrot.slane %v1703, 4
      %v1706 = vshll.u32 %v1631, 16
      %v1708 = vrot.slane %v1706, 5
      %v1709 = vsel %vm565, %v1704, %v1708
      %v1710 = vshrl.u32 %v1631, 16
      %v1712 = vrot.slane %v1710, 4
      %v1713 = vor.u32 %v1712, %v1708
      %v1714 = vrot.slane %v1713, 4
      %v1716 = vshll.u32 %v1632, 16
      %v1718 = vrot.slane %v1716, 5
      %v1719 = vsel %vm565, %v1714, %v1718
      %v1721 = vshrl.u32 %v1633, 16
      %v1723 = vrot.slane %v1721, 4
      %v1724 = vshll.u32 %v1633, 16
      %v1726 = vrot.slane %v1724, 5
      %v1727 = vor.u32 %v1723, %v1726
      %v1728 = vrot.slane %v1727, 4
      %v1730 = vshll.u32 %v1634, 16
      %v1732 = vrot.slane %v1730, 5
      %v1733 = vsel %vm565, %v1728, %v1732
      %v1734 = vshrl.u32 %v1634, 16
      %v1736 = vrot.slane %v1734, 4
      %v1737 = vor.u32 %v1736, %v1732
      %v1738 = vrot.slane %v1737, 4
      %v1740 = vshll.u32 %v1635, 16
      %v1742 = vrot.slane %v1740, 5
      %v1743 = vsel %vm565, %v1738, %v1742
      %v1745 = vshrl.u32 %v1636, 16
      %v1747 = vrot.slane %v1745, 4
      %v1748 = vshll.u32 %v1636, 16
      %v1750 = vrot.slane %v1748, 5
      %v1751 = vor.u32 %v1747, %v1750
      %v1752 = vrot.slane %v1751, 4
      %v1754 = vshll.u32 %v1637, 16
      %v1756 = vrot.slane %v1754, 5
      %v1757 = vsel %vm565, %v1752, %v1756
      %v1758 = vshrl.u32 %v1637, 16
      %v1760 = vrot.slane %v1758, 4
      %v1761 = vor.u32 %v1760, %v1756
      %v1762 = vrot.slane %v1761, 4
      %v1764 = vshll.u32 %v1638, 16
      %v1766 = vrot.slane %v1764, 5
      %v1767 = vsel %vm565, %v1762, %v1766
      %v1769 = vshrl.u32 %v1639, 16
      %v1771 = vrot.slane %v1769, 4
      %v1772 = vshll.u32 %v1639, 16
      %v1774 = vrot.slane %v1772, 5
      %v1775 = vor.u32 %v1771, %v1774
      %v1776 = vrot.slane %v1775, 4
      %v1778 = vshll.u32 %v1640, 16
      %v1780 = vrot.slane %v1778, 5
      %v1781 = vsel %vm565, %v1776, %v1780
      %v1782 = vshrl.u32 %v1640, 16
      %v1784 = vrot.slane %v1782, 4
      %v1785 = vor.u32 %v1784, %v1780
      %v1786 = vrot.slane %v1785, 4
      %v1788 = vshll.u32 %v1641, 16
      %v1790 = vrot.slane %v1788, 5
      %v1791 = vsel %vm565, %v1786, %v1790
      %v1793 = vshrl.u32 %v1642, 16
      %v1795 = vrot.slane %v1793, 4
      %v1796 = vshll.u32 %v1642, 16
      %v1798 = vrot.slane %v1796, 5
      %v1799 = vor.u32 %v1795, %v1798
      %v1800 = vrot.slane %v1799, 4
      %v1802 = vshll.u32 %v1643, 16
      %v1804 = vrot.slane %v1802, 5
      %v1805 = vsel %vm565, %v1800, %v1804
      %v1806 = vshrl.u32 %v1643, 16
      %v1808 = vrot.slane %v1806, 4
      %v1809 = vor.u32 %v1808, %v1804
      %v1810 = vrot.slane %v1809, 4
      %v1812 = vshll.u32 %v1644, 16
      %v1814 = vrot.slane %v1812, 5
      %v1815 = vsel %vm565, %v1810, %v1814
      %v1817 = vshrl.u32 %v1645, 16
      %v1819 = vrot.slane %v1817, 4
      %v1820 = vshll.u32 %v1645, 16
      %v1822 = vrot.slane %v1820, 5
      %v1823 = vor.u32 %v1819, %v1822
      %v1824 = vrot.slane %v1823, 4
      %v1826 = vshll.u32 %v1646, 16
      %v1828 = vrot.slane %v1826, 5
      %v1829 = vsel %vm565, %v1824, %v1828
      %v1830 = vshrl.u32 %v1646, 16
      %v1832 = vrot.slane %v1830, 4
      %v1833 = vor.u32 %v1832, %v1828
      %v1834 = vrot.slane %v1833, 4
      %v1836 = vshll.u32 %v1647, 16
      %v1838 = vrot.slane %v1836, 5
      %v1839 = vsel %vm565, %v1834, %v1838
      %s1840 = scalar_lea.vmem %s276, 256
      %v1841 = vld [vmem:[%s1840] sm:$0xf]
      %v1842 = vld [vmem:[%s1840 + $0x4] sm:$0xf]
      %v1843 = vld [vmem:[%s1840 + $0x8] sm:$0xf]
      %v1844 = vld [vmem:[%s1840 + $0xc] sm:$0xf]
      %v1845 = vld [vmem:[%s1840 + $0x10] sm:$0xf]
      %v1846 = vld [vmem:[%s1840 + $0x14] sm:$0xf]
      %v1847 = vld [vmem:[%s1840 + $0x18] sm:$0xf]
      %v1848 = vld [vmem:[%s1840 + $0x1c] sm:$0xf]
      %v1849 = vld [vmem:[%s1840 + $0x20] sm:$0xf]
      %v1850 = vld [vmem:[%s1840 + $0x24] sm:$0xf]
      %v1851 = vld [vmem:[%s1840 + $0x28] sm:$0xf]
      %v1852 = vld [vmem:[%s1840 + $0x2c] sm:$0xf]
      %v1853 = vld [vmem:[%s1840 + $0x30] sm:$0xf]
      %v1854 = vld [vmem:[%s1840 + $0x34] sm:$0xf]
      %v1855 = vld [vmem:[%s1840 + $0x38] sm:$0xf]
      %v1856 = vld [vmem:[%s1840 + $0x3c] sm:$0xf]
      %v1857 = vunpack.c.l.b16 %v1661
      %v1858 = vunpack.c.l.b16 %v1671
      %v1859 = vunpack.c.l.b16 %v1685
      %v1860 = vunpack.c.l.b16 %v1695
      %v1861 = vunpack.c.l.b16 %v1709
      %v1862 = vunpack.c.l.b16 %v1719
      %v1863 = vunpack.c.l.b16 %v1733
      %v1864 = vunpack.c.l.b16 %v1743
      %v1865 = vunpack.c.l.b16 %v1757
      %v1866 = vunpack.c.l.b16 %v1767
      %v1867 = vunpack.c.l.b16 %v1781
      %v1868 = vunpack.c.l.b16 %v1791
      %v1869 = vunpack.c.l.b16 %v1805
      %v1870 = vunpack.c.l.b16 %v1815
      %v1871 = vunpack.c.l.b16 %v1829
      %v1872 = vunpack.c.l.b16 %v1839
      %v1873 = vpack.c.b16 %v1858, %v1857
      %v1874 = vpack.c.b16 %v1860, %v1859
      %v1875 = vpack.c.b16 %v1862, %v1861
      %v1876 = vpack.c.b16 %v1864, %v1863
      %v1877 = vpack.c.b16 %v1866, %v1865
      %v1878 = vpack.c.b16 %v1868, %v1867
      %v1879 = vpack.c.b16 %v1870, %v1869
      %v1880 = vpack.c.b16 %v1872, %v1871
      %v1905 = vunpack.c.l.b16 %v1841
      %v1906 = vunpack.c.l.b16 %v1842
      %v1907 = vunpack.c.l.b16 %v1843
      %v1908 = vunpack.c.l.b16 %v1844
      %v1909 = vunpack.c.l.b16 %v1845
      %v1910 = vunpack.c.l.b16 %v1846
      %v1911 = vunpack.c.l.b16 %v1847
      %v1912 = vunpack.c.l.b16 %v1848
      %v1913 = vunpack.c.l.b16 %v1849
      %v1914 = vunpack.c.l.b16 %v1850
      %v1915 = vunpack.c.l.b16 %v1851
      %v1916 = vunpack.c.l.b16 %v1852
      %v1917 = vunpack.c.l.b16 %v1853
      %v1918 = vunpack.c.l.b16 %v1854
      %v1919 = vunpack.c.l.b16 %v1855
      %v1920 = vunpack.c.l.b16 %v1856
      %v1921 = vpack.c.b16 %v1906, %v1905
      %v1922 = vpack.c.b16 %v1908, %v1907
      %v1923 = vpack.c.b16 %v1910, %v1909
      %v1924 = vpack.c.b16 %v1912, %v1911
      %v1925 = vpack.c.b16 %v1914, %v1913
      %v1926 = vpack.c.b16 %v1916, %v1915
      %v1927 = vpack.c.b16 %v1918, %v1917
      %v1928 = vpack.c.b16 %v1920, %v1919
      %1937 = vmatprep.subr.bf16.mxu0 0
      %1938 = vmatpush1.bf16.msra.mxu0 %v1921
      %1939 = vmatprep.subr.bf16.mxu0 0
      %1940 = vmatpush1.bf16.msra.mxu0 %v1922
      %1941 = vmatprep.subr.bf16.mxu0 0
      %1942 = vmatpush1.bf16.msra.mxu0 %v1923
      %1943 = vmatprep.subr.bf16.mxu0 0
      %1944 = vmatpush1.bf16.msra.mxu0 %v1924
      %1945 = vmatprep.subr.bf16.mxu0 0
      %1946 = vmatpush1.bf16.msra.mxu0 %v1925
      %1947 = vmatprep.subr.bf16.mxu0 0
      %1948 = vmatpush1.bf16.msra.mxu0 %v1926
      %1949 = vmatprep.subr.bf16.mxu0 0
      %1950 = vmatpush1.bf16.msra.mxu0 %v1927
      %1951 = vmatprep.subr.bf16.mxu0 0
      %1952 = vmatpush1.bf16.msra.mxu0 %v1928
      %1953 = vmatprep.subr.bf16.mxu0 0
      %1954 = vmatpush1.bf16.msra.mxu0 0
      %1955 = vmatprep.subr.bf16.mxu0 0
      %1956 = vmatpush1.bf16.msra.mxu0 0
      %1957 = vmatprep.subr.bf16.mxu0 0
      %1958 = vmatpush1.bf16.msra.mxu0 0
      %1959 = vmatprep.subr.bf16.mxu0 0
      %1960 = vmatpush1.bf16.msra.mxu0 0
      %1961 = vmatprep.subr.bf16.mxu0 0
      %1962 = vmatpush1.bf16.msra.mxu0 0
      %1963 = vmatprep.subr.bf16.mxu0 0
      %1964 = vmatpush1.bf16.msra.mxu0 0
      %1965 = vmatprep.subr.bf16.mxu0 0
      %1966 = vmatpush1.bf16.msra.mxu0 0
      %1967 = vmatprep.subr.bf16.mxu0 0
      %1968 = vmatpush1.bf16.msra.mxu0 0
      %1969 = vmatprep.mubr.bf16.mxu0 0
      %1970 = vmatmul.mubr.bf16.gmra.mrb[0].mxu0 %v1873
      %v1971 = vpop.f32.mrb[0].mxu0
      %v1972 = vadd.f32 0.0, %v1971
      %v1973 = vpop.f32.mrb[0].mxu0
      %v1974 = vpop.f32.mrb[0].mxu0
      %v1975 = vadd.f32 0.0, %v1974
      %v1976 = vpop.f32.mrb[0].mxu0
      %1977 = vmatprep.mubr.bf16.mxu0 0
      %1978 = vmatmul.mubr.bf16.gmra.mrb[0].mxu0 %v1874
      %v1979 = vpop.f32.mrb[0].mxu0
      %v1980 = vadd.f32 0.0, %v1979
      %v1981 = vpop.f32.mrb[0].mxu0
      %v1982 = vpop.f32.mrb[0].mxu0
      %v1983 = vadd.f32 0.0, %v1982
      %v1984 = vpop.f32.mrb[0].mxu0
      %1985 = vmatprep.mubr.bf16.mxu0 0
      %1986 = vmatmul.mubr.bf16.gmra.mrb[0].mxu0 %v1875
      %v1987 = vpop.f32.mrb[0].mxu0
      %v1988 = vadd.f32 0.0, %v1987
      %v1989 = vpop.f32.mrb[0].mxu0
      %v1990 = vpop.f32.mrb[0].mxu0
      %v1991 = vadd.f32 0.0, %v1990
      %v1992 = vpop.f32.mrb[0].mxu0
      %1993 = vmatprep.mubr.bf16.mxu0 0
      %1994 = vmatmul.mubr.bf16.gmra.mrb[0].mxu0 %v1876
      %v1995 = vpop.f32.mrb[0].mxu0
      %v1996 = vadd.f32 0.0, %v1995
      %v1997 = vpop.f32.mrb[0].mxu0
      %v1998 = vpop.f32.mrb[0].mxu0
      %v1999 = vadd.f32 0.0, %v1998
      %v2000 = vpop.f32.mrb[0].mxu0
      %2001 = vmatprep.mubr.bf16.mxu0 0
      %2002 = vmatmul.mubr.bf16.gmra.mrb[0].mxu0 %v1877
      %v2003 = vpop.f32.mrb[0].mxu0
      %v2004 = vadd.f32 0.0, %v2003
      %v2005 = vpop.f32.mrb[0].mxu0
      %v2006 = vpop.f32.mrb[0].mxu0
      %v2007 = vadd.f32 0.0, %v2006
      %v2008 = vpop.f32.mrb[0].mxu0
      %2009 = vmatprep.mubr.bf16.mxu0 0
      %2010 = vmatmul.mubr.bf16.gmra.mrb[0].mxu0 %v1878
      %v2011 = vpop.f32.mrb[0].mxu0
      %v2012 = vadd.f32 0.0, %v2011
      %v2013 = vpop.f32.mrb[0].mxu0
      %v2014 = vpop.f32.mrb[0].mxu0
      %v2015 = vadd.f32 0.0, %v2014
      %v2016 = vpop.f32.mrb[0].mxu0
      %2017 = vmatprep.mubr.bf16.mxu0 0
      %2018 = vmatmul.mubr.bf16.gmra.mrb[0].mxu0 %v1879
      %v2019 = vpop.f32.mrb[0].mxu0
      %v2020 = vadd.f32 0.0, %v2019
      %v2021 = vpop.f32.mrb[0].mxu0
      %v2022 = vpop.f32.mrb[0].mxu0
      %v2023 = vadd.f32 0.0, %v2022
      %v2024 = vpop.f32.mrb[0].mxu0
      %2025 = vmatprep.mubr.bf16.mxu0 0
      %2026 = vmatmul.mubr.bf16.gmra.mrb[0].mxu0 %v1880
      %v2027 = vpop.f32.mrb[0].mxu0
      %v2028 = vadd.f32 0.0, %v2027
      %v2029 = vpop.f32.mrb[0].mxu0
      %v2030 = vpop.f32.mrb[0].mxu0
      %v2031 = vadd.f32 0.0, %v2030
      %v2032 = vpop.f32.mrb[0].mxu0
      %2033 = vdwg.mxu0
      %v2034 = vld [vmem:[#allocation2] sm:$0xff]
      %v2035 = vld [vmem:[#allocation2 + $0x8] sm:$0xff]
      %v2036 = vld [vmem:[#allocation2 + $0x10] sm:$0xff]
      %v2037 = vld [vmem:[#allocation2 + $0x18] sm:$0xff]
      %v2038 = vld [vmem:[#allocation2 + $0x20] sm:$0xff]
      %v2039 = vld [vmem:[#allocation2 + $0x28] sm:$0xff]
      %v2040 = vld [vmem:[#allocation2 + $0x30] sm:$0xff]
      %v2041 = vld [vmem:[#allocation2 + $0x38] sm:$0xff]
      %v2042 = vld [vmem:[#allocation2 + $0x40] sm:$0xff]
      %v2043 = vld [vmem:[#allocation2 + $0x48] sm:$0xff]
      %v2044 = vld [vmem:[#allocation2 + $0x50] sm:$0xff]
      %v2045 = vld [vmem:[#allocation2 + $0x58] sm:$0xff]
      %v2046 = vld [vmem:[#allocation2 + $0x60] sm:$0xff]
      %v2047 = vld [vmem:[#allocation2 + $0x68] sm:$0xff]
      %v2048 = vld [vmem:[#allocation2 + $0x70] sm:$0xff]
      %v2049 = vld [vmem:[#allocation2 + $0x78] sm:$0xff]
      %v2050 = vadd.f32 %v2034, %v1972
      %v2051 = vadd.f32 %v2035, %v1975
      %v2052 = vadd.f32 %v2036, %v1980
      %v2053 = vadd.f32 %v2037, %v1983
      %v2054 = vadd.f32 %v2038, %v1988
      %v2055 = vadd.f32 %v2039, %v1991
      %v2056 = vadd.f32 %v2040, %v1996
      %v2057 = vadd.f32 %v2041, %v1999
      %v2058 = vadd.f32 %v2042, %v2004
      %v2059 = vadd.f32 %v2043, %v2007
      %v2060 = vadd.f32 %v2044, %v2012
      %v2061 = vadd.f32 %v2045, %v2015
      %v2062 = vadd.f32 %v2046, %v2020
      %v2063 = vadd.f32 %v2047, %v2023
      %v2064 = vadd.f32 %v2048, %v2028
      %v2065 = vadd.f32 %v2049, %v2031
      %2066 = vst [vmem:[#allocation2] sm:$0xff] %v2050
      %2067 = vst [vmem:[#allocation2 + $0x8] sm:$0xff] %v2051
      %2068 = vst [vmem:[#allocation2 + $0x10] sm:$0xff] %v2052
      %2069 = vst [vmem:[#allocation2 + $0x18] sm:$0xff] %v2053
      %2070 = vst [vmem:[#allocation2 + $0x20] sm:$0xff] %v2054
      %2071 = vst [vmem:[#allocation2 + $0x28] sm:$0xff] %v2055
      %2072 = vst [vmem:[#allocation2 + $0x30] sm:$0xff] %v2056
      %2073 = vst [vmem:[#allocation2 + $0x38] sm:$0xff] %v2057
      %2074 = vst [vmem:[#allocation2 + $0x40] sm:$0xff] %v2058
      %2075 = vst [vmem:[#allocation2 + $0x48] sm:$0xff] %v2059
      %2076 = vst [vmem:[#allocation2 + $0x50] sm:$0xff] %v2060
      %2077 = vst [vmem:[#allocation2 + $0x58] sm:$0xff] %v2061
      %2078 = vst [vmem:[#allocation2 + $0x60] sm:$0xff] %v2062
      %2079 = vst [vmem:[#allocation2 + $0x68] sm:$0xff] %v2063
      %2080 = vst [vmem:[#allocation2 + $0x70] sm:$0xff] %v2064
      %2081 = vst [vmem:[#allocation2 + $0x78] sm:$0xff] %v2065
      %v2082 = vld [vmem:[%s1349] sm:$0xe]
      %v2083 = vld [vmem:[%s1349 + $0x4] sm:$0xf]
      %v2084 = vld [vmem:[%s1349 + $0x8] sm:$0x1]
      %v2085 = vld [vmem:[%s1349 + $0xc] sm:$0xe]
      %v2086 = vld [vmem:[%s1349 + $0x10] sm:$0xf]
      %v2087 = vld [vmem:[%s1349 + $0x14] sm:$0x1]
      %v2088 = vld [vmem:[%s1349 + $0x18] sm:$0xe]
      %v2089 = vld [vmem:[%s1349 + $0x1c] sm:$0xf]
      %v2090 = vld [vmem:[%s1349 + $0x20] sm:$0x1]
      %v2091 = vld [vmem:[%s1349 + $0x24] sm:$0xe]
      %v2092 = vld [vmem:[%s1349 + $0x28] sm:$0xf]
      %v2093 = vld [vmem:[%s1349 + $0x2c] sm:$0x1]
      %v2094 = vld [vmem:[%s1349 + $0x30] sm:$0xe]
      %v2095 = vld [vmem:[%s1349 + $0x34] sm:$0xf]
      %v2096 = vld [vmem:[%s1349 + $0x38] sm:$0x1]
      %v2097 = vld [vmem:[%s1349 + $0x3c] sm:$0xe]
      %v2098 = vld [vmem:[%s1349 + $0x40] sm:$0xf]
      %v2099 = vld [vmem:[%s1349 + $0x44] sm:$0x1]
      %v2100 = vld [vmem:[%s1349 + $0x48] sm:$0xe]
      %v2101 = vld [vmem:[%s1349 + $0x4c] sm:$0xf]
      %v2102 = vld [vmem:[%s1349 + $0x50] sm:$0x1]
      %v2103 = vld [vmem:[%s1349 + $0x54] sm:$0xe]
      %v2104 = vld [vmem:[%s1349 + $0x58] sm:$0xf]
      %v2105 = vld [vmem:[%s1349 + $0x5c] sm:$0x1]
      %v2130 = vrot.slane %v2082, 5
      %v2131 = vrot.slane %v2130, 4
      %v2132 = vrot.slane %v2083, 5
      %v2133 = vsel %vm1050, %v2131, %v2132
      %v2134 = vrot.slane %v2132, 4
      %v2135 = vrot.slane %v2084, 5
      %v2136 = vsel %vm1050, %v2134, %v2135
      %v2137 = vrot.slane %v2085, 5
      %v2138 = vrot.slane %v2137, 4
      %v2139 = vrot.slane %v2086, 5
      %v2140 = vsel %vm1050, %v2138, %v2139
      %v2141 = vrot.slane %v2139, 4
      %v2142 = vrot.slane %v2087, 5
      %v2143 = vsel %vm1050, %v2141, %v2142
      %v2144 = vrot.slane %v2088, 5
      %v2145 = vrot.slane %v2144, 4
      %v2146 = vrot.slane %v2089, 5
      %v2147 = vsel %vm1050, %v2145, %v2146
      %v2148 = vrot.slane %v2146, 4
      %v2149 = vrot.slane %v2090, 5
      %v2150 = vsel %vm1050, %v2148, %v2149
      %v2151 = vrot.slane %v2091, 5
      %v2152 = vrot.slane %v2151, 4
      %v2153 = vrot.slane %v2092, 5
      %v2154 = vsel %vm1050, %v2152, %v2153
      %v2155 = vrot.slane %v2153, 4
      %v2156 = vrot.slane %v2093, 5
      %v2157 = vsel %vm1050, %v2155, %v2156
      %v2158 = vrot.slane %v2094, 5
      %v2159 = vrot.slane %v2158, 4
      %v2160 = vrot.slane %v2095, 5
      %v2161 = vsel %vm1050, %v2159, %v2160
      %v2162 = vrot.slane %v2160, 4
      %v2163 = vrot.slane %v2096, 5
      %v2164 = vsel %vm1050, %v2162, %v2163
      %v2165 = vrot.slane %v2097, 5
      %v2166 = vrot.slane %v2165, 4
      %v2167 = vrot.slane %v2098, 5
      %v2168 = vsel %vm1050, %v2166, %v2167
      %v2169 = vrot.slane %v2167, 4
      %v2170 = vrot.slane %v2099, 5
      %v2171 = vsel %vm1050, %v2169, %v2170
      %v2172 = vrot.slane %v2100, 5
      %v2173 = vrot.slane %v2172, 4
      %v2174 = vrot.slane %v2101, 5
      %v2175 = vsel %vm1050, %v2173, %v2174
      %v2176 = vrot.slane %v2174, 4
      %v2177 = vrot.slane %v2102, 5
      %v2178 = vsel %vm1050, %v2176, %v2177
      %v2179 = vrot.slane %v2103, 5
      %v2180 = vrot.slane %v2179, 4
      %v2181 = vrot.slane %v2104, 5
      %v2182 = vsel %vm1050, %v2180, %v2181
      %v2183 = vrot.slane %v2181, 4
      %v2184 = vrot.slane %v2105, 5
      %v2185 = vsel %vm1050, %v2183, %v2184
      %s2186 = scalar_lea.vmem %s276, 320
      %v2187 = vld [vmem:[%s2186] sm:$0xf]
      %v2188 = vld [vmem:[%s2186 + $0x4] sm:$0xf]
      %v2189 = vld [vmem:[%s2186 + $0x8] sm:$0xf]
      %v2190 = vld [vmem:[%s2186 + $0xc] sm:$0xf]
      %v2191 = vld [vmem:[%s2186 + $0x10] sm:$0xf]
      %v2192 = vld [vmem:[%s2186 + $0x14] sm:$0xf]
      %v2193 = vld [vmem:[%s2186 + $0x18] sm:$0xf]
      %v2194 = vld [vmem:[%s2186 + $0x1c] sm:$0xf]
      %v2195 = vld [vmem:[%s2186 + $0x20] sm:$0xf]
      %v2196 = vld [vmem:[%s2186 + $0x24] sm:$0xf]
      %v2197 = vld [vmem:[%s2186 + $0x28] sm:$0xf]
      %v2198 = vld [vmem:[%s2186 + $0x2c] sm:$0xf]
      %v2199 = vld [vmem:[%s2186 + $0x30] sm:$0xf]
      %v2200 = vld [vmem:[%s2186 + $0x34] sm:$0xf]
      %v2201 = vld [vmem:[%s2186 + $0x38] sm:$0xf]
      %v2202 = vld [vmem:[%s2186 + $0x3c] sm:$0xf]
      %v2203 = vunpack.c.l.b16 %v2133
      %v2204 = vunpack.c.l.b16 %v2136
      %v2205 = vunpack.c.l.b16 %v2140
      %v2206 = vunpack.c.l.b16 %v2143
      %v2207 = vunpack.c.l.b16 %v2147
      %v2208 = vunpack.c.l.b16 %v2150
      %v2209 = vunpack.c.l.b16 %v2154
      %v2210 = vunpack.c.l.b16 %v2157
      %v2211 = vunpack.c.l.b16 %v2161
      %v2212 = vunpack.c.l.b16 %v2164
      %v2213 = vunpack.c.l.b16 %v2168
      %v2214 = vunpack.c.l.b16 %v2171
      %v2215 = vunpack.c.l.b16 %v2175
      %v2216 = vunpack.c.l.b16 %v2178
      %v2217 = vunpack.c.l.b16 %v2182
      %v2218 = vunpack.c.l.b16 %v2185
      %v2219 = vpack.c.b16 %v2204, %v2203
      %v2220 = vpack.c.b16 %v2206, %v2205
      %v2221 = vpack.c.b16 %v2208, %v2207
      %v2222 = vpack.c.b16 %v2210, %v2209
      %v2223 = vpack.c.b16 %v2212, %v2211
      %v2224 = vpack.c.b16 %v2214, %v2213
      %v2225 = vpack.c.b16 %v2216, %v2215
      %v2226 = vpack.c.b16 %v2218, %v2217
      %v2251 = vunpack.c.l.b16 %v2187
      %v2252 = vunpack.c.l.b16 %v2188
      %v2253 = vunpack.c.l.b16 %v2189
      %v2254 = vunpack.c.l.b16 %v2190
      %v2255 = vunpack.c.l.b16 %v2191
      %v2256 = vunpack.c.l.b16 %v2192
      %v2257 = vunpack.c.l.b16 %v2193
      %v2258 = vunpack.c.l.b16 %v2194
      %v2259 = vunpack.c.l.b16 %v2195
      %v2260 = vunpack.c.l.b16 %v2196
      %v2261 = vunpack.c.l.b16 %v2197
      %v2262 = vunpack.c.l.b16 %v2198
      %v2263 = vunpack.c.l.b16 %v2199
      %v2264 = vunpack.c.l.b16 %v2200
      %v2265 = vunpack.c.l.b16 %v2201
      %v2266 = vunpack.c.l.b16 %v2202
      %v2267 = vpack.c.b16 %v2252, %v2251
      %v2268 = vpack.c.b16 %v2254, %v2253
      %v2269 = vpack.c.b16 %v2256, %v2255
      %v2270 = vpack.c.b16 %v2258, %v2257
      %v2271 = vpack.c.b16 %v2260, %v2259
      %v2272 = vpack.c.b16 %v2262, %v2261
      %v2273 = vpack.c.b16 %v2264, %v2263
      %v2274 = vpack.c.b16 %v2266, %v2265
      %2283 = vmatprep.subr.bf16.mxu0 0
      %2284 = vmatpush1.bf16.msra.mxu0 %v2267
      %2285 = vmatprep.subr.bf16.mxu0 0
      %2286 = vmatpush1.bf16.msra.mxu0 %v2268
      %2287 = vmatprep.subr.bf16.mxu0 0
      %2288 = vmatpush1.bf16.msra.mxu0 %v2269
      %2289 = vmatprep.subr.bf16.mxu0 0
      %2290 = vmatpush1.bf16.msra.mxu0 %v2270
      %2291 = vmatprep.subr.bf16.mxu0 0
      %2292 = vmatpush1.bf16.msra.mxu0 %v2271
      %2293 = vmatprep.subr.bf16.mxu0 0
      %2294 = vmatpush1.bf16.msra.mxu0 %v2272
      %2295 = vmatprep.subr.bf16.mxu0 0
      %2296 = vmatpush1.bf16.msra.mxu0 %v2273
      %2297 = vmatprep.subr.bf16.mxu0 0
      %2298 = vmatpush1.bf16.msra.mxu0 %v2274
      %2299 = vmatprep.subr.bf16.mxu0 0
      %2300 = vmatpush1.bf16.msra.mxu0 0
      %2301 = vmatprep.subr.bf16.mxu0 0
      %2302 = vmatpush1.bf16.msra.mxu0 0
      %2303 = vmatprep.subr.bf16.mxu0 0
      %2304 = vmatpush1.bf16.msra.mxu0 0
      %2305 = vmatprep.subr.bf16.mxu0 0
      %2306 = vmatpush1.bf16.msra.mxu0 0
      %2307 = vmatprep.subr.bf16.mxu0 0
      %2308 = vmatpush1.bf16.msra.mxu0 0
      %2309 = vmatprep.subr.bf16.mxu0 0
      %2310 = vmatpush1.bf16.msra.mxu0 0
      %2311 = vmatprep.subr.bf16.mxu0 0
      %2312 = vmatpush1.bf16.msra.mxu0 0
      %2313 = vmatprep.subr.bf16.mxu0 0
      %2314 = vmatpush1.bf16.msra.mxu0 0
      %2315 = vmatprep.mubr.bf16.mxu0 0
      %2316 = vmatmul.mubr.bf16.gmra.mrb[0].mxu0 %v2219
      %v2317 = vpop.f32.mrb[0].mxu0
      %v2318 = vadd.f32 0.0, %v2317
      %v2319 = vpop.f32.mrb[0].mxu0
      %v2320 = vpop.f32.mrb[0].mxu0
      %v2321 = vadd.f32 0.0, %v2320
      %v2322 = vpop.f32.mrb[0].mxu0
      %2323 = vmatprep.mubr.bf16.mxu0 0
      %2324 = vmatmul.mubr.bf16.gmra.mrb[0].mxu0 %v2220
      %v2325 = vpop.f32.mrb[0].mxu0
      %v2326 = vadd.f32 0.0, %v2325
      %v2327 = vpop.f32.mrb[0].mxu0
      %v2328 = vpop.f32.mrb[0].mxu0
      %v2329 = vadd.f32 0.0, %v2328
      %v2330 = vpop.f32.mrb[0].mxu0
      %2331 = vmatprep.mubr.bf16.mxu0 0
      %2332 = vmatmul.mubr.bf16.gmra.mrb[0].mxu0 %v2221
      %v2333 = vpop.f32.mrb[0].mxu0
      %v2334 = vadd.f32 0.0, %v2333
      %v2335 = vpop.f32.mrb[0].mxu0
      %v2336 = vpop.f32.mrb[0].mxu0
      %v2337 = vadd.f32 0.0, %v2336
      %v2338 = vpop.f32.mrb[0].mxu0
      %2339 = vmatprep.mubr.bf16.mxu0 0
      %2340 = vmatmul.mubr.bf16.gmra.mrb[0].mxu0 %v2222
      %v2341 = vpop.f32.mrb[0].mxu0
      %v2342 = vadd.f32 0.0, %v2341
      %v2343 = vpop.f32.mrb[0].mxu0
      %v2344 = vpop.f32.mrb[0].mxu0
      %v2345 = vadd.f32 0.0, %v2344
      %v2346 = vpop.f32.mrb[0].mxu0
      %2347 = vmatprep.mubr.bf16.mxu0 0
      %2348 = vmatmul.mubr.bf16.gmra.mrb[0].mxu0 %v2223
      %v2349 = vpop.f32.mrb[0].mxu0
      %v2350 = vadd.f32 0.0, %v2349
      %v2351 = vpop.f32.mrb[0].mxu0
      %v2352 = vpop.f32.mrb[0].mxu0
      %v2353 = vadd.f32 0.0, %v2352
      %v2354 = vpop.f32.mrb[0].mxu0
      %2355 = vmatprep.mubr.bf16.mxu0 0
      %2356 = vmatmul.mubr.bf16.gmra.mrb[0].mxu0 %v2224
      %v2357 = vpop.f32.mrb[0].mxu0
      %v2358 = vadd.f32 0.0, %v2357
      %v2359 = vpop.f32.mrb[0].mxu0
      %v2360 = vpop.f32.mrb[0].mxu0
      %v2361 = vadd.f32 0.0, %v2360
      %v2362 = vpop.f32.mrb[0].mxu0
      %2363 = vmatprep.mubr.bf16.mxu0 0
      %2364 = vmatmul.mubr.bf16.gmra.mrb[0].mxu0 %v2225
      %v2365 = vpop.f32.mrb[0].mxu0
      %v2366 = vadd.f32 0.0, %v2365
      %v2367 = vpop.f32.mrb[0].mxu0
      %v2368 = vpop.f32.mrb[0].mxu0
      %v2369 = vadd.f32 0.0, %v2368
      %v2370 = vpop.f32.mrb[0].mxu0
      %2371 = vmatprep.mubr.bf16.mxu0 0
      %2372 = vmatmul.mubr.bf16.gmra.mrb[0].mxu0 %v2226
      %v2373 = vpop.f32.mrb[0].mxu0
      %v2374 = vadd.f32 0.0, %v2373
      %v2375 = vpop.f32.mrb[0].mxu0
      %v2376 = vpop.f32.mrb[0].mxu0
      %v2377 = vadd.f32 0.0, %v2376
      %v2378 = vpop.f32.mrb[0].mxu0
      %2379 = vdwg.mxu0
      %v2380 = vld [vmem:[#allocation2] sm:$0xff]
      %v2381 = vld [vmem:[#allocation2 + $0x8] sm:$0xff]
      %v2382 = vld [vmem:[#allocation2 + $0x10] sm:$0xff]
      %v2383 = vld [vmem:[#allocation2 + $0x18] sm:$0xff]
      %v2384 = vld [vmem:[#allocation2 + $0x20] sm:$0xff]
      %v2385 = vld [vmem:[#allocation2 + $0x28] sm:$0xff]
      %v2386 = vld [vmem:[#allocation2 + $0x30] sm:$0xff]
      %v2387 = vld [vmem:[#allocation2 + $0x38] sm:$0xff]
      %v2388 = vld [vmem:[#allocation2 + $0x40] sm:$0xff]
      %v2389 = vld [vmem:[#allocation2 + $0x48] sm:$0xff]
      %v2390 = vld [vmem:[#allocation2 + $0x50] sm:$0xff]
      %v2391 = vld [vmem:[#allocation2 + $0x58] sm:$0xff]
      %v2392 = vld [vmem:[#allocation2 + $0x60] sm:$0xff]
      %v2393 = vld [vmem:[#allocation2 + $0x68] sm:$0xff]
      %v2394 = vld [vmem:[#allocation2 + $0x70] sm:$0xff]
      %v2395 = vld [vmem:[#allocation2 + $0x78] sm:$0xff]
      %v2396 = vadd.f32 %v2380, %v2318
      %v2397 = vadd.f32 %v2381, %v2321
      %v2398 = vadd.f32 %v2382, %v2326
      %v2399 = vadd.f32 %v2383, %v2329
      %v2400 = vadd.f32 %v2384, %v2334
      %v2401 = vadd.f32 %v2385, %v2337
      %v2402 = vadd.f32 %v2386, %v2342
      %v2403 = vadd.f32 %v2387, %v2345
      %v2404 = vadd.f32 %v2388, %v2350
      %v2405 = vadd.f32 %v2389, %v2353
      %v2406 = vadd.f32 %v2390, %v2358
      %v2407 = vadd.f32 %v2391, %v2361
      %v2408 = vadd.f32 %v2392, %v2366
      %v2409 = vadd.f32 %v2393, %v2369
      %v2410 = vadd.f32 %v2394, %v2374
      %v2411 = vadd.f32 %v2395, %v2377
      %2412 = vst [vmem:[#allocation2] sm:$0xff] %v2396
      %2413 = vst [vmem:[#allocation2 + $0x8] sm:$0xff] %v2397
      %2414 = vst [vmem:[#allocation2 + $0x10] sm:$0xff] %v2398
      %2415 = vst [vmem:[#allocation2 + $0x18] sm:$0xff] %v2399
      %2416 = vst [vmem:[#allocation2 + $0x20] sm:$0xff] %v2400
      %2417 = vst [vmem:[#allocation2 + $0x28] sm:$0xff] %v2401
      %2418 = vst [vmem:[#allocation2 + $0x30] sm:$0xff] %v2402
      %2419 = vst [vmem:[#allocation2 + $0x38] sm:$0xff] %v2403
      %2420 = vst [vmem:[#allocation2 + $0x40] sm:$0xff] %v2404
      %2421 = vst [vmem:[#allocation2 + $0x48] sm:$0xff] %v2405
      %2422 = vst [vmem:[#allocation2 + $0x50] sm:$0xff] %v2406
      %2423 = vst [vmem:[#allocation2 + $0x58] sm:$0xff] %v2407
      %2424 = vst [vmem:[#allocation2 + $0x60] sm:$0xff] %v2408
      %2425 = vst [vmem:[#allocation2 + $0x68] sm:$0xff] %v2409
      %2426 = vst [vmem:[#allocation2 + $0x70] sm:$0xff] %v2410
      %2427 = vst [vmem:[#allocation2 + $0x78] sm:$0xff] %v2411
      %s2428 = scalar_lea.vmem %s272, 24
      %v2429 = vld [vmem:[%s2428] sm:$0xf]
      %v2430 = vld [vmem:[%s2428 + $0x4] sm:$0xf]
      %v2431 = vld [vmem:[%s2428 + $0xc] sm:$0xf]
      %v2432 = vld [vmem:[%s2428 + $0x10] sm:$0xf]
      %v2433 = vld [vmem:[%s2428 + $0x18] sm:$0xf]
      %v2434 = vld [vmem:[%s2428 + $0x1c] sm:$0xf]
      %v2435 = vld [vmem:[%s2428 + $0x24] sm:$0xf]
      %v2436 = vld [vmem:[%s2428 + $0x28] sm:$0xf]
      %v2437 = vld [vmem:[%s2428 + $0x30] sm:$0xf]
      %v2438 = vld [vmem:[%s2428 + $0x34] sm:$0xf]
      %v2439 = vld [vmem:[%s2428 + $0x3c] sm:$0xf]
      %v2440 = vld [vmem:[%s2428 + $0x40] sm:$0xf]
      %v2441 = vld [vmem:[%s2428 + $0x48] sm:$0xf]
      %v2442 = vld [vmem:[%s2428 + $0x4c] sm:$0xf]
      %v2443 = vld [vmem:[%s2428 + $0x54] sm:$0xf]
      %v2444 = vld [vmem:[%s2428 + $0x58] sm:$0xf]
      %s2445 = scalar_lea.vmem %s276, 384
      %v2446 = vld [vmem:[%s2445] sm:$0xf]
      %v2447 = vld [vmem:[%s2445 + $0x4] sm:$0xf]
      %v2448 = vld [vmem:[%s2445 + $0x8] sm:$0xf]
      %v2449 = vld [vmem:[%s2445 + $0xc] sm:$0xf]
      %v2450 = vld [vmem:[%s2445 + $0x10] sm:$0xf]
      %v2451 = vld [vmem:[%s2445 + $0x14] sm:$0xf]
      %v2452 = vld [vmem:[%s2445 + $0x18] sm:$0xf]
      %v2453 = vld [vmem:[%s2445 + $0x1c] sm:$0xf]
      %v2454 = vld [vmem:[%s2445 + $0x20] sm:$0xf]
      %v2455 = vld [vmem:[%s2445 + $0x24] sm:$0xf]
      %v2456 = vld [vmem:[%s2445 + $0x28] sm:$0xf]
      %v2457 = vld [vmem:[%s2445 + $0x2c] sm:$0xf]
      %v2458 = vld [vmem:[%s2445 + $0x30] sm:$0xf]
      %v2459 = vld [vmem:[%s2445 + $0x34] sm:$0xf]
      %v2460 = vld [vmem:[%s2445 + $0x38] sm:$0xf]
      %v2461 = vld [vmem:[%s2445 + $0x3c] sm:$0xf]
      %v2478 = vunpack.c.l.b16 %v2429
      %v2479 = vunpack.c.l.b16 %v2430
      %v2480 = vunpack.c.l.b16 %v2431
      %v2481 = vunpack.c.l.b16 %v2432
      %v2482 = vunpack.c.l.b16 %v2433
      %v2483 = vunpack.c.l.b16 %v2434
      %v2484 = vunpack.c.l.b16 %v2435
      %v2485 = vunpack.c.l.b16 %v2436
      %v2486 = vunpack.c.l.b16 %v2437
      %v2487 = vunpack.c.l.b16 %v2438
      %v2488 = vunpack.c.l.b16 %v2439
      %v2489 = vunpack.c.l.b16 %v2440
      %v2490 = vunpack.c.l.b16 %v2441
      %v2491 = vunpack.c.l.b16 %v2442
      %v2492 = vunpack.c.l.b16 %v2443
      %v2493 = vunpack.c.l.b16 %v2444
      %v2494 = vpack.c.b16 %v2479, %v2478
      %v2495 = vpack.c.b16 %v2481, %v2480
      %v2496 = vpack.c.b16 %v2483, %v2482
      %v2497 = vpack.c.b16 %v2485, %v2484
      %v2498 = vpack.c.b16 %v2487, %v2486
      %v2499 = vpack.c.b16 %v2489, %v2488
      %v2500 = vpack.c.b16 %v2491, %v2490
      %v2501 = vpack.c.b16 %v2493, %v2492
      %v2526 = vunpack.c.l.b16 %v2446
      %v2527 = vunpack.c.l.b16 %v2447
      %v2528 = vunpack.c.l.b16 %v2448
      %v2529 = vunpack.c.l.b16 %v2449
      %v2530 = vunpack.c.l.b16 %v2450
      %v2531 = vunpack.c.l.b16 %v2451
      %v2532 = vunpack.c.l.b16 %v2452
      %v2533 = vunpack.c.l.b16 %v2453
      %v2534 = vunpack.c.l.b16 %v2454
      %v2535 = vunpack.c.l.b16 %v2455
      %v2536 = vunpack.c.l.b16 %v2456
      %v2537 = vunpack.c.l.b16 %v2457
      %v2538 = vunpack.c.l.b16 %v2458
      %v2539 = vunpack.c.l.b16 %v2459
      %v2540 = vunpack.c.l.b16 %v2460
      %v2541 = vunpack.c.l.b16 %v2461
      %v2542 = vpack.c.b16 %v2527, %v2526
      %v2543 = vpack.c.b16 %v2529, %v2528
      %v2544 = vpack.c.b16 %v2531, %v2530
      %v2545 = vpack.c.b16 %v2533, %v2532
      %v2546 = vpack.c.b16 %v2535, %v2534
      %v2547 = vpack.c.b16 %v2537, %v2536
      %v2548 = vpack.c.b16 %v2539, %v2538
      %v2549 = vpack.c.b16 %v2541, %v2540
      %2558 = vmatprep.subr.bf16.mxu0 0
      %2559 = vmatpush1.bf16.msra.mxu0 %v2542
      %2560 = vmatprep.subr.bf16.mxu0 0
      %2561 = vmatpush1.bf16.msra.mxu0 %v2543
      %2562 = vmatprep.subr.bf16.mxu0 0
      %2563 = vmatpush1.bf16.msra.mxu0 %v2544
      %2564 = vmatprep.subr.bf16.mxu0 0
      %2565 = vmatpush1.bf16.msra.mxu0 %v2545
      %2566 = vmatprep.subr.bf16.mxu0 0
      %2567 = vmatpush1.bf16.msra.mxu0 %v2546
      %2568 = vmatprep.subr.bf16.mxu0 0
      %2569 = vmatpush1.bf16.msra.mxu0 %v2547
      %2570 = vmatprep.subr.bf16.mxu0 0
      %2571 = vmatpush1.bf16.msra.mxu0 %v2548
      %2572 = vmatprep.subr.bf16.mxu0 0
      %2573 = vmatpush1.bf16.msra.mxu0 %v2549
      %2574 = vmatprep.subr.bf16.mxu0 0
      %2575 = vmatpush1.bf16.msra.mxu0 0
      %2576 = vmatprep.subr.bf16.mxu0 0
      %2577 = vmatpush1.bf16.msra.mxu0 0
      %2578 = vmatprep.subr.bf16.mxu0 0
      %2579 = vmatpush1.bf16.msra.mxu0 0
      %2580 = vmatprep.subr.bf16.mxu0 0
      %2581 = vmatpush1.bf16.msra.mxu0 0
      %2582 = vmatprep.subr.bf16.mxu0 0
      %2583 = vmatpush1.bf16.msra.mxu0 0
      %2584 = vmatprep.subr.bf16.mxu0 0
      %2585 = vmatpush1.bf16.msra.mxu0 0
      %2586 = vmatprep.subr.bf16.mxu0 0
      %2587 = vmatpush1.bf16.msra.mxu0 0
      %2588 = vmatprep.subr.bf16.mxu0 0
      %2589 = vmatpush1.bf16.msra.mxu0 0
      %2590 = vmatprep.mubr.bf16.mxu0 0
      %2591 = vmatmul.mubr.bf16.gmra.mrb[0].mxu0 %v2494
      %v2592 = vpop.f32.mrb[0].mxu0
      %v2593 = vadd.f32 0.0, %v2592
      %v2594 = vpop.f32.mrb[0].mxu0
      %v2595 = vpop.f32.mrb[0].mxu0
      %v2596 = vadd.f32 0.0, %v2595
      %v2597 = vpop.f32.mrb[0].mxu0
      %2598 = vmatprep.mubr.bf16.mxu0 0
      %2599 = vmatmul.mubr.bf16.gmra.mrb[0].mxu0 %v2495
      %v2600 = vpop.f32.mrb[0].mxu0
      %v2601 = vadd.f32 0.0, %v2600
      %v2602 = vpop.f32.mrb[0].mxu0
      %v2603 = vpop.f32.mrb[0].mxu0
      %v2604 = vadd.f32 0.0, %v2603
      %v2605 = vpop.f32.mrb[0].mxu0
      %2606 = vmatprep.mubr.bf16.mxu0 0
      %2607 = vmatmul.mubr.bf16.gmra.mrb[0].mxu0 %v2496
      %v2608 = vpop.f32.mrb[0].mxu0
      %v2609 = vadd.f32 0.0, %v2608
      %v2610 = vpop.f32.mrb[0].mxu0
      %v2611 = vpop.f32.mrb[0].mxu0
      %v2612 = vadd.f32 0.0, %v2611
      %v2613 = vpop.f32.mrb[0].mxu0
      %2614 = vmatprep.mubr.bf16.mxu0 0
      %2615 = vmatmul.mubr.bf16.gmra.mrb[0].mxu0 %v2497
      %v2616 = vpop.f32.mrb[0].mxu0
      %v2617 = vadd.f32 0.0, %v2616
      %v2618 = vpop.f32.mrb[0].mxu0
      %v2619 = vpop.f32.mrb[0].mxu0
      %v2620 = vadd.f32 0.0, %v2619
      %v2621 = vpop.f32.mrb[0].mxu0
      %2622 = vmatprep.mubr.bf16.mxu0 0
      %2623 = vmatmul.mubr.bf16.gmra.mrb[0].mxu0 %v2498
      %v2624 = vpop.f32.mrb[0].mxu0
      %v2625 = vadd.f32 0.0, %v2624
      %v2626 = vpop.f32.mrb[0].mxu0
      %v2627 = vpop.f32.mrb[0].mxu0
      %v2628 = vadd.f32 0.0, %v2627
      %v2629 = vpop.f32.mrb[0].mxu0
      %2630 = vmatprep.mubr.bf16.mxu0 0
      %2631 = vmatmul.mubr.bf16.gmra.mrb[0].mxu0 %v2499
      %v2632 = vpop.f32.mrb[0].mxu0
      %v2633 = vadd.f32 0.0, %v2632
      %v2634 = vpop.f32.mrb[0].mxu0
      %v2635 = vpop.f32.mrb[0].mxu0
      %v2636 = vadd.f32 0.0, %v2635
      %v2637 = vpop.f32.mrb[0].mxu0
      %2638 = vmatprep.mubr.bf16.mxu0 0
      %2639 = vmatmul.mubr.bf16.gmra.mrb[0].mxu0 %v2500
      %v2640 = vpop.f32.mrb[0].mxu0
      %v2641 = vadd.f32 0.0, %v2640
      %v2642 = vpop.f32.mrb[0].mxu0
      %v2643 = vpop.f32.mrb[0].mxu0
      %v2644 = vadd.f32 0.0, %v2643
      %v2645 = vpop.f32.mrb[0].mxu0
      %2646 = vmatprep.mubr.bf16.mxu0 0
      %2647 = vmatmul.mubr.bf16.gmra.mrb[0].mxu0 %v2501
      %v2648 = vpop.f32.mrb[0].mxu0
      %v2649 = vadd.f32 0.0, %v2648
      %v2650 = vpop.f32.mrb[0].mxu0
      %v2651 = vpop.f32.mrb[0].mxu0
      %v2652 = vadd.f32 0.0, %v2651
      %v2653 = vpop.f32.mrb[0].mxu0
      %2654 = vdwg.mxu0
      %v2655 = vld [vmem:[#allocation2] sm:$0xff]
      %v2656 = vld [vmem:[#allocation2 + $0x8] sm:$0xff]
      %v2657 = vld [vmem:[#allocation2 + $0x10] sm:$0xff]
      %v2658 = vld [vmem:[#allocation2 + $0x18] sm:$0xff]
      %v2659 = vld [vmem:[#allocation2 + $0x20] sm:$0xff]
      %v2660 = vld [vmem:[#allocation2 + $0x28] sm:$0xff]
      %v2661 = vld [vmem:[#allocation2 + $0x30] sm:$0xff]
      %v2662 = vld [vmem:[#allocation2 + $0x38] sm:$0xff]
      %v2663 = vld [vmem:[#allocation2 + $0x40] sm:$0xff]
      %v2664 = vld [vmem:[#allocation2 + $0x48] sm:$0xff]
      %v2665 = vld [vmem:[#allocation2 + $0x50] sm:$0xff]
      %v2666 = vld [vmem:[#allocation2 + $0x58] sm:$0xff]
      %v2667 = vld [vmem:[#allocation2 + $0x60] sm:$0xff]
      %v2668 = vld [vmem:[#allocation2 + $0x68] sm:$0xff]
      %v2669 = vld [vmem:[#allocation2 + $0x70] sm:$0xff]
      %v2670 = vld [vmem:[#allocation2 + $0x78] sm:$0xff]
      %v2671 = vadd.f32 %v2655, %v2593
      %v2672 = vadd.f32 %v2656, %v2596
      %v2673 = vadd.f32 %v2657, %v2601
      %v2674 = vadd.f32 %v2658, %v2604
      %v2675 = vadd.f32 %v2659, %v2609
      %v2676 = vadd.f32 %v2660, %v2612
      %v2677 = vadd.f32 %v2661, %v2617
      %v2678 = vadd.f32 %v2662, %v2620
      %v2679 = vadd.f32 %v2663, %v2625
      %v2680 = vadd.f32 %v2664, %v2628
      %v2681 = vadd.f32 %v2665, %v2633
      %v2682 = vadd.f32 %v2666, %v2636
      %v2683 = vadd.f32 %v2667, %v2641
      %v2684 = vadd.f32 %v2668, %v2644
      %v2685 = vadd.f32 %v2669, %v2649
      %v2686 = vadd.f32 %v2670, %v2652
      %2687 = vst [vmem:[#allocation2] sm:$0xff] %v2671
      %2688 = vst [vmem:[#allocation2 + $0x8] sm:$0xff] %v2672
      %2689 = vst [vmem:[#allocation2 + $0x10] sm:$0xff] %v2673
      %2690 = vst [vmem:[#allocation2 + $0x18] sm:$0xff] %v2674
      %2691 = vst [vmem:[#allocation2 + $0x20] sm:$0xff] %v2675
      %2692 = vst [vmem:[#allocation2 + $0x28] sm:$0xff] %v2676
      %2693 = vst [vmem:[#allocation2 + $0x30] sm:$0xff] %v2677
      %2694 = vst [vmem:[#allocation2 + $0x38] sm:$0xff] %v2678
      %2695 = vst [vmem:[#allocation2 + $0x40] sm:$0xff] %v2679
      %2696 = vst [vmem:[#allocation2 + $0x48] sm:$0xff] %v2680
      %2697 = vst [vmem:[#allocation2 + $0x50] sm:$0xff] %v2681
      %2698 = vst [vmem:[#allocation2 + $0x58] sm:$0xff] %v2682
      %2699 = vst [vmem:[#allocation2 + $0x60] sm:$0xff] %v2683
      %2700 = vst [vmem:[#allocation2 + $0x68] sm:$0xff] %v2684
      %2701 = vst [vmem:[#allocation2 + $0x70] sm:$0xff] %v2685
      %2702 = vst [vmem:[#allocation2 + $0x78] sm:$0xff] %v2686
      %v2703 = vld [vmem:[%s2428] sm:$0xf]
      %v2704 = vld [vmem:[%s2428 + $0x4] sm:$0xf]
      %v2705 = vld [vmem:[%s2428 + $0x8] sm:$0x1]
      %v2706 = vld [vmem:[%s2428 + $0xc] sm:$0xf]
      %v2707 = vld [vmem:[%s2428 + $0x10] sm:$0xf]
      %v2708 = vld [vmem:[%s2428 + $0x14] sm:$0x1]
      %v2709 = vld [vmem:[%s2428 + $0x18] sm:$0xf]
      %v2710 = vld [vmem:[%s2428 + $0x1c] sm:$0xf]
      %v2711 = vld [vmem:[%s2428 + $0x20] sm:$0x1]
      %v2712 = vld [vmem:[%s2428 + $0x24] sm:$0xf]
      %v2713 = vld [vmem:[%s2428 + $0x28] sm:$0xf]
      %v2714 = vld [vmem:[%s2428 + $0x2c] sm:$0x1]
      %v2715 = vld [vmem:[%s2428 + $0x30] sm:$0xf]
      %v2716 = vld [vmem:[%s2428 + $0x34] sm:$0xf]
      %v2717 = vld [vmem:[%s2428 + $0x38] sm:$0x1]
      %v2718 = vld [vmem:[%s2428 + $0x3c] sm:$0xf]
      %v2719 = vld [vmem:[%s2428 + $0x40] sm:$0xf]
      %v2720 = vld [vmem:[%s2428 + $0x44] sm:$0x1]
      %v2721 = vld [vmem:[%s2428 + $0x48] sm:$0xf]
      %v2722 = vld [vmem:[%s2428 + $0x4c] sm:$0xf]
      %v2723 = vld [vmem:[%s2428 + $0x50] sm:$0x1]
      %v2724 = vld [vmem:[%s2428 + $0x54] sm:$0xf]
      %v2725 = vld [vmem:[%s2428 + $0x58] sm:$0xf]
      %v2726 = vld [vmem:[%s2428 + $0x5c] sm:$0x1]
      %v2728 = vshrl.u32 %v2703, 16
      %v2730 = vrot.slane %v2728, 4
      %v2731 = vshll.u32 %v2703, 16
      %v2733 = vrot.slane %v2731, 5
      %v2734 = vor.u32 %v2730, %v2733
      %v2735 = vrot.slane %v2734, 4
      %v2737 = vshll.u32 %v2704, 16
      %v2739 = vrot.slane %v2737, 5
      %v2740 = vsel %vm565, %v2735, %v2739
      %v2741 = vshrl.u32 %v2704, 16
      %v2743 = vrot.slane %v2741, 4
      %v2744 = vor.u32 %v2743, %v2739
      %v2745 = vrot.slane %v2744, 4
      %v2747 = vshll.u32 %v2705, 16
      %v2749 = vrot.slane %v2747, 5
      %v2750 = vsel %vm565, %v2745, %v2749
      %v2752 = vshrl.u32 %v2706, 16
      %v2754 = vrot.slane %v2752, 4
      %v2755 = vshll.u32 %v2706, 16
      %v2757 = vrot.slane %v2755, 5
      %v2758 = vor.u32 %v2754, %v2757
      %v2759 = vrot.slane %v2758, 4
      %v2761 = vshll.u32 %v2707, 16
      %v2763 = vrot.slane %v2761, 5
      %v2764 = vsel %vm565, %v2759, %v2763
      %v2765 = vshrl.u32 %v2707, 16
      %v2767 = vrot.slane %v2765, 4
      %v2768 = vor.u32 %v2767, %v2763
      %v2769 = vrot.slane %v2768, 4
      %v2771 = vshll.u32 %v2708, 16
      %v2773 = vrot.slane %v2771, 5
      %v2774 = vsel %vm565, %v2769, %v2773
      %v2776 = vshrl.u32 %v2709, 16
      %v2778 = vrot.slane %v2776, 4
      %v2779 = vshll.u32 %v2709, 16
      %v2781 = vrot.slane %v2779, 5
      %v2782 = vor.u32 %v2778, %v2781
      %v2783 = vrot.slane %v2782, 4
      %v2785 = vshll.u32 %v2710, 16
      %v2787 = vrot.slane %v2785, 5
      %v2788 = vsel %vm565, %v2783, %v2787
      %v2789 = vshrl.u32 %v2710, 16
      %v2791 = vrot.slane %v2789, 4
      %v2792 = vor.u32 %v2791, %v2787
      %v2793 = vrot.slane %v2792, 4
      %v2795 = vshll.u32 %v2711, 16
      %v2797 = vrot.slane %v2795, 5
      %v2798 = vsel %vm565, %v2793, %v2797
      %v2800 = vshrl.u32 %v2712, 16
      %v2802 = vrot.slane %v2800, 4
      %v2803 = vshll.u32 %v2712, 16
      %v2805 = vrot.slane %v2803, 5
      %v2806 = vor.u32 %v2802, %v2805
      %v2807 = vrot.slane %v2806, 4
      %v2809 = vshll.u32 %v2713, 16
      %v2811 = vrot.slane %v2809, 5
      %v2812 = vsel %vm565, %v2807, %v2811
      %v2813 = vshrl.u32 %v2713, 16
      %v2815 = vrot.slane %v2813, 4
      %v2816 = vor.u32 %v2815, %v2811
      %v2817 = vrot.slane %v2816, 4
      %v2819 = vshll.u32 %v2714, 16
      %v2821 = vrot.slane %v2819, 5
      %v2822 = vsel %vm565, %v2817, %v2821
      %v2824 = vshrl.u32 %v2715, 16
      %v2826 = vrot.slane %v2824, 4
      %v2827 = vshll.u32 %v2715, 16
      %v2829 = vrot.slane %v2827, 5
      %v2830 = vor.u32 %v2826, %v2829
      %v2831 = vrot.slane %v2830, 4
      %v2833 = vshll.u32 %v2716, 16
      %v2835 = vrot.slane %v2833, 5
      %v2836 = vsel %vm565, %v2831, %v2835
      %v2837 = vshrl.u32 %v2716, 16
      %v2839 = vrot.slane %v2837, 4
      %v2840 = vor.u32 %v2839, %v2835
      %v2841 = vrot.slane %v2840, 4
      %v2843 = vshll.u32 %v2717, 16
      %v2845 = vrot.slane %v2843, 5
      %v2846 = vsel %vm565, %v2841, %v2845
      %v2848 = vshrl.u32 %v2718, 16
      %v2850 = vrot.slane %v2848, 4
      %v2851 = vshll.u32 %v2718, 16
      %v2853 = vrot.slane %v2851, 5
      %v2854 = vor.u32 %v2850, %v2853
      %v2855 = vrot.slane %v2854, 4
      %v2857 = vshll.u32 %v2719, 16
      %v2859 = vrot.slane %v2857, 5
      %v2860 = vsel %vm565, %v2855, %v2859
      %v2861 = vshrl.u32 %v2719, 16
      %v2863 = vrot.slane %v2861, 4
      %v2864 = vor.u32 %v2863, %v2859
      %v2865 = vrot.slane %v2864, 4
      %v2867 = vshll.u32 %v2720, 16
      %v2869 = vrot.slane %v2867, 5
      %v2870 = vsel %vm565, %v2865, %v2869
      %v2872 = vshrl.u32 %v2721, 16
      %v2874 = vrot.slane %v2872, 4
      %v2875 = vshll.u32 %v2721, 16
      %v2877 = vrot.slane %v2875, 5
      %v2878 = vor.u32 %v2874, %v2877
      %v2879 = vrot.slane %v2878, 4
      %v2881 = vshll.u32 %v2722, 16
      %v2883 = vrot.slane %v2881, 5
      %v2884 = vsel %vm565, %v2879, %v2883
      %v2885 = vshrl.u32 %v2722, 16
      %v2887 = vrot.slane %v2885, 4
      %v2888 = vor.u32 %v2887, %v2883
      %v2889 = vrot.slane %v2888, 4
      %v2891 = vshll.u32 %v2723, 16
      %v2893 = vrot.slane %v2891, 5
      %v2894 = vsel %vm565, %v2889, %v2893
      %v2896 = vshrl.u32 %v2724, 16
      %v2898 = vrot.slane %v2896, 4
      %v2899 = vshll.u32 %v2724, 16
      %v2901 = vrot.slane %v2899, 5
      %v2902 = vor.u32 %v2898, %v2901
      %v2903 = vrot.slane %v2902, 4
      %v2905 = vshll.u32 %v2725, 16
      %v2907 = vrot.slane %v2905, 5
      %v2908 = vsel %vm565, %v2903, %v2907
      %v2909 = vshrl.u32 %v2725, 16
      %v2911 = vrot.slane %v2909, 4
      %v2912 = vor.u32 %v2911, %v2907
      %v2913 = vrot.slane %v2912, 4
      %v2915 = vshll.u32 %v2726, 16
      %v2917 = vrot.slane %v2915, 5
      %v2918 = vsel %vm565, %v2913, %v2917
      %s2919 = scalar_lea.vmem %s276, 448
      %v2920 = vld [vmem:[%s2919] sm:$0xf]
      %v2921 = vld [vmem:[%s2919 + $0x4] sm:$0xf]
      %v2922 = vld [vmem:[%s2919 + $0x8] sm:$0xf]
      %v2923 = vld [vmem:[%s2919 + $0xc] sm:$0xf]
      %v2924 = vld [vmem:[%s2919 + $0x10] sm:$0xf]
      %v2925 = vld [vmem:[%s2919 + $0x14] sm:$0xf]
      %v2926 = vld [vmem:[%s2919 + $0x18] sm:$0xf]
      %v2927 = vld [vmem:[%s2919 + $0x1c] sm:$0xf]
      %v2928 = vld [vmem:[%s2919 + $0x20] sm:$0xf]
      %v2929 = vld [vmem:[%s2919 + $0x24] sm:$0xf]
      %v2930 = vld [vmem:[%s2919 + $0x28] sm:$0xf]
      %v2931 = vld [vmem:[%s2919 + $0x2c] sm:$0xf]
      %v2932 = vld [vmem:[%s2919 + $0x30] sm:$0xf]
      %v2933 = vld [vmem:[%s2919 + $0x34] sm:$0xf]
      %v2934 = vld [vmem:[%s2919 + $0x38] sm:$0xf]
      %v2935 = vld [vmem:[%s2919 + $0x3c] sm:$0xf]
      %v2936 = vunpack.c.l.b16 %v2740
      %v2937 = vunpack.c.l.b16 %v2750
      %v2938 = vunpack.c.l.b16 %v2764
      %v2939 = vunpack.c.l.b16 %v2774
      %v2940 = vunpack.c.l.b16 %v2788
      %v2941 = vunpack.c.l.b16 %v2798
      %v2942 = vunpack.c.l.b16 %v2812
      %v2943 = vunpack.c.l.b16 %v2822
      %v2944 = vunpack.c.l.b16 %v2836
      %v2945 = vunpack.c.l.b16 %v2846
      %v2946 = vunpack.c.l.b16 %v2860
      %v2947 = vunpack.c.l.b16 %v2870
      %v2948 = vunpack.c.l.b16 %v2884
      %v2949 = vunpack.c.l.b16 %v2894
      %v2950 = vunpack.c.l.b16 %v2908
      %v2951 = vunpack.c.l.b16 %v2918
      %v2952 = vpack.c.b16 %v2937, %v2936
      %v2953 = vpack.c.b16 %v2939, %v2938
      %v2954 = vpack.c.b16 %v2941, %v2940
      %v2955 = vpack.c.b16 %v2943, %v2942
      %v2956 = vpack.c.b16 %v2945, %v2944
      %v2957 = vpack.c.b16 %v2947, %v2946
      %v2958 = vpack.c.b16 %v2949, %v2948
      %v2959 = vpack.c.b16 %v2951, %v2950
      %v2984 = vunpack.c.l.b16 %v2920
      %v2985 = vunpack.c.l.b16 %v2921
      %v2986 = vunpack.c.l.b16 %v2922
      %v2987 = vunpack.c.l.b16 %v2923
      %v2988 = vunpack.c.l.b16 %v2924
      %v2989 = vunpack.c.l.b16 %v2925
      %v2990 = vunpack.c.l.b16 %v2926
      %v2991 = vunpack.c.l.b16 %v2927
      %v2992 = vunpack.c.l.b16 %v2928
      %v2993 = vunpack.c.l.b16 %v2929
      %v2994 = vunpack.c.l.b16 %v2930
      %v2995 = vunpack.c.l.b16 %v2931
      %v2996 = vunpack.c.l.b16 %v2932
      %v2997 = vunpack.c.l.b16 %v2933
      %v2998 = vunpack.c.l.b16 %v2934
      %v2999 = vunpack.c.l.b16 %v2935
      %v3000 = vpack.c.b16 %v2985, %v2984
      %v3001 = vpack.c.b16 %v2987, %v2986
      %v3002 = vpack.c.b16 %v2989, %v2988
      %v3003 = vpack.c.b16 %v2991, %v2990
      %v3004 = vpack.c.b16 %v2993, %v2992
      %v3005 = vpack.c.b16 %v2995, %v2994
      %v3006 = vpack.c.b16 %v2997, %v2996
      %v3007 = vpack.c.b16 %v2999, %v2998
      %3016 = vmatprep.subr.bf16.mxu0 0
      %3017 = vmatpush1.bf16.msra.mxu0 %v3000
      %3018 = vmatprep.subr.bf16.mxu0 0
      %3019 = vmatpush1.bf16.msra.mxu0 %v3001
      %3020 = vmatprep.subr.bf16.mxu0 0
      %3021 = vmatpush1.bf16.msra.mxu0 %v3002
      %3022 = vmatprep.subr.bf16.mxu0 0
      %3023 = vmatpush1.bf16.msra.mxu0 %v3003
      %3024 = vmatprep.subr.bf16.mxu0 0
      %3025 = vmatpush1.bf16.msra.mxu0 %v3004
      %3026 = vmatprep.subr.bf16.mxu0 0
      %3027 = vmatpush1.bf16.msra.mxu0 %v3005
      %3028 = vmatprep.subr.bf16.mxu0 0
      %3029 = vmatpush1.bf16.msra.mxu0 %v3006
      %3030 = vmatprep.subr.bf16.mxu0 0
      %3031 = vmatpush1.bf16.msra.mxu0 %v3007
      %3032 = vmatprep.subr.bf16.mxu0 0
      %3033 = vmatpush1.bf16.msra.mxu0 0
      %3034 = vmatprep.subr.bf16.mxu0 0
      %3035 = vmatpush1.bf16.msra.mxu0 0
      %3036 = vmatprep.subr.bf16.mxu0 0
      %3037 = vmatpush1.bf16.msra.mxu0 0
      %3038 = vmatprep.subr.bf16.mxu0 0
      %3039 = vmatpush1.bf16.msra.mxu0 0
      %3040 = vmatprep.subr.bf16.mxu0 0
      %3041 = vmatpush1.bf16.msra.mxu0 0
      %3042 = vmatprep.subr.bf16.mxu0 0
      %3043 = vmatpush1.bf16.msra.mxu0 0
      %3044 = vmatprep.subr.bf16.mxu0 0
      %3045 = vmatpush1.bf16.msra.mxu0 0
      %3046 = vmatprep.subr.bf16.mxu0 0
      %3047 = vmatpush1.bf16.msra.mxu0 0
      %3048 = vmatprep.mubr.bf16.mxu0 0
      %3049 = vmatmul.mubr.bf16.gmra.mrb[0].mxu0 %v2952
      %v3050 = vpop.f32.mrb[0].mxu0
      %v3051 = vadd.f32 0.0, %v3050
      %v3052 = vpop.f32.mrb[0].mxu0
      %v3053 = vpop.f32.mrb[0].mxu0
      %v3054 = vadd.f32 0.0, %v3053
      %v3055 = vpop.f32.mrb[0].mxu0
      %3056 = vmatprep.mubr.bf16.mxu0 0
      %3057 = vmatmul.mubr.bf16.gmra.mrb[0].mxu0 %v2953
      %v3058 = vpop.f32.mrb[0].mxu0
      %v3059 = vadd.f32 0.0, %v3058
      %v3060 = vpop.f32.mrb[0].mxu0
      %v3061 = vpop.f32.mrb[0].mxu0
      %v3062 = vadd.f32 0.0, %v3061
      %v3063 = vpop.f32.mrb[0].mxu0
      %3064 = vmatprep.mubr.bf16.mxu0 0
      %3065 = vmatmul.mubr.bf16.gmra.mrb[0].mxu0 %v2954
      %v3066 = vpop.f32.mrb[0].mxu0
      %v3067 = vadd.f32 0.0, %v3066
      %v3068 = vpop.f32.mrb[0].mxu0
      %v3069 = vpop.f32.mrb[0].mxu0
      %v3070 = vadd.f32 0.0, %v3069
      %v3071 = vpop.f32.mrb[0].mxu0
      %3072 = vmatprep.mubr.bf16.mxu0 0
      %3073 = vmatmul.mubr.bf16.gmra.mrb[0].mxu0 %v2955
      %v3074 = vpop.f32.mrb[0].mxu0
      %v3075 = vadd.f32 0.0, %v3074
      %v3076 = vpop.f32.mrb[0].mxu0
      %v3077 = vpop.f32.mrb[0].mxu0
      %v3078 = vadd.f32 0.0, %v3077
      %v3079 = vpop.f32.mrb[0].mxu0
      %3080 = vmatprep.mubr.bf16.mxu0 0
      %3081 = vmatmul.mubr.bf16.gmra.mrb[0].mxu0 %v2956
      %v3082 = vpop.f32.mrb[0].mxu0
      %v3083 = vadd.f32 0.0, %v3082
      %v3084 = vpop.f32.mrb[0].mxu0
      %v3085 = vpop.f32.mrb[0].mxu0
      %v3086 = vadd.f32 0.0, %v3085
      %v3087 = vpop.f32.mrb[0].mxu0
      %3088 = vmatprep.mubr.bf16.mxu0 0
      %3089 = vmatmul.mubr.bf16.gmra.mrb[0].mxu0 %v2957
      %v3090 = vpop.f32.mrb[0].mxu0
      %v3091 = vadd.f32 0.0, %v3090
      %v3092 = vpop.f32.mrb[0].mxu0
      %v3093 = vpop.f32.mrb[0].mxu0
      %v3094 = vadd.f32 0.0, %v3093
      %v3095 = vpop.f32.mrb[0].mxu0
      %3096 = vmatprep.mubr.bf16.mxu0 0
      %3097 = vmatmul.mubr.bf16.gmra.mrb[0].mxu0 %v2958
      %v3098 = vpop.f32.mrb[0].mxu0
      %v3099 = vadd.f32 0.0, %v3098
      %v3100 = vpop.f32.mrb[0].mxu0
      %v3101 = vpop.f32.mrb[0].mxu0
      %v3102 = vadd.f32 0.0, %v3101
      %v3103 = vpop.f32.mrb[0].mxu0
      %3104 = vmatprep.mubr.bf16.mxu0 0
      %3105 = vmatmul.mubr.bf16.gmra.mrb[0].mxu0 %v2959
      %v3106 = vpop.f32.mrb[0].mxu0
      %v3107 = vadd.f32 0.0, %v3106
      %v3108 = vpop.f32.mrb[0].mxu0
      %v3109 = vpop.f32.mrb[0].mxu0
      %v3110 = vadd.f32 0.0, %v3109
      %v3111 = vpop.f32.mrb[0].mxu0
      %3112 = vdwg.mxu0
      %v3113 = vld [vmem:[#allocation2] sm:$0xff]
      %v3114 = vld [vmem:[#allocation2 + $0x8] sm:$0xff]
      %v3115 = vld [vmem:[#allocation2 + $0x10] sm:$0xff]
      %v3116 = vld [vmem:[#allocation2 + $0x18] sm:$0xff]
      %v3117 = vld [vmem:[#allocation2 + $0x20] sm:$0xff]
      %v3118 = vld [vmem:[#allocation2 + $0x28] sm:$0xff]
      %v3119 = vld [vmem:[#allocation2 + $0x30] sm:$0xff]
      %v3120 = vld [vmem:[#allocation2 + $0x38] sm:$0xff]
      %v3121 = vld [vmem:[#allocation2 + $0x40] sm:$0xff]
      %v3122 = vld [vmem:[#allocation2 + $0x48] sm:$0xff]
      %v3123 = vld [vmem:[#allocation2 + $0x50] sm:$0xff]
      %v3124 = vld [vmem:[#allocation2 + $0x58] sm:$0xff]
      %v3125 = vld [vmem:[#allocation2 + $0x60] sm:$0xff]
      %v3126 = vld [vmem:[#allocation2 + $0x68] sm:$0xff]
      %v3127 = vld [vmem:[#allocation2 + $0x70] sm:$0xff]
      %v3128 = vld [vmem:[#allocation2 + $0x78] sm:$0xff]
      %v3129 = vadd.f32 %v3113, %v3051
      %v3130 = vadd.f32 %v3114, %v3054
      %v3131 = vadd.f32 %v3115, %v3059
      %v3132 = vadd.f32 %v3116, %v3062
      %v3133 = vadd.f32 %v3117, %v3067
      %v3134 = vadd.f32 %v3118, %v3070
      %v3135 = vadd.f32 %v3119, %v3075
      %v3136 = vadd.f32 %v3120, %v3078
      %v3137 = vadd.f32 %v3121, %v3083
      %v3138 = vadd.f32 %v3122, %v3086
      %v3139 = vadd.f32 %v3123, %v3091
      %v3140 = vadd.f32 %v3124, %v3094
      %v3141 = vadd.f32 %v3125, %v3099
      %v3142 = vadd.f32 %v3126, %v3102
      %v3143 = vadd.f32 %v3127, %v3107
      %v3144 = vadd.f32 %v3128, %v3110
      %3145 = vst [vmem:[#allocation2] sm:$0xff] %v3129
      %3146 = vst [vmem:[#allocation2 + $0x8] sm:$0xff] %v3130
      %3147 = vst [vmem:[#allocation2 + $0x10] sm:$0xff] %v3131
      %3148 = vst [vmem:[#allocation2 + $0x18] sm:$0xff] %v3132
      %3149 = vst [vmem:[#allocation2 + $0x20] sm:$0xff] %v3133
      %3150 = vst [vmem:[#allocation2 + $0x28] sm:$0xff] %v3134
      %3151 = vst [vmem:[#allocation2 + $0x30] sm:$0xff] %v3135
      %3152 = vst [vmem:[#allocation2 + $0x38] sm:$0xff] %v3136
      %3153 = vst [vmem:[#allocation2 + $0x40] sm:$0xff] %v3137
      %3154 = vst [vmem:[#allocation2 + $0x48] sm:$0xff] %v3138
      %3155 = vst [vmem:[#allocation2 + $0x50] sm:$0xff] %v3139
      %3156 = vst [vmem:[#allocation2 + $0x58] sm:$0xff] %v3140
      %3157 = vst [vmem:[#allocation2 + $0x60] sm:$0xff] %v3141
      %3158 = vst [vmem:[#allocation2 + $0x68] sm:$0xff] %v3142
      %3159 = vst [vmem:[#allocation2 + $0x70] sm:$0xff] %v3143
      %3160 = vst [vmem:[#allocation2 + $0x78] sm:$0xff] %v3144
      %v3161 = vld [vmem:[%s2428] sm:$0xe]
      %v3162 = vld [vmem:[%s2428 + $0x4] sm:$0xf]
      %v3163 = vld [vmem:[%s2428 + $0x8] sm:$0x1]
      %v3164 = vld [vmem:[%s2428 + $0xc] sm:$0xe]
      %v3165 = vld [vmem:[%s2428 + $0x10] sm:$0xf]
      %v3166 = vld [vmem:[%s2428 + $0x14] sm:$0x1]
      %v3167 = vld [vmem:[%s2428 + $0x18] sm:$0xe]
      %v3168 = vld [vmem:[%s2428 + $0x1c] sm:$0xf]
      %v3169 = vld [vmem:[%s2428 + $0x20] sm:$0x1]
      %v3170 = vld [vmem:[%s2428 + $0x24] sm:$0xe]
      %v3171 = vld [vmem:[%s2428 + $0x28] sm:$0xf]
      %v3172 = vld [vmem:[%s2428 + $0x2c] sm:$0x1]
      %v3173 = vld [vmem:[%s2428 + $0x30] sm:$0xe]
      %v3174 = vld [vmem:[%s2428 + $0x34] sm:$0xf]
      %v3175 = vld [vmem:[%s2428 + $0x38] sm:$0x1]
      %v3176 = vld [vmem:[%s2428 + $0x3c] sm:$0xe]
      %v3177 = vld [vmem:[%s2428 + $0x40] sm:$0xf]
      %v3178 = vld [vmem:[%s2428 + $0x44] sm:$0x1]
      %v3179 = vld [vmem:[%s2428 + $0x48] sm:$0xe]
      %v3180 = vld [vmem:[%s2428 + $0x4c] sm:$0xf]
      %v3181 = vld [vmem:[%s2428 + $0x50] sm:$0x1]
      %v3182 = vld [vmem:[%s2428 + $0x54] sm:$0xe]
      %v3183 = vld [vmem:[%s2428 + $0x58] sm:$0xf]
      %v3184 = vld [vmem:[%s2428 + $0x5c] sm:$0x1]
      %v3209 = vrot.slane %v3161, 5
      %v3210 = vrot.slane %v3209, 4
      %v3211 = vrot.slane %v3162, 5
      %v3212 = vsel %vm1050, %v3210, %v3211
      %v3213 = vrot.slane %v3211, 4
      %v3214 = vrot.slane %v3163, 5
      %v3215 = vsel %vm1050, %v3213, %v3214
      %v3216 = vrot.slane %v3164, 5
      %v3217 = vrot.slane %v3216, 4
      %v3218 = vrot.slane %v3165, 5
      %v3219 = vsel %vm1050, %v3217, %v3218
      %v3220 = vrot.slane %v3218, 4
      %v3221 = vrot.slane %v3166, 5
      %v3222 = vsel %vm1050, %v3220, %v3221
      %v3223 = vrot.slane %v3167, 5
      %v3224 = vrot.slane %v3223, 4
      %v3225 = vrot.slane %v3168, 5
      %v3226 = vsel %vm1050, %v3224, %v3225
      %v3227 = vrot.slane %v3225, 4
      %v3228 = vrot.slane %v3169, 5
      %v3229 = vsel %vm1050, %v3227, %v3228
      %v3230 = vrot.slane %v3170, 5
      %v3231 = vrot.slane %v3230, 4
      %v3232 = vrot.slane %v3171, 5
      %v3233 = vsel %vm1050, %v3231, %v3232
      %v3234 = vrot.slane %v3232, 4
      %v3235 = vrot.slane %v3172, 5
      %v3236 = vsel %vm1050, %v3234, %v3235
      %v3237 = vrot.slane %v3173, 5
      %v3238 = vrot.slane %v3237, 4
      %v3239 = vrot.slane %v3174, 5
      %v3240 = vsel %vm1050, %v3238, %v3239
      %v3241 = vrot.slane %v3239, 4
      %v3242 = vrot.slane %v3175, 5
      %v3243 = vsel %vm1050, %v3241, %v3242
      %v3244 = vrot.slane %v3176, 5
      %v3245 = vrot.slane %v3244, 4
      %v3246 = vrot.slane %v3177, 5
      %v3247 = vsel %vm1050, %v3245, %v3246
      %v3248 = vrot.slane %v3246, 4
      %v3249 = vrot.slane %v3178, 5
      %v3250 = vsel %vm1050, %v3248, %v3249
      %v3251 = vrot.slane %v3179, 5
      %v3252 = vrot.slane %v3251, 4
      %v3253 = vrot.slane %v3180, 5
      %v3254 = vsel %vm1050, %v3252, %v3253
      %v3255 = vrot.slane %v3253, 4
      %v3256 = vrot.slane %v3181, 5
      %v3257 = vsel %vm1050, %v3255, %v3256
      %v3258 = vrot.slane %v3182, 5
      %v3259 = vrot.slane %v3258, 4
      %v3260 = vrot.slane %v3183, 5
      %v3261 = vsel %vm1050, %v3259, %v3260
      %v3262 = vrot.slane %v3260, 4
      %v3263 = vrot.slane %v3184, 5
      %v3264 = vsel %vm1050, %v3262, %v3263
      %s3265 = scalar_lea.vmem %s276, 512
      %v3266 = vld [vmem:[%s3265] sm:$0xf]
      %v3267 = vld [vmem:[%s3265 + $0x4] sm:$0xf]
      %v3268 = vld [vmem:[%s3265 + $0x8] sm:$0xf]
      %v3269 = vld [vmem:[%s3265 + $0xc] sm:$0xf]
      %v3270 = vld [vmem:[%s3265 + $0x10] sm:$0xf]
      %v3271 = vld [vmem:[%s3265 + $0x14] sm:$0xf]
      %v3272 = vld [vmem:[%s3265 + $0x18] sm:$0xf]
      %v3273 = vld [vmem:[%s3265 + $0x1c] sm:$0xf]
      %v3274 = vld [vmem:[%s3265 + $0x20] sm:$0xf]
      %v3275 = vld [vmem:[%s3265 + $0x24] sm:$0xf]
      %v3276 = vld [vmem:[%s3265 + $0x28] sm:$0xf]
      %v3277 = vld [vmem:[%s3265 + $0x2c] sm:$0xf]
      %v3278 = vld [vmem:[%s3265 + $0x30] sm:$0xf]
      %v3279 = vld [vmem:[%s3265 + $0x34] sm:$0xf]
      %v3280 = vld [vmem:[%s3265 + $0x38] sm:$0xf]
      %v3281 = vld [vmem:[%s3265 + $0x3c] sm:$0xf]
      %v3282 = vunpack.c.l.b16 %v3212
      %v3283 = vunpack.c.l.b16 %v3215
      %v3284 = vunpack.c.l.b16 %v3219
      %v3285 = vunpack.c.l.b16 %v3222
      %v3286 = vunpack.c.l.b16 %v3226
      %v3287 = vunpack.c.l.b16 %v3229
      %v3288 = vunpack.c.l.b16 %v3233
      %v3289 = vunpack.c.l.b16 %v3236
      %v3290 = vunpack.c.l.b16 %v3240
      %v3291 = vunpack.c.l.b16 %v3243
      %v3292 = vunpack.c.l.b16 %v3247
      %v3293 = vunpack.c.l.b16 %v3250
      %v3294 = vunpack.c.l.b16 %v3254
      %v3295 = vunpack.c.l.b16 %v3257
      %v3296 = vunpack.c.l.b16 %v3261
      %v3297 = vunpack.c.l.b16 %v3264
      %v3298 = vpack.c.b16 %v3283, %v3282
      %v3299 = vpack.c.b16 %v3285, %v3284
      %v3300 = vpack.c.b16 %v3287, %v3286
      %v3301 = vpack.c.b16 %v3289, %v3288
      %v3302 = vpack.c.b16 %v3291, %v3290
      %v3303 = vpack.c.b16 %v3293, %v3292
      %v3304 = vpack.c.b16 %v3295, %v3294
      %v3305 = vpack.c.b16 %v3297, %v3296
      %v3330 = vunpack.c.l.b16 %v3266
      %v3331 = vunpack.c.l.b16 %v3267
      %v3332 = vunpack.c.l.b16 %v3268
      %v3333 = vunpack.c.l.b16 %v3269
      %v3334 = vunpack.c.l.b16 %v3270
      %v3335 = vunpack.c.l.b16 %v3271
      %v3336 = vunpack.c.l.b16 %v3272
      %v3337 = vunpack.c.l.b16 %v3273
      %v3338 = vunpack.c.l.b16 %v3274
      %v3339 = vunpack.c.l.b16 %v3275
      %v3340 = vunpack.c.l.b16 %v3276
      %v3341 = vunpack.c.l.b16 %v3277
      %v3342 = vunpack.c.l.b16 %v3278
      %v3343 = vunpack.c.l.b16 %v3279
      %v3344 = vunpack.c.l.b16 %v3280
      %v3345 = vunpack.c.l.b16 %v3281
      %v3346 = vpack.c.b16 %v3331, %v3330
      %v3347 = vpack.c.b16 %v3333, %v3332
      %v3348 = vpack.c.b16 %v3335, %v3334
      %v3349 = vpack.c.b16 %v3337, %v3336
      %v3350 = vpack.c.b16 %v3339, %v3338
      %v3351 = vpack.c.b16 %v3341, %v3340
      %v3352 = vpack.c.b16 %v3343, %v3342
      %v3353 = vpack.c.b16 %v3345, %v3344
      %3362 = vmatprep.subr.bf16.mxu0 0
      %3363 = vmatpush1.bf16.msra.mxu0 %v3346
      %3364 = vmatprep.subr.bf16.mxu0 0
      %3365 = vmatpush1.bf16.msra.mxu0 %v3347
      %3366 = vmatprep.subr.bf16.mxu0 0
      %3367 = vmatpush1.bf16.msra.mxu0 %v3348
      %3368 = vmatprep.subr.bf16.mxu0 0
      %3369 = vmatpush1.bf16.msra.mxu0 %v3349
      %3370 = vmatprep.subr.bf16.mxu0 0
      %3371 = vmatpush1.bf16.msra.mxu0 %v3350
      %3372 = vmatprep.subr.bf16.mxu0 0
      %3373 = vmatpush1.bf16.msra.mxu0 %v3351
      %3374 = vmatprep.subr.bf16.mxu0 0
      %3375 = vmatpush1.bf16.msra.mxu0 %v3352
      %3376 = vmatprep.subr.bf16.mxu0 0
      %3377 = vmatpush1.bf16.msra.mxu0 %v3353
      %3378 = vmatprep.subr.bf16.mxu0 0
      %3379 = vmatpush1.bf16.msra.mxu0 0
      %3380 = vmatprep.subr.bf16.mxu0 0
      %3381 = vmatpush1.bf16.msra.mxu0 0
      %3382 = vmatprep.subr.bf16.mxu0 0
      %3383 = vmatpush1.bf16.msra.mxu0 0
      %3384 = vmatprep.subr.bf16.mxu0 0
      %3385 = vmatpush1.bf16.msra.mxu0 0
      %3386 = vmatprep.subr.bf16.mxu0 0
      %3387 = vmatpush1.bf16.msra.mxu0 0
      %3388 = vmatprep.subr.bf16.mxu0 0
      %3389 = vmatpush1.bf16.msra.mxu0 0
      %3390 = vmatprep.subr.bf16.mxu0 0
      %3391 = vmatpush1.bf16.msra.mxu0 0
      %3392 = vmatprep.subr.bf16.mxu0 0
      %3393 = vmatpush1.bf16.msra.mxu0 0
      %3394 = vmatprep.mubr.bf16.mxu0 0
      %3395 = vmatmul.mubr.bf16.gmra.mrb[0].mxu0 %v3298
      %v3396 = vpop.f32.mrb[0].mxu0
      %v3397 = vadd.f32 0.0, %v3396
      %v3398 = vpop.f32.mrb[0].mxu0
      %v3399 = vpop.f32.mrb[0].mxu0
      %v3400 = vadd.f32 0.0, %v3399
      %v3401 = vpop.f32.mrb[0].mxu0
      %3402 = vmatprep.mubr.bf16.mxu0 0
      %3403 = vmatmul.mubr.bf16.gmra.mrb[0].mxu0 %v3299
      %v3404 = vpop.f32.mrb[0].mxu0
      %v3405 = vadd.f32 0.0, %v3404
      %v3406 = vpop.f32.mrb[0].mxu0
      %v3407 = vpop.f32.mrb[0].mxu0
      %v3408 = vadd.f32 0.0, %v3407
      %v3409 = vpop.f32.mrb[0].mxu0
      %3410 = vmatprep.mubr.bf16.mxu0 0
      %3411 = vmatmul.mubr.bf16.gmra.mrb[0].mxu0 %v3300
      %v3412 = vpop.f32.mrb[0].mxu0
      %v3413 = vadd.f32 0.0, %v3412
      %v3414 = vpop.f32.mrb[0].mxu0
      %v3415 = vpop.f32.mrb[0].mxu0
      %v3416 = vadd.f32 0.0, %v3415
      %v3417 = vpop.f32.mrb[0].mxu0
      %3418 = vmatprep.mubr.bf16.mxu0 0
      %3419 = vmatmul.mubr.bf16.gmra.mrb[0].mxu0 %v3301
      %v3420 = vpop.f32.mrb[0].mxu0
      %v3421 = vadd.f32 0.0, %v3420
      %v3422 = vpop.f32.mrb[0].mxu0
      %v3423 = vpop.f32.mrb[0].mxu0
      %v3424 = vadd.f32 0.0, %v3423
      %v3425 = vpop.f32.mrb[0].mxu0
      %3426 = vmatprep.mubr.bf16.mxu0 0
      %3427 = vmatmul.mubr.bf16.gmra.mrb[0].mxu0 %v3302
      %v3428 = vpop.f32.mrb[0].mxu0
      %v3429 = vadd.f32 0.0, %v3428
      %v3430 = vpop.f32.mrb[0].mxu0
      %v3431 = vpop.f32.mrb[0].mxu0
      %v3432 = vadd.f32 0.0, %v3431
      %v3433 = vpop.f32.mrb[0].mxu0
      %3434 = vmatprep.mubr.bf16.mxu0 0
      %3435 = vmatmul.mubr.bf16.gmra.mrb[0].mxu0 %v3303
      %v3436 = vpop.f32.mrb[0].mxu0
      %v3437 = vadd.f32 0.0, %v3436
      %v3438 = vpop.f32.mrb[0].mxu0
      %v3439 = vpop.f32.mrb[0].mxu0
      %v3440 = vadd.f32 0.0, %v3439
      %v3441 = vpop.f32.mrb[0].mxu0
      %3442 = vmatprep.mubr.bf16.mxu0 0
      %3443 = vmatmul.mubr.bf16.gmra.mrb[0].mxu0 %v3304
      %v3444 = vpop.f32.mrb[0].mxu0
      %v3445 = vadd.f32 0.0, %v3444
      %v3446 = vpop.f32.mrb[0].mxu0
      %v3447 = vpop.f32.mrb[0].mxu0
      %v3448 = vadd.f32 0.0, %v3447
      %v3449 = vpop.f32.mrb[0].mxu0
      %3450 = vmatprep.mubr.bf16.mxu0 0
      %3451 = vmatmul.mubr.bf16.gmra.mrb[0].mxu0 %v3305
      %v3452 = vpop.f32.mrb[0].mxu0
      %v3453 = vadd.f32 0.0, %v3452
      %v3454 = vpop.f32.mrb[0].mxu0
      %v3455 = vpop.f32.mrb[0].mxu0
      %v3456 = vadd.f32 0.0, %v3455
      %v3457 = vpop.f32.mrb[0].mxu0
      %3458 = vdwg.mxu0
      %v3459 = vld [vmem:[#allocation2] sm:$0xff]
      %v3460 = vld [vmem:[#allocation2 + $0x8] sm:$0xff]
      %v3461 = vld [vmem:[#allocation2 + $0x10] sm:$0xff]
      %v3462 = vld [vmem:[#allocation2 + $0x18] sm:$0xff]
      %v3463 = vld [vmem:[#allocation2 + $0x20] sm:$0xff]
      %v3464 = vld [vmem:[#allocation2 + $0x28] sm:$0xff]
      %v3465 = vld [vmem:[#allocation2 + $0x30] sm:$0xff]
      %v3466 = vld [vmem:[#allocation2 + $0x38] sm:$0xff]
      %v3467 = vld [vmem:[#allocation2 + $0x40] sm:$0xff]
      %v3468 = vld [vmem:[#allocation2 + $0x48] sm:$0xff]
      %v3469 = vld [vmem:[#allocation2 + $0x50] sm:$0xff]
      %v3470 = vld [vmem:[#allocation2 + $0x58] sm:$0xff]
      %v3471 = vld [vmem:[#allocation2 + $0x60] sm:$0xff]
      %v3472 = vld [vmem:[#allocation2 + $0x68] sm:$0xff]
      %v3473 = vld [vmem:[#allocation2 + $0x70] sm:$0xff]
      %v3474 = vld [vmem:[#allocation2 + $0x78] sm:$0xff]
      %v3475 = vadd.f32 %v3459, %v3397
      %v3476 = vadd.f32 %v3460, %v3400
      %v3477 = vadd.f32 %v3461, %v3405
      %v3478 = vadd.f32 %v3462, %v3408
      %v3479 = vadd.f32 %v3463, %v3413
      %v3480 = vadd.f32 %v3464, %v3416
      %v3481 = vadd.f32 %v3465, %v3421
      %v3482 = vadd.f32 %v3466, %v3424
      %v3483 = vadd.f32 %v3467, %v3429
      %v3484 = vadd.f32 %v3468, %v3432
      %v3485 = vadd.f32 %v3469, %v3437
      %v3486 = vadd.f32 %v3470, %v3440
      %v3487 = vadd.f32 %v3471, %v3445
      %v3488 = vadd.f32 %v3472, %v3448
      %v3489 = vadd.f32 %v3473, %v3453
      %v3490 = vadd.f32 %v3474, %v3456
      %3491 = vst [vmem:[#allocation2] sm:$0xff] %v3475
      %3492 = vst [vmem:[#allocation2 + $0x8] sm:$0xff] %v3476
      %3493 = vst [vmem:[#allocation2 + $0x10] sm:$0xff] %v3477
      %3494 = vst [vmem:[#allocation2 + $0x18] sm:$0xff] %v3478
      %3495 = vst [vmem:[#allocation2 + $0x20] sm:$0xff] %v3479
      %3496 = vst [vmem:[#allocation2 + $0x28] sm:$0xff] %v3480
      %3497 = vst [vmem:[#allocation2 + $0x30] sm:$0xff] %v3481
      %3498 = vst [vmem:[#allocation2 + $0x38] sm:$0xff] %v3482
      %3499 = vst [vmem:[#allocation2 + $0x40] sm:$0xff] %v3483
      %3500 = vst [vmem:[#allocation2 + $0x48] sm:$0xff] %v3484
      %3501 = vst [vmem:[#allocation2 + $0x50] sm:$0xff] %v3485
      %3502 = vst [vmem:[#allocation2 + $0x58] sm:$0xff] %v3486
      %3503 = vst [vmem:[#allocation2 + $0x60] sm:$0xff] %v3487
      %3504 = vst [vmem:[#allocation2 + $0x68] sm:$0xff] %v3488
      %3505 = vst [vmem:[#allocation2 + $0x70] sm:$0xff] %v3489
      %3506 = vst [vmem:[#allocation2 + $0x78] sm:$0xff] %v3490
      %v3507 = vld [vmem:[#allocation2] sm:$0xff]
      %v3508 = vld [vmem:[#allocation2 + $0x8] sm:$0xff]
      %v3509 = vld [vmem:[#allocation2 + $0x10] sm:$0xff]
      %v3510 = vld [vmem:[#allocation2 + $0x18] sm:$0xff]
      %v3511 = vld [vmem:[#allocation2 + $0x20] sm:$0xff]
      %v3512 = vld [vmem:[#allocation2 + $0x28] sm:$0xff]
      %v3513 = vld [vmem:[#allocation2 + $0x30] sm:$0xff]
      %v3514 = vld [vmem:[#allocation2 + $0x38] sm:$0xff]
      %v3515 = vld [vmem:[#allocation2 + $0x40] sm:$0xff]
      %v3516 = vld [vmem:[#allocation2 + $0x48] sm:$0xff]
      %v3517 = vld [vmem:[#allocation2 + $0x50] sm:$0xff]
      %v3518 = vld [vmem:[#allocation2 + $0x58] sm:$0xff]
      %v3519 = vld [vmem:[#allocation2 + $0x60] sm:$0xff]
      %v3520 = vld [vmem:[#allocation2 + $0x68] sm:$0xff]
      %v3521 = vld [vmem:[#allocation2 + $0x70] sm:$0xff]
      %v3522 = vld [vmem:[#allocation2 + $0x78] sm:$0xff]
      %v3523 = vld [vmem:[%s279] sm:$0x1]
      %v3525 = vlaneseq
      %v3526 = vshrl.u32 %v3525, 7
      %v3527 = vsub.s32 0, %v3526
      %v3528 = vrot.slane %v3523, %v3527
      %v3530 = vmul.f32 %v3507, %v3528
      %v3531 = vmul.f32 %v3508, %v3528
      %v3532 = vmul.f32 %v3509, %v3528
      %v3533 = vmul.f32 %v3510, %v3528
      %v3534 = vmul.f32 %v3511, %v3528
      %v3535 = vmul.f32 %v3512, %v3528
      %v3536 = vmul.f32 %v3513, %v3528
      %v3537 = vmul.f32 %v3514, %v3528
      %v3538 = vmul.f32 %v3515, %v3528
      %v3539 = vmul.f32 %v3516, %v3528
      %v3540 = vmul.f32 %v3517, %v3528
      %v3541 = vmul.f32 %v3518, %v3528
      %v3542 = vmul.f32 %v3519, %v3528
      %v3543 = vmul.f32 %v3520, %v3528
      %v3544 = vmul.f32 %v3521, %v3528
      %v3545 = vmul.f32 %v3522, %v3528
      %v3546 = vld [vmem:[%s282] sm:$0x1]
      %v3548 = vlaneseq
      %v3549 = vshrl.u32 %v3548, 7
      %v3550 = vsub.s32 0, %v3549
      %v3551 = vrot.slane %v3546, %v3550
      %v3553 = vadd.f32 %v3530, %v3551
      %v3554 = vadd.f32 %v3531, %v3551
      %v3555 = vadd.f32 %v3532, %v3551
      %v3556 = vadd.f32 %v3533, %v3551
      %v3557 = vadd.f32 %v3534, %v3551
      %v3558 = vadd.f32 %v3535, %v3551
      %v3559 = vadd.f32 %v3536, %v3551
      %v3560 = vadd.f32 %v3537, %v3551
      %v3561 = vadd.f32 %v3538, %v3551
      %v3562 = vadd.f32 %v3539, %v3551
      %v3563 = vadd.f32 %v3540, %v3551
      %v3564 = vadd.f32 %v3541, %v3551
      %v3565 = vadd.f32 %v3542, %v3551
      %v3566 = vadd.f32 %v3543, %v3551
      %v3567 = vadd.f32 %v3544, %v3551
      %v3568 = vadd.f32 %v3545, %v3551
      %vm3569 = vcmp.gt.f32.partialorder %v3553, 0.0
      %vm3570 = vcmp.gt.f32.partialorder %v3554, 0.0
      %vm3571 = vcmp.gt.f32.partialorder %v3555, 0.0
      %vm3572 = vcmp.gt.f32.partialorder %v3556, 0.0
      %vm3573 = vcmp.gt.f32.partialorder %v3557, 0.0
      %vm3574 = vcmp.gt.f32.partialorder %v3558, 0.0
      %vm3575 = vcmp.gt.f32.partialorder %v3559, 0.0
      %vm3576 = vcmp.gt.f32.partialorder %v3560, 0.0
      %vm3577 = vcmp.gt.f32.partialorder %v3561, 0.0
      %vm3578 = vcmp.gt.f32.partialorder %v3562, 0.0
      %vm3579 = vcmp.gt.f32.partialorder %v3563, 0.0
      %vm3580 = vcmp.gt.f32.partialorder %v3564, 0.0
      %vm3581 = vcmp.gt.f32.partialorder %v3565, 0.0
      %vm3582 = vcmp.gt.f32.partialorder %v3566, 0.0
      %vm3583 = vcmp.gt.f32.partialorder %v3567, 0.0
      %vm3584 = vcmp.gt.f32.partialorder %v3568, 0.0
      %v3585 = vmul.f32 %v3553, 0.1
      %v3586 = vmul.f32 %v3554, 0.1
      %v3587 = vmul.f32 %v3555, 0.1
      %v3588 = vmul.f32 %v3556, 0.1
      %v3589 = vmul.f32 %v3557, 0.1
      %v3590 = vmul.f32 %v3558, 0.1
      %v3591 = vmul.f32 %v3559, 0.1
      %v3592 = vmul.f32 %v3560, 0.1
      %v3593 = vmul.f32 %v3561, 0.1
      %v3594 = vmul.f32 %v3562, 0.1
      %v3595 = vmul.f32 %v3563, 0.1
      %v3596 = vmul.f32 %v3564, 0.1
      %v3597 = vmul.f32 %v3565, 0.1
      %v3598 = vmul.f32 %v3566, 0.1
      %v3599 = vmul.f32 %v3567, 0.1
      %v3600 = vmul.f32 %v3568, 0.1
      %v3601 = vsel %vm3569, %v3553, %v3585
      %v3602 = vsel %vm3570, %v3554, %v3586
      %v3603 = vsel %vm3571, %v3555, %v3587
      %v3604 = vsel %vm3572, %v3556, %v3588
      %v3605 = vsel %vm3573, %v3557, %v3589
      %v3606 = vsel %vm3574, %v3558, %v3590
      %v3607 = vsel %vm3575, %v3559, %v3591
      %v3608 = vsel %vm3576, %v3560, %v3592
      %v3609 = vsel %vm3577, %v3561, %v3593
      %v3610 = vsel %vm3578, %v3562, %v3594
      %v3611 = vsel %vm3579, %v3563, %v3595
      %v3612 = vsel %vm3580, %v3564, %v3596
      %v3613 = vsel %vm3581, %v3565, %v3597
      %v3614 = vsel %vm3582, %v3566, %v3598
      %v3615 = vsel %vm3583, %v3567, %v3599
      %v3616 = vsel %vm3584, %v3568, %v3600
      %3617 = vst [vmem:[%s295] sm:$0xff] %v3601
      %3618 = vst [vmem:[%s295 + $0x8] sm:$0xff] %v3602
      %3619 = vst [vmem:[%s295 + $0x10] sm:$0xff] %v3603
      %3620 = vst [vmem:[%s295 + $0x18] sm:$0xff] %v3604
      %3621 = vst [vmem:[%s295 + $0x20] sm:$0xff] %v3605
      %3622 = vst [vmem:[%s295 + $0x28] sm:$0xff] %v3606
      %3623 = vst [vmem:[%s295 + $0x30] sm:$0xff] %v3607
      %3624 = vst [vmem:[%s295 + $0x38] sm:$0xff] %v3608
      %3625 = vst [vmem:[%s295 + $0x40] sm:$0xff] %v3609
      %3626 = vst [vmem:[%s295 + $0x48] sm:$0xff] %v3610
      %3627 = vst [vmem:[%s295 + $0x50] sm:$0xff] %v3611
      %3628 = vst [vmem:[%s295 + $0x58] sm:$0xff] %v3612
      %3629 = vst [vmem:[%s295 + $0x60] sm:$0xff] %v3613
      %3630 = vst [vmem:[%s295 + $0x68] sm:$0xff] %v3614
      %3631 = vst [vmem:[%s295 + $0x70] sm:$0xff] %v3615
      %3632 = vst [vmem:[%s295 + $0x78] sm:$0xff] %v3616
      %s3633 = smul.u32 8, %s22
      %p3634 = scmp.lt.s32.totalorder %s21, 1
      %s3635 = scalar_select %p3634, %s21, 1
      %p3636 = scmp.lt.s32.totalorder %s3633, 15
      %s3637 = scalar_select %p3636, %s3633, 15
      %p3638 = scmp.lt.s32.totalorder %s20, 0
      %s3639 = scalar_select %p3638, %s20, 0
      %s3640 = smul.addr %s3637, 2
      %s3641 = sadd.s32 %s3639, %s3640
      %s3642 = smul.addr %s3635, 32
      %s3643 = sadd.s32 %s3641, %s3642
      %s3644 = smul.addr %s3643, 8
      %s3645 = scalar_lea.vmem %s4, %s3644
      // Predicated region
      $region37: #{cnn_block_forward.1} parent=35 // pred_check
        %p3646 = pneg %p162
      $region38: #{cnn_block_forward.1} parent=35 // pred_check_branch
        %3648 = sbr.rel (%p3646) target = $region40
      $region39: #{cnn_block_forward.1} parent=35 // pred_region
        %s3649 = smul.u32 8, %s22
      $region40: #{cnn_block_forward.1} parent=35 // pred_fallthru
        _
    $region36: #{cnn_block_forward.1} parent=5 // pred_fallthru
      _
    %p3650 = scmp.le.s32.totalorder 2, %s10
    // Predicated region
    $region41: #{cnn_block_forward.1} parent=5 // pred_check
      %p3651 = pneg %p3650
    $region42: #{cnn_block_forward.1} parent=5 // pred_check_branch
      %3653 = sbr.rel (%p3651) target = $region44
    $region43: #{cnn_block_forward.1} parent=5 // pred_region
      %s3654 = ssub.s32 %s10, 2
      // Predicated region
      $region45: #{cnn_block_forward.1} parent=43 // pred_check
        %p3655 = pneg %p168
      $region46: #{cnn_block_forward.1} parent=43 // pred_check_branch
        %3657 = sbr.rel (%p3655) target = $region48
      $region47: #{cnn_block_forward.1} parent=43 // pred_region
        %s3658 = smul.u32 8, %s25
        %p3659 = scmp.lt.s32.totalorder %s24, 1
        %s3660 = scalar_select %p3659, %s24, 1
        %p3661 = scmp.lt.s32.totalorder %s3658, 15
        %s3662 = scalar_select %p3661, %s3658, 15
        %p3663 = scmp.lt.s32.totalorder %s23, 0
        %s3664 = scalar_select %p3663, %s23, 0
        %s3665 = smul.addr %s3662, 2
        %s3666 = sadd.s32 %s3664, %s3665
        %s3667 = smul.addr %s3660, 32
        %s3668 = sadd.s32 %s3666, %s3667
        %s3669 = smul.addr %s3668, 8
        %s3670 = scalar_lea.vmem %s4, %s3669
      $region48: #{cnn_block_forward.1} parent=43 // pred_fallthru
        _
    $region44: #{cnn_block_forward.1} parent=5 // pred_fallthru
      _
  $region6: #{cnn_block_forward.1} parent=0 // loop_footer
    %s14 = sadd.s32 1, %s10
  $region7: #{cnn_block_forward.1} parent=0 // loop_footer_branch
    %9 = sbr.rel target = $region3
  $region8: #{cnn_block_forward.1} parent=0 // loop_exit
    _

</llo_original>
